<compile_context>
chip_gen: v7x
topology: tpu7x:2x2x1
jax: 0.10.0
libtpu: 0.0.40
codegen_flags: <defaults>
</compile_context>

<pallas_src>
import functools

import jax
import jax.numpy as jnp
import numpy as np
from jax import lax
from jax.experimental import pallas as pl
from jax.experimental.pallas import tpu as pltpu


def _regat_kernel(x_full_ref, x_tile_ref, w_ref, wl_ref, wr_ref, etype_ref,
                  ew_ref, o_ref, *, num_heads, out_feats, num_etypes,
                  neg_slope):
    H, D = num_heads, out_feats

    x_full = x_full_ref[...]                                   # (N, F)  f32
    # Projection for all source nodes: feat = x @ W   (bf16 MXU, f32 acc)
    feat_src = jnp.dot(x_full.astype(jnp.bfloat16), w_ref[...],
                       preferred_element_type=jnp.float32)     # (N, HD) f32

    # Source scores for ALL heads in one MXU call (folded W*attn_l, f32):
    #   el_rows[h, src] = sum_f wl[h, f] * x[src, f]
    el_rows = lax.dot_general(wl_ref[...], x_full,
                              dimension_numbers=(((1,), (1,)), ((), ())),
                              preferred_element_type=jnp.float32)   # (H, N)
    # Destination scores for this dst tile, all heads (folded W*attn_r, f32):
    er_cols = jnp.dot(x_tile_ref[...], wr_ref[...],
                      preferred_element_type=jnp.float32)           # (TM, H)

    etype = etype_ref[...]                                     # (TM, N) i32
    edge_mask = etype > 0
    adj_f = edge_mask.astype(jnp.float32)
    # Hoisted one-hot edge-type planes (T compares total, reused by all heads).
    onehot = [(etype == (t + 1)).astype(jnp.float32) for t in range(num_etypes)]

    feat_src_bf = feat_src.astype(jnp.bfloat16)

    outs = []
    for h in range(H):                                         # static head loop
        # relational bias ee[dst, src] = ew[etype - 1, h]
        ee = onehot[0] * ew_ref[0, h]
        for t in range(1, num_etypes):
            ee = ee + onehot[t] * ew_ref[t, h]

        # e[dst, src] = el[src] + er[dst] + ee   (fn.u_add_v + edge bias)
        e = er_cols[:, h:h + 1] + el_rows[h:h + 1, :] + ee     # (TM, N)
        e = jnp.where(e >= 0, e, neg_slope * e)                # LeakyReLU
        e = jnp.where(edge_mask, e, -1e30)                     # mask non-edges

        # edge_softmax over incoming edges per destination node (unnormalized)
        m = jnp.max(e, axis=-1, keepdims=True)
        p = jnp.exp(e - m) * adj_f
        denom = jnp.sum(p, axis=-1, keepdims=True)
        inv = pl.reciprocal(jnp.maximum(denom, 1e-20), approx=True)

        # message passing on unnormalized weights, then scale (TM, D) result.
        # NOTE: 32-lane slice of feat per head is unavoidable for D=32 without
        # padding out_feats to 128.
        out_h = jnp.dot(p.astype(jnp.bfloat16),
                        feat_src_bf[:, h * D:(h + 1) * D],
                        preferred_element_type=jnp.float32)    # (TM, D)
        outs.append(out_h * inv)

    # Lane-dense store: one (TM, H*D) slab instead of H masked 32-lane stores.
    o_ref[...] = jnp.concatenate(outs, axis=-1)


def regat_conv(x, W, attn_l, attn_r, etype, ew_proc, *, num_heads, out_feats,
               negative_slope=0.2):
    N, F = x.shape
    H, D = num_heads, out_feats
    HD = H * D
    T = ew_proc.shape[0]

    # Fold the projection and attention vectors (both are parameters) into
    # per-head score matrices so all heads' el/er come from one MXU call each.
    W3 = W.reshape(F, H, D)
    wl_rows = jnp.einsum('fhd,hd->hf', W3, attn_l).astype(jnp.float32)  # (H, F)
    wr_cols = jnp.einsum('fhd,hd->fh', W3, attn_r).astype(jnp.float32)  # (F, H)
    w_bf16 = W.astype(jnp.bfloat16)

    TM = 128 if (N % 128 == 0) else N          # dst-row tile
    num_tiles = N // TM

    kernel = functools.partial(
        _regat_kernel, num_heads=H, out_feats=D, num_etypes=T,
        neg_slope=negative_slope)

    flops = num_tiles * (2 * N * F * HD + 2 * H * F * N + 2 * TM * F * H
                         + 2 * H * TM * N * D)
    cost = pl.CostEstimate(
        flops=int(flops),
        transcendentals=int(H * N * N),
        bytes_accessed=int(4 * N * F * 2 + 2 * F * HD + 4 * N * N + 4 * N * HD))

    out = pl.pallas_call(
        kernel,
        out_shape=jax.ShapeDtypeStruct((N, HD), jnp.float32),
        grid=(num_tiles,),
        in_specs=[
            pl.BlockSpec((N, F), lambda i: (0, 0)),    # x, all source rows
            pl.BlockSpec((TM, F), lambda i: (i, 0)),   # x, this dst tile
            pl.BlockSpec((F, HD), lambda i: (0, 0)),   # W (bf16)
            pl.BlockSpec((H, F), lambda i: (0, 0)),    # folded attn_l (el)
            pl.BlockSpec((F, H), lambda i: (0, 0)),    # folded attn_r (er)
            pl.BlockSpec((TM, N), lambda i: (i, 0)),   # etype [dst, src] tile
            pl.BlockSpec(memory_space=pltpu.MemorySpace.SMEM),  # (T, H) table
        ],
        out_specs=pl.BlockSpec((TM, HD), lambda i: (i, 0)),
        compiler_params=pltpu.CompilerParams(
            dimension_semantics=("parallel",),
            vmem_limit_bytes=64 * 1024 * 1024),
        cost_estimate=cost,
    )(x, x, w_bf16, wl_rows, wr_cols, etype, ew_proc)
    return out.reshape(N, H, D)


def regat_reference(x, W, attn_l, attn_r, etype, ew_proc, *, num_heads,
                    out_feats, negative_slope=0.2):
    """Pure-JAX dense f32 reference mirroring the PyTorch/DGL semantics."""
    N = x.shape[0]
    H, D = num_heads, out_feats
    feat = (x @ W).reshape(N, H, D)
    el = jnp.sum(feat * attn_l[None], axis=-1)                 # (N, H)  src
    er = jnp.sum(feat * attn_r[None], axis=-1)                 # (N, H)  dst
    e = er[:, None, :] + el[None, :, :]                        # (dst, src, H)
    adj = (etype > 0).astype(jnp.float32)
    ee = jnp.where(etype[:, :, None] > 0,
                   ew_proc[jnp.clip(etype - 1, 0, ew_proc.shape[0] - 1)], 0.0)
    e = e + ee
    e = jnp.where(e >= 0, e, negative_slope * e)
    e = jnp.where(adj[:, :, None] > 0, e, -1e30)
    m = jnp.max(e, axis=1, keepdims=True)
    p = jnp.exp(e - m) * adj[:, :, None]
    denom = jnp.maximum(jnp.sum(p, axis=1, keepdims=True), 1e-20)
    a = p / denom
    return jnp.einsum('ijh,jhd->ihd', a, feat)


if __name__ == "__main__":
    # Small synthetic config: num_etypes=3, scaling_factor=4.0,
    # in_feats=32, out_feats=32, num_heads=4, N=256 nodes (2 dst tiles of 128).
    N, IN, OUT, H, T = 256, 32, 32, 4, 3
    alpha = 4.0

    key = jax.random.PRNGKey(0)
    kx, kw, kl, kr, ka, ke, kew = jax.random.split(key, 7)

    gain = float(np.sqrt(2.0))  # calculate_gain('relu')
    # fc.weight xavier_normal (stored pre-transposed as (in, H*out))
    W = (gain * np.sqrt(2.0 / (IN + OUT * H))
         * jax.random.normal(kw, (IN, OUT * H), jnp.float32))
    attn_std = gain * np.sqrt(2.0 / (H * OUT + OUT))
    attn_l = attn_std * jax.random.normal(kl, (H, OUT), jnp.float32)
    attn_r = attn_std * jax.random.normal(kr, (H, OUT), jnp.float32)
    # edge_weight: random values (as after training) so the relational-bias
    # indexing path is actually exercised (reset_parameters' constant init
    # would make all edge types identical).
    edge_weight = 0.5 * jax.random.normal(kew, (T, H), jnp.float32)
    # forward-time prep: scale by alpha, then default-slope LeakyReLU (0.01)
    ew = edge_weight * alpha
    ew_proc = jnp.where(ew >= 0, ew, 0.01 * ew)

    # Node features and a deterministic dense graph (with self-loops);
    # etype[dst, src] = 0 where no edge, 1..T on edges.
    x = jax.random.normal(kx, (N, IN), jnp.float32)
    adj_b = jax.random.bernoulli(ka, 0.15, (N, N)) | jnp.eye(N, dtype=bool)
    etype = (jax.random.randint(ke, (N, N), 1, T + 1) * adj_b).astype(jnp.int32)

    out = regat_conv(x, W, attn_l, attn_r, etype, ew_proc,
                     num_heads=H, out_feats=OUT)
    out = jax.block_until_ready(out)

    ref = regat_reference(x, W, attn_l, attn_r, etype, ew_proc,
                          num_heads=H, out_feats=OUT)
    # bf16 MXU inputs for projection / aggregation -> ~1e-2 level tolerance.
    np.testing.assert_allclose(np.asarray(out), np.asarray(ref),
                               rtol=2e-2, atol=2e-2)
    print("KERNEL_OK")
</pallas_src>

<mosaic_0001>
module attributes {stable_mosaic.version = 11 : i64} {
  func.func @_regat_kernel(%arg0: i32, %arg1: memref<256x32xf32, #tpu.memory_space<vmem>>, %arg2: memref<128x32xf32, #tpu.memory_space<vmem>>, %arg3: memref<32x128xbf16, #tpu.memory_space<vmem>>, %arg4: memref<4x32xf32, #tpu.memory_space<vmem>>, %arg5: memref<32x4xf32, #tpu.memory_space<vmem>>, %arg6: memref<128x256xi32, #tpu.memory_space<vmem>>, %arg7: memref<3x4xf32, #tpu.memory_space<smem>>, %arg8: memref<128x128xf32, #tpu.memory_space<vmem>>) attributes {dimension_semantics = [#tpu.dimension_semantics<parallel>], iteration_bounds = array<i64: 2>, scalar_prefetch = 0 : i64, scratch_operands = 0 : i64, tpu.core_type = #tpu.core_type<tc>, window_params = [{pipeline_mode = #tpu.pipeline_mode<synchronous>, transform_indices = @transform_0, window_bounds = array<i64: 256, 32>}, {transform_indices = @transform_1, window_bounds = array<i64: 128, 32>}, {pipeline_mode = #tpu.pipeline_mode<synchronous>, transform_indices = @transform_2, window_bounds = array<i64: 32, 128>}, {pipeline_mode = #tpu.pipeline_mode<synchronous>, transform_indices = @transform_3, window_bounds = array<i64: 4, 32>}, {pipeline_mode = #tpu.pipeline_mode<synchronous>, transform_indices = @transform_4, window_bounds = array<i64: 32, 4>}, {transform_indices = @transform_5, window_bounds = array<i64: 128, 256>}, {transform_indices = @transform_6, window_bounds = array<i64: 3, 4>}, {transform_indices = @transform_7, window_bounds = array<i64: 128, 128>}]} {
    %c0 = arith.constant 0 : index
    %c0_0 = arith.constant 0 : index
    %0 = vector.load %arg1[%c0, %c0_0] : memref<256x32xf32, #tpu.memory_space<vmem>>, vector<256x32xf32>
    %1 = arith.truncf %0 : vector<256x32xf32> to vector<256x32xbf16>
    %c0_1 = arith.constant 0 : index
    %c0_2 = arith.constant 0 : index
    %2 = vector.load %arg3[%c0_1, %c0_2] : memref<32x128xbf16, #tpu.memory_space<vmem>>, vector<32x128xbf16>
    %cst = arith.constant dense<0.000000e+00> : vector<256x128xf32>
    %3 = tpu.matmul %1, %2, %cst {dimension_numbers = #tpu.dot_dimension_numbers<[1], [0], [0], [1], [0, 0, 1, 1], [], []>} : vector<256x32xbf16>, vector<32x128xbf16>, vector<256x128xf32> -> vector<256x128xf32>
    %c0_3 = arith.constant 0 : index
    %c0_4 = arith.constant 0 : index
    %4 = vector.load %arg4[%c0_3, %c0_4] : memref<4x32xf32, #tpu.memory_space<vmem>>, vector<4x32xf32>
    %cst_5 = arith.constant dense<0.000000e+00> : vector<4x256xf32>
    %5 = tpu.matmul %4, %0, %cst_5 {dimension_numbers = #tpu.dot_dimension_numbers<[1], [1], [0], [0], [0, 0, 1, 0], [], []>} : vector<4x32xf32>, vector<256x32xf32>, vector<4x256xf32> -> vector<4x256xf32>
    %c0_6 = arith.constant 0 : index
    %c0_7 = arith.constant 0 : index
    %6 = vector.load %arg2[%c0_6, %c0_7] : memref<128x32xf32, #tpu.memory_space<vmem>>, vector<128x32xf32>
    %c0_8 = arith.constant 0 : index
    %c0_9 = arith.constant 0 : index
    %7 = vector.load %arg5[%c0_8, %c0_9] : memref<32x4xf32, #tpu.memory_space<vmem>>, vector<32x4xf32>
    %cst_10 = arith.constant dense<0.000000e+00> : vector<128x4xf32>
    %8 = tpu.matmul %6, %7, %cst_10 {dimension_numbers = #tpu.dot_dimension_numbers<[1], [0], [0], [1], [0, 0, 1, 1], [], []>} : vector<128x32xf32>, vector<32x4xf32>, vector<128x4xf32> -> vector<128x4xf32>
    %c0_11 = arith.constant 0 : index
    %c0_12 = arith.constant 0 : index
    %9 = vector.load %arg6[%c0_11, %c0_12] : memref<128x256xi32, #tpu.memory_space<vmem>>, vector<128x256xi32>
    %c0_i32 = arith.constant 0 : i32
    %10 = vector.broadcast %c0_i32 : i32 to vector<128x256xi32>
    %11 = arith.cmpi sgt, %9, %10 : vector<128x256xi32>
    %12 = arith.extui %11 : vector<128x256xi1> to vector<128x256xi32>
    %13 = arith.sitofp %12 : vector<128x256xi32> to vector<128x256xf32>
    %c1_i32 = arith.constant 1 : i32
    %14 = vector.broadcast %c1_i32 : i32 to vector<128x256xi32>
    %15 = arith.cmpi eq, %9, %14 : vector<128x256xi32>
    %16 = arith.extui %15 : vector<128x256xi1> to vector<128x256xi32>
    %17 = arith.sitofp %16 : vector<128x256xi32> to vector<128x256xf32>
    %c2_i32 = arith.constant 2 : i32
    %18 = vector.broadcast %c2_i32 : i32 to vector<128x256xi32>
    %19 = arith.cmpi eq, %9, %18 : vector<128x256xi32>
    %20 = arith.extui %19 : vector<128x256xi1> to vector<128x256xi32>
    %21 = arith.sitofp %20 : vector<128x256xi32> to vector<128x256xf32>
    %c3_i32 = arith.constant 3 : i32
    %22 = vector.broadcast %c3_i32 : i32 to vector<128x256xi32>
    %23 = arith.cmpi eq, %9, %22 : vector<128x256xi32>
    %24 = arith.extui %23 : vector<128x256xi1> to vector<128x256xi32>
    %25 = arith.sitofp %24 : vector<128x256xi32> to vector<128x256xf32>
    %26 = arith.truncf %3 : vector<256x128xf32> to vector<256x128xbf16>
    %c0_13 = arith.constant 0 : index
    %c0_14 = arith.constant 0 : index
    %27 = memref.load %arg7[%c0_13, %c0_14] : memref<3x4xf32, #tpu.memory_space<smem>>
    %28 = vector.broadcast %27 : f32 to vector<128x256xf32>
    %29 = arith.mulf %17, %28 : vector<128x256xf32>
    %c1 = arith.constant 1 : index
    %c0_15 = arith.constant 0 : index
    %30 = memref.load %arg7[%c1, %c0_15] : memref<3x4xf32, #tpu.memory_space<smem>>
    %31 = vector.broadcast %30 : f32 to vector<128x256xf32>
    %32 = arith.mulf %21, %31 : vector<128x256xf32>
    %33 = arith.addf %29, %32 : vector<128x256xf32>
    %c2 = arith.constant 2 : index
    %c0_16 = arith.constant 0 : index
    %34 = memref.load %arg7[%c2, %c0_16] : memref<3x4xf32, #tpu.memory_space<smem>>
    %35 = vector.broadcast %34 : f32 to vector<128x256xf32>
    %36 = arith.mulf %25, %35 : vector<128x256xf32>
    %37 = arith.addf %33, %36 : vector<128x256xf32>
    %38 = vector.extract_strided_slice %8 {offsets = [0, 0], sizes = [128, 1], strides = [1, 1]} : vector<128x4xf32> to vector<128x1xf32>
    %39 = vector.extract_strided_slice %5 {offsets = [0, 0], sizes = [1, 256], strides = [1, 1]} : vector<4x256xf32> to vector<1x256xf32>
    %40 = vector.broadcast %38 : vector<128x1xf32> to vector<128x256xf32>
    %41 = vector.broadcast %39 : vector<1x256xf32> to vector<128x256xf32>
    %42 = arith.addf %40, %41 : vector<128x256xf32>
    %43 = arith.addf %42, %37 : vector<128x256xf32>
    %cst_17 = arith.constant 0.000000e+00 : f32
    %44 = vector.broadcast %cst_17 : f32 to vector<128x256xf32>
    %45 = arith.cmpf oge, %43, %44 : vector<128x256xf32>
    %cst_18 = arith.constant 2.000000e-01 : f32
    %46 = vector.broadcast %cst_18 : f32 to vector<128x256xf32>
    %47 = arith.mulf %46, %43 : vector<128x256xf32>
    %48 = arith.select %45, %43, %47 : vector<128x256xi1>, vector<128x256xf32>
    %cst_19 = arith.constant -1.000000e+30 : f32
    %49 = vector.broadcast %cst_19 : f32 to vector<128x256xf32>
    %50 = arith.select %11, %48, %49 : vector<128x256xi1>, vector<128x256xf32>
    %cst_20 = arith.constant dense<0xFF800000> : vector<128xf32>
    %51 = vector.multi_reduction <maximumf>, %50, %cst_20 [1] : vector<128x256xf32> to vector<128xf32>
    %52 = vector.shape_cast %51 : vector<128xf32> to vector<128x1xf32>
    %53 = vector.broadcast %52 : vector<128x1xf32> to vector<128x256xf32>
    %54 = arith.subf %50, %53 : vector<128x256xf32>
    %55 = math.exp %54 : vector<128x256xf32>
    %56 = arith.mulf %55, %13 : vector<128x256xf32>
    %cst_21 = arith.constant dense<0.000000e+00> : vector<128xf32>
    %57 = vector.multi_reduction <add>, %56, %cst_21 [1] : vector<128x256xf32> to vector<128xf32>
    %58 = vector.shape_cast %57 : vector<128xf32> to vector<128x1xf32>
    %cst_22 = arith.constant 9.99999968E-21 : f32
    %59 = vector.broadcast %cst_22 : f32 to vector<128x1xf32>
    %60 = arith.maximumf %58, %59 : vector<128x1xf32>
    %61 = tpu.reciprocal %60 {approx = true} : vector<128x1xf32> -> vector<128x1xf32>
    %62 = arith.truncf %56 : vector<128x256xf32> to vector<128x256xbf16>
    %63 = vector.extract_strided_slice %26 {offsets = [0, 0], sizes = [256, 32], strides = [1, 1]} : vector<256x128xbf16> to vector<256x32xbf16>
    %cst_23 = arith.constant dense<0.000000e+00> : vector<128x32xf32>
    %64 = tpu.matmul %62, %63, %cst_23 {dimension_numbers = #tpu.dot_dimension_numbers<[1], [0], [0], [1], [0, 0, 1, 1], [], []>} : vector<128x256xbf16>, vector<256x32xbf16>, vector<128x32xf32> -> vector<128x32xf32>
    %65 = vector.broadcast %61 : vector<128x1xf32> to vector<128x32xf32>
    %66 = arith.mulf %64, %65 : vector<128x32xf32>
    %c0_24 = arith.constant 0 : index
    %c1_25 = arith.constant 1 : index
    %67 = memref.load %arg7[%c0_24, %c1_25] : memref<3x4xf32, #tpu.memory_space<smem>>
    %68 = vector.broadcast %67 : f32 to vector<128x256xf32>
    %69 = arith.mulf %17, %68 : vector<128x256xf32>
    %c1_26 = arith.constant 1 : index
    %c1_27 = arith.constant 1 : index
    %70 = memref.load %arg7[%c1_26, %c1_27] : memref<3x4xf32, #tpu.memory_space<smem>>
    %71 = vector.broadcast %70 : f32 to vector<128x256xf32>
    %72 = arith.mulf %21, %71 : vector<128x256xf32>
    %73 = arith.addf %69, %72 : vector<128x256xf32>
    %c2_28 = arith.constant 2 : index
    %c1_29 = arith.constant 1 : index
    %74 = memref.load %arg7[%c2_28, %c1_29] : memref<3x4xf32, #tpu.memory_space<smem>>
    %75 = vector.broadcast %74 : f32 to vector<128x256xf32>
    %76 = arith.mulf %25, %75 : vector<128x256xf32>
    %77 = arith.addf %73, %76 : vector<128x256xf32>
    %78 = vector.extract_strided_slice %8 {offsets = [0, 1], sizes = [128, 1], strides = [1, 1]} : vector<128x4xf32> to vector<128x1xf32>
    %79 = vector.extract_strided_slice %5 {offsets = [1, 0], sizes = [1, 256], strides = [1, 1]} : vector<4x256xf32> to vector<1x256xf32>
    %80 = vector.broadcast %78 : vector<128x1xf32> to vector<128x256xf32>
    %81 = vector.broadcast %79 : vector<1x256xf32> to vector<128x256xf32>
    %82 = arith.addf %80, %81 : vector<128x256xf32>
    %83 = arith.addf %82, %77 : vector<128x256xf32>
    %cst_30 = arith.constant 0.000000e+00 : f32
    %84 = vector.broadcast %cst_30 : f32 to vector<128x256xf32>
    %85 = arith.cmpf oge, %83, %84 : vector<128x256xf32>
    %cst_31 = arith.constant 2.000000e-01 : f32
    %86 = vector.broadcast %cst_31 : f32 to vector<128x256xf32>
    %87 = arith.mulf %86, %83 : vector<128x256xf32>
    %88 = arith.select %85, %83, %87 : vector<128x256xi1>, vector<128x256xf32>
    %cst_32 = arith.constant -1.000000e+30 : f32
    %89 = vector.broadcast %cst_32 : f32 to vector<128x256xf32>
    %90 = arith.select %11, %88, %89 : vector<128x256xi1>, vector<128x256xf32>
    %cst_33 = arith.constant dense<0xFF800000> : vector<128xf32>
    %91 = vector.multi_reduction <maximumf>, %90, %cst_33 [1] : vector<128x256xf32> to vector<128xf32>
    %92 = vector.shape_cast %91 : vector<128xf32> to vector<128x1xf32>
    %93 = vector.broadcast %92 : vector<128x1xf32> to vector<128x256xf32>
    %94 = arith.subf %90, %93 : vector<128x256xf32>
    %95 = math.exp %94 : vector<128x256xf32>
    %96 = arith.mulf %95, %13 : vector<128x256xf32>
    %cst_34 = arith.constant dense<0.000000e+00> : vector<128xf32>
    %97 = vector.multi_reduction <add>, %96, %cst_34 [1] : vector<128x256xf32> to vector<128xf32>
    %98 = vector.shape_cast %97 : vector<128xf32> to vector<128x1xf32>
    %cst_35 = arith.constant 9.99999968E-21 : f32
    %99 = vector.broadcast %cst_35 : f32 to vector<128x1xf32>
    %100 = arith.maximumf %98, %99 : vector<128x1xf32>
    %101 = tpu.reciprocal %100 {approx = true} : vector<128x1xf32> -> vector<128x1xf32>
    %102 = arith.truncf %96 : vector<128x256xf32> to vector<128x256xbf16>
    %103 = vector.extract_strided_slice %26 {offsets = [0, 32], sizes = [256, 32], strides = [1, 1]} : vector<256x128xbf16> to vector<256x32xbf16>
    %cst_36 = arith.constant dense<0.000000e+00> : vector<128x32xf32>
    %104 = tpu.matmul %102, %103, %cst_36 {dimension_numbers = #tpu.dot_dimension_numbers<[1], [0], [0], [1], [0, 0, 1, 1], [], []>} : vector<128x256xbf16>, vector<256x32xbf16>, vector<128x32xf32> -> vector<128x32xf32>
    %105 = vector.broadcast %101 : vector<128x1xf32> to vector<128x32xf32>
    %106 = arith.mulf %104, %105 : vector<128x32xf32>
    %c0_37 = arith.constant 0 : index
    %c2_38 = arith.constant 2 : index
    %107 = memref.load %arg7[%c0_37, %c2_38] : memref<3x4xf32, #tpu.memory_space<smem>>
    %108 = vector.broadcast %107 : f32 to vector<128x256xf32>
    %109 = arith.mulf %17, %108 : vector<128x256xf32>
    %c1_39 = arith.constant 1 : index
    %c2_40 = arith.constant 2 : index
    %110 = memref.load %arg7[%c1_39, %c2_40] : memref<3x4xf32, #tpu.memory_space<smem>>
    %111 = vector.broadcast %110 : f32 to vector<128x256xf32>
    %112 = arith.mulf %21, %111 : vector<128x256xf32>
    %113 = arith.addf %109, %112 : vector<128x256xf32>
    %c2_41 = arith.constant 2 : index
    %c2_42 = arith.constant 2 : index
    %114 = memref.load %arg7[%c2_41, %c2_42] : memref<3x4xf32, #tpu.memory_space<smem>>
    %115 = vector.broadcast %114 : f32 to vector<128x256xf32>
    %116 = arith.mulf %25, %115 : vector<128x256xf32>
    %117 = arith.addf %113, %116 : vector<128x256xf32>
    %118 = vector.extract_strided_slice %8 {offsets = [0, 2], sizes = [128, 1], strides = [1, 1]} : vector<128x4xf32> to vector<128x1xf32>
    %119 = vector.extract_strided_slice %5 {offsets = [2, 0], sizes = [1, 256], strides = [1, 1]} : vector<4x256xf32> to vector<1x256xf32>
    %120 = vector.broadcast %118 : vector<128x1xf32> to vector<128x256xf32>
    %121 = vector.broadcast %119 : vector<1x256xf32> to vector<128x256xf32>
    %122 = arith.addf %120, %121 : vector<128x256xf32>
    %123 = arith.addf %122, %117 : vector<128x256xf32>
    %cst_43 = arith.constant 0.000000e+00 : f32
    %124 = vector.broadcast %cst_43 : f32 to vector<128x256xf32>
    %125 = arith.cmpf oge, %123, %124 : vector<128x256xf32>
    %cst_44 = arith.constant 2.000000e-01 : f32
    %126 = vector.broadcast %cst_44 : f32 to vector<128x256xf32>
    %127 = arith.mulf %126, %123 : vector<128x256xf32>
    %128 = arith.select %125, %123, %127 : vector<128x256xi1>, vector<128x256xf32>
    %cst_45 = arith.constant -1.000000e+30 : f32
    %129 = vector.broadcast %cst_45 : f32 to vector<128x256xf32>
    %130 = arith.select %11, %128, %129 : vector<128x256xi1>, vector<128x256xf32>
    %cst_46 = arith.constant dense<0xFF800000> : vector<128xf32>
    %131 = vector.multi_reduction <maximumf>, %130, %cst_46 [1] : vector<128x256xf32> to vector<128xf32>
    %132 = vector.shape_cast %131 : vector<128xf32> to vector<128x1xf32>
    %133 = vector.broadcast %132 : vector<128x1xf32> to vector<128x256xf32>
    %134 = arith.subf %130, %133 : vector<128x256xf32>
    %135 = math.exp %134 : vector<128x256xf32>
    %136 = arith.mulf %135, %13 : vector<128x256xf32>
    %cst_47 = arith.constant dense<0.000000e+00> : vector<128xf32>
    %137 = vector.multi_reduction <add>, %136, %cst_47 [1] : vector<128x256xf32> to vector<128xf32>
    %138 = vector.shape_cast %137 : vector<128xf32> to vector<128x1xf32>
    %cst_48 = arith.constant 9.99999968E-21 : f32
    %139 = vector.broadcast %cst_48 : f32 to vector<128x1xf32>
    %140 = arith.maximumf %138, %139 : vector<128x1xf32>
    %141 = tpu.reciprocal %140 {approx = true} : vector<128x1xf32> -> vector<128x1xf32>
    %142 = arith.truncf %136 : vector<128x256xf32> to vector<128x256xbf16>
    %143 = vector.extract_strided_slice %26 {offsets = [0, 64], sizes = [256, 32], strides = [1, 1]} : vector<256x128xbf16> to vector<256x32xbf16>
    %cst_49 = arith.constant dense<0.000000e+00> : vector<128x32xf32>
    %144 = tpu.matmul %142, %143, %cst_49 {dimension_numbers = #tpu.dot_dimension_numbers<[1], [0], [0], [1], [0, 0, 1, 1], [], []>} : vector<128x256xbf16>, vector<256x32xbf16>, vector<128x32xf32> -> vector<128x32xf32>
    %145 = vector.broadcast %141 : vector<128x1xf32> to vector<128x32xf32>
    %146 = arith.mulf %144, %145 : vector<128x32xf32>
    %c0_50 = arith.constant 0 : index
    %c3 = arith.constant 3 : index
    %147 = memref.load %arg7[%c0_50, %c3] : memref<3x4xf32, #tpu.memory_space<smem>>
    %148 = vector.broadcast %147 : f32 to vector<128x256xf32>
    %149 = arith.mulf %17, %148 : vector<128x256xf32>
    %c1_51 = arith.constant 1 : index
    %c3_52 = arith.constant 3 : index
    %150 = memref.load %arg7[%c1_51, %c3_52] : memref<3x4xf32, #tpu.memory_space<smem>>
    %151 = vector.broadcast %150 : f32 to vector<128x256xf32>
    %152 = arith.mulf %21, %151 : vector<128x256xf32>
    %153 = arith.addf %149, %152 : vector<128x256xf32>
    %c2_53 = arith.constant 2 : index
    %c3_54 = arith.constant 3 : index
    %154 = memref.load %arg7[%c2_53, %c3_54] : memref<3x4xf32, #tpu.memory_space<smem>>
    %155 = vector.broadcast %154 : f32 to vector<128x256xf32>
    %156 = arith.mulf %25, %155 : vector<128x256xf32>
    %157 = arith.addf %153, %156 : vector<128x256xf32>
    %158 = vector.extract_strided_slice %8 {offsets = [0, 3], sizes = [128, 1], strides = [1, 1]} : vector<128x4xf32> to vector<128x1xf32>
    %159 = vector.extract_strided_slice %5 {offsets = [3, 0], sizes = [1, 256], strides = [1, 1]} : vector<4x256xf32> to vector<1x256xf32>
    %160 = vector.broadcast %158 : vector<128x1xf32> to vector<128x256xf32>
    %161 = vector.broadcast %159 : vector<1x256xf32> to vector<128x256xf32>
    %162 = arith.addf %160, %161 : vector<128x256xf32>
    %163 = arith.addf %162, %157 : vector<128x256xf32>
    %cst_55 = arith.constant 0.000000e+00 : f32
    %164 = vector.broadcast %cst_55 : f32 to vector<128x256xf32>
    %165 = arith.cmpf oge, %163, %164 : vector<128x256xf32>
    %cst_56 = arith.constant 2.000000e-01 : f32
    %166 = vector.broadcast %cst_56 : f32 to vector<128x256xf32>
    %167 = arith.mulf %166, %163 : vector<128x256xf32>
    %168 = arith.select %165, %163, %167 : vector<128x256xi1>, vector<128x256xf32>
    %cst_57 = arith.constant -1.000000e+30 : f32
    %169 = vector.broadcast %cst_57 : f32 to vector<128x256xf32>
    %170 = arith.select %11, %168, %169 : vector<128x256xi1>, vector<128x256xf32>
    %cst_58 = arith.constant dense<0xFF800000> : vector<128xf32>
    %171 = vector.multi_reduction <maximumf>, %170, %cst_58 [1] : vector<128x256xf32> to vector<128xf32>
    %172 = vector.shape_cast %171 : vector<128xf32> to vector<128x1xf32>
    %173 = vector.broadcast %172 : vector<128x1xf32> to vector<128x256xf32>
    %174 = arith.subf %170, %173 : vector<128x256xf32>
    %175 = math.exp %174 : vector<128x256xf32>
    %176 = arith.mulf %175, %13 : vector<128x256xf32>
    %cst_59 = arith.constant dense<0.000000e+00> : vector<128xf32>
    %177 = vector.multi_reduction <add>, %176, %cst_59 [1] : vector<128x256xf32> to vector<128xf32>
    %178 = vector.shape_cast %177 : vector<128xf32> to vector<128x1xf32>
    %cst_60 = arith.constant 9.99999968E-21 : f32
    %179 = vector.broadcast %cst_60 : f32 to vector<128x1xf32>
    %180 = arith.maximumf %178, %179 : vector<128x1xf32>
    %181 = tpu.reciprocal %180 {approx = true} : vector<128x1xf32> -> vector<128x1xf32>
    %182 = arith.truncf %176 : vector<128x256xf32> to vector<128x256xbf16>
    %183 = vector.extract_strided_slice %26 {offsets = [0, 96], sizes = [256, 32], strides = [1, 1]} : vector<256x128xbf16> to vector<256x32xbf16>
    %cst_61 = arith.constant dense<0.000000e+00> : vector<128x32xf32>
    %184 = tpu.matmul %182, %183, %cst_61 {dimension_numbers = #tpu.dot_dimension_numbers<[1], [0], [0], [1], [0, 0, 1, 1], [], []>} : vector<128x256xbf16>, vector<256x32xbf16>, vector<128x32xf32> -> vector<128x32xf32>
    %185 = vector.broadcast %181 : vector<128x1xf32> to vector<128x32xf32>
    %186 = arith.mulf %184, %185 : vector<128x32xf32>
    %187 = tpu.concatenate %66, %106, %146, %186 in 1 : vector<128x32xf32>, vector<128x32xf32>, vector<128x32xf32>, vector<128x32xf32> -> vector<128x128xf32>
    %c0_62 = arith.constant 0 : index
    %c0_63 = arith.constant 0 : index
    %188 = vector.load %arg8[%c0_62, %c0_63] : memref<128x128xf32, #tpu.memory_space<vmem>>, vector<128x128xf32>
    tpu.vector_store %arg8[%c0_62, %c0_63], %187 {strides = array<i32>} : memref<128x128xf32, #tpu.memory_space<vmem>>, vector<128x128xf32>,
    return
  }
  func.func @transform_0(%arg0: i32) -> (i32, i32) {
    %c0_i32 = arith.constant 0 : i32
    %c0_i32_0 = arith.constant 0 : i32
    %c0_i32_1 = arith.constant 0 : i32
    return %c0_i32, %c0_i32_0 : i32, i32
  }
  func.func @transform_1(%arg0: i32) -> (i32, i32) {
    %c0_i32 = arith.constant 0 : i32
    %c0_i32_0 = arith.constant 0 : i32
    return %arg0, %c0_i32 : i32, i32
  }
  func.func @transform_2(%arg0: i32) -> (i32, i32) {
    %c0_i32 = arith.constant 0 : i32
    %c0_i32_0 = arith.constant 0 : i32
    %c0_i32_1 = arith.constant 0 : i32
    return %c0_i32, %c0_i32_0 : i32, i32
  }
  func.func @transform_3(%arg0: i32) -> (i32, i32) {
    %c0_i32 = arith.constant 0 : i32
    %c0_i32_0 = arith.constant 0 : i32
    %c0_i32_1 = arith.constant 0 : i32
    return %c0_i32, %c0_i32_0 : i32, i32
  }
  func.func @transform_4(%arg0: i32) -> (i32, i32) {
    %c0_i32 = arith.constant 0 : i32
    %c0_i32_0 = arith.constant 0 : i32
    %c0_i32_1 = arith.constant 0 : i32
    return %c0_i32, %c0_i32_0 : i32, i32
  }
  func.func @transform_5(%arg0: i32) -> (i32, i32) {
    %c0_i32 = arith.constant 0 : i32
    %c0_i32_0 = arith.constant 0 : i32
    return %arg0, %c0_i32 : i32, i32
  }
  func.func @transform_6(%arg0: i32) -> (i32, i32) {
    %c0_i32 = arith.constant 0 : i32
    %c0_i32_0 = arith.constant 0 : i32
    %c0_i32_1 = arith.constant 0 : i32
    return %c0_i32, %c0_i32_0 : i32, i32
  }
  func.func @transform_7(%arg0: i32) -> (i32, i32) {
    %c0_i32 = arith.constant 0 : i32
    %c0_i32_0 = arith.constant 0 : i32
    return %arg0, %c0_i32 : i32, i32
  }
}

</mosaic_0001>

<llo_original>
// kernel: tpu_custom_call.1
$region0: #{tpu_custom_call.1}
  #allocation0 [shape = 'u32[]', space=smem, size = 0x4, offset = 0x4, fixed_abs, tag = 'smem constant byte address 0x4 - core index']
  #allocation1 [shape = 'u32[144,128]{1,0:T(1,128)}', space=vmem, size = 0x12000, scoped, tag = 'internal scratch']
  %s0 = inlined_call_operand.hbm [shape: f32[256,32], index: 0, kind: input, shape index: {}]
  %s1 = inlined_call_operand.hbm [shape: f32[256,32], index: 1, kind: input, shape index: {}]
  %s2 = inlined_call_operand.hbm [shape: bf16[32,128], index: 2, kind: input, shape index: {}]
  %s3 = inlined_call_operand.hbm [shape: f32[4,32], index: 3, kind: input, shape index: {}]
  %s4 = inlined_call_operand.hbm [shape: f32[32,4], index: 4, kind: input, shape index: {}]
  %s5 = inlined_call_operand.hbm [shape: s32[256,256], index: 5, kind: input, shape index: {}]
  %s6 = inlined_call_operand.hbm [shape: f32[3,4], index: 6, kind: input, shape index: {}]
  %s7 = inlined_call_operand.hbm [shape: f32[256,128], index: 7, kind: output, shape index: {}]
  %s8 = sld [smem:[#allocation0]]
  $region89: #{tpu_custom_call.1} parent=0
    _
  %s10 = ssub.s32 1, %s8
  %s11 = scalar_select 0, %s10, %s8
  $region1: #{tpu_custom_call.1} parent=0
    #allocation2 [shape = 'u8[131072]{0}', space=vmem, size = 0x20000, scoped, tag = 'input window, operand 0, single buffered']
    #allocation3 [shape = 's32[2]{0}', space=sflag, size = 0x8, scoped, tag = 'scoped memory for tpu_custom_call.1']
    #allocation4 [shape = 's32[2]{0}', space=sflag, size = 0x8, scoped, tag = 'scoped memory for tpu_custom_call.1']
    #allocation5 [shape = 's32[2]{0}', space=sflag, size = 0x8, scoped, tag = 'scoped memory for tpu_custom_call.1']
    #allocation6 [shape = 'u8[131072]{0}', space=vmem, size = 0x20000, scoped, tag = 'input window, operand 1']
    #allocation7 [shape = 's32[2]{0}', space=sflag, size = 0x8, scoped, tag = 'scoped memory for tpu_custom_call.1']
    #allocation8 [shape = 'u8[8192]{0}', space=vmem, size = 0x2000, scoped, tag = 'input window, operand 2, single buffered']
    #allocation9 [shape = 'u8[2048]{0}', space=vmem, size = 0x800, scoped, tag = 'input window, operand 3, single buffered']
    #allocation10 [shape = 's32[1]{0}', space=sflag, size = 0x4, scoped, tag = 'scoped memory for tpu_custom_call.1']
    #allocation11 [shape = 'u8[16384]{0}', space=vmem, size = 0x4000, scoped, tag = 'input window, operand 4, single buffered']
    #allocation12 [shape = 'u8[262144]{0}', space=vmem, size = 0x40000, scoped, tag = 'input window, operand 5']
    #allocation13 [shape = 's32[2]{0}', space=sflag, size = 0x8, scoped, tag = 'scoped memory for tpu_custom_call.1']
    #allocation14 [shape = 'u8[2048]{0}', space=smem, size = 0x800, scoped, tag = 'input window, operand 6, single buffered']
    #allocation15 [shape = 'u8[131072]{0}', space=vmem, size = 0x20000, scoped, tag = 'output window, operand 0']
    %12 = vsyncpa [#allocation3], 0
    %13 = vsyncpa [#allocation7], 0
    %s14 = scalar_lea.sflag [#allocation7], 1
    %15 = vsyncpa %s14, 0
    %16 = vsyncpa [#allocation10], 0
    %17 = vsyncpa [#allocation13], 0
    %s18 = scalar_lea.sflag [#allocation13], 1
    %19 = vsyncpa %s18, 0
    %20 = vsyncpa [#allocation5], 0
    %21 = vsyncpa [#allocation4], 0
    %s22 = scalar_lea.sflag [#allocation4], 1
    %23 = vsyncpa %s22, 0
    loop: start=0, step=1, limit=4
    $region2: #{tpu_custom_call.1} parent=1 // loop_pre_header
      _
    $region3: #{tpu_custom_call.1} parent=1 // loop_header
      %s25 = sphi 0, %s29
      %p26 = scmp.ge.s32.totalorder %s25, 4
      %s33 = sphi 0, %s33
      %s35 = sphi 0, %s33
      %s36 = sphi 0, %s35
      %s50 = sphi 0, %s36
      %s56 = sphi 0, %s58
      %s59 = sphi 0, %s56
      %s60 = sphi 0, %s59
      %s76 = sphi 0, %s60
      %s80 = sphi 0, %s80
      %s82 = sphi 0, %s80
      %s83 = sphi 0, %s82
      %s97 = sphi 0, %s83
      %s101 = sphi 0, %s101
      %s103 = sphi 0, %s101
      %s104 = sphi 0, %s103
      %s118 = sphi 0, %s104
      %s122 = sphi 0, %s122
      %s124 = sphi 0, %s122
      %s125 = sphi 0, %s124
      %s139 = sphi 0, %s125
      %s145 = sphi 0, %s147
      %s148 = sphi 0, %s145
      %s149 = sphi 0, %s148
      %s165 = sphi 0, %s149
      %s169 = sphi 0, %s169
      %s171 = sphi 0, %s169
      %s172 = sphi 0, %s171
      %s186 = sphi 0, %s172
      %s192 = sphi 0, %s194
      %s195 = sphi 0, %s192
      %s196 = sphi 0, %s195
      %s212 = sphi 0, %s196
    $region4: #{tpu_custom_call.1} parent=1 // loop_header_branch
      %28 = sbr.rel (%p26) target = $region8
    $region5: #{tpu_custom_call.1} parent=1 // loop_body
      %s30 = ssub.s32 %s25, 1
      %s31 = ssub.s32 %s25, 2
      %s32 = sadd.s32 %s25, 1
      %s34 = sadd.s32 %s33, 1
      %p37 = scmp.eq.s32.totalorder %s25, 1
      %p38 = scmp.ne.s32.totalorder %s33, %s35
      %p39 = scmp.eq.s32.totalorder %s25, 0
      %p40 = por %p38, %p39
      %p41 = scmp.ne.s32.totalorder %s33, %s35
      %p42 = scmp.eq.s32.totalorder %s30, 1
      %p43 = por %p41, %p42
      %p44 = scmp.ne.s32.totalorder %s35, %s36
      %p45 = scmp.eq.s32.totalorder %s30, 0
      %p46 = por %p44, %p45
      %p47 = scmp.ne.s32.totalorder %s35, %s36
      %p48 = scmp.eq.s32.totalorder %s31, 1
      %p49 = por %p47, %p48
      %p51 = scmp.ne.s32.totalorder %s36, %s50
      %p52 = scmp.eq.s32.totalorder %s31, 0
      %p53 = por %p51, %p52
      %s54 = ssub.s32 %s25, %s32
      %p55 = scmp.eq.s32.totalorder %s54, 0
      %s57 = sadd.s32 %s56, 1
      %s58 = scalar_select %p55, %s56, %s57
      %p61 = pneg %p55
      %p62 = scmp.eq.s32.totalorder %s25, 1
      %p63 = por %p61, %p62
      %p64 = scmp.ne.s32.totalorder %s56, %s59
      %p65 = scmp.eq.s32.totalorder %s25, 0
      %p66 = por %p64, %p65
      %p67 = scmp.ne.s32.totalorder %s56, %s59
      %p68 = scmp.eq.s32.totalorder %s30, 1
      %p69 = por %p67, %p68
      %p70 = scmp.ne.s32.totalorder %s59, %s60
      %p71 = scmp.eq.s32.totalorder %s30, 0
      %p72 = por %p70, %p71
      %p73 = scmp.ne.s32.totalorder %s59, %s60
      %p74 = scmp.eq.s32.totalorder %s31, 1
      %p75 = por %p73, %p74
      %p77 = scmp.ne.s32.totalorder %s60, %s76
      %p78 = scmp.eq.s32.totalorder %s31, 0
      %p79 = por %p77, %p78
      %s81 = sadd.s32 %s80, 1
      %p84 = scmp.eq.s32.totalorder %s25, 1
      %p85 = scmp.ne.s32.totalorder %s80, %s82
      %p86 = scmp.eq.s32.totalorder %s25, 0
      %p87 = por %p85, %p86
      %p88 = scmp.ne.s32.totalorder %s80, %s82
      %p89 = scmp.eq.s32.totalorder %s30, 1
      %p90 = por %p88, %p89
      %p91 = scmp.ne.s32.totalorder %s82, %s83
      %p92 = scmp.eq.s32.totalorder %s30, 0
      %p93 = por %p91, %p92
      %p94 = scmp.ne.s32.totalorder %s82, %s83
      %p95 = scmp.eq.s32.totalorder %s31, 1
      %p96 = por %p94, %p95
      %p98 = scmp.ne.s32.totalorder %s83, %s97
      %p99 = scmp.eq.s32.totalorder %s31, 0
      %p100 = por %p98, %p99
      %s102 = sadd.s32 %s101, 1
      %p105 = scmp.eq.s32.totalorder %s25, 1
      %p106 = scmp.ne.s32.totalorder %s101, %s103
      %p107 = scmp.eq.s32.totalorder %s25, 0
      %p108 = por %p106, %p107
      %p109 = scmp.ne.s32.totalorder %s101, %s103
      %p110 = scmp.eq.s32.totalorder %s30, 1
      %p111 = por %p109, %p110
      %p112 = scmp.ne.s32.totalorder %s103, %s104
      %p113 = scmp.eq.s32.totalorder %s30, 0
      %p114 = por %p112, %p113
      %p115 = scmp.ne.s32.totalorder %s103, %s104
      %p116 = scmp.eq.s32.totalorder %s31, 1
      %p117 = por %p115, %p116
      %p119 = scmp.ne.s32.totalorder %s104, %s118
      %p120 = scmp.eq.s32.totalorder %s31, 0
      %p121 = por %p119, %p120
      %s123 = sadd.s32 %s122, 1
      %p126 = scmp.eq.s32.totalorder %s25, 1
      %p127 = scmp.ne.s32.totalorder %s122, %s124
      %p128 = scmp.eq.s32.totalorder %s25, 0
      %p129 = por %p127, %p128
      %p130 = scmp.ne.s32.totalorder %s122, %s124
      %p131 = scmp.eq.s32.totalorder %s30, 1
      %p132 = por %p130, %p131
      %p133 = scmp.ne.s32.totalorder %s124, %s125
      %p134 = scmp.eq.s32.totalorder %s30, 0
      %p135 = por %p133, %p134
      %p136 = scmp.ne.s32.totalorder %s124, %s125
      %p137 = scmp.eq.s32.totalorder %s31, 1
      %p138 = por %p136, %p137
      %p140 = scmp.ne.s32.totalorder %s125, %s139
      %p141 = scmp.eq.s32.totalorder %s31, 0
      %p142 = por %p140, %p141
      %s143 = ssub.s32 %s25, %s32
      %p144 = scmp.eq.s32.totalorder %s143, 0
      %s146 = sadd.s32 %s145, 1
      %s147 = scalar_select %p144, %s145, %s146
      %p150 = pneg %p144
      %p151 = scmp.eq.s32.totalorder %s25, 1
      %p152 = por %p150, %p151
      %p153 = scmp.ne.s32.totalorder %s145, %s148
      %p154 = scmp.eq.s32.totalorder %s25, 0
      %p155 = por %p153, %p154
      %p156 = scmp.ne.s32.totalorder %s145, %s148
      %p157 = scmp.eq.s32.totalorder %s30, 1
      %p158 = por %p156, %p157
      %p159 = scmp.ne.s32.totalorder %s148, %s149
      %p160 = scmp.eq.s32.totalorder %s30, 0
      %p161 = por %p159, %p160
      %p162 = scmp.ne.s32.totalorder %s148, %s149
      %p163 = scmp.eq.s32.totalorder %s31, 1
      %p164 = por %p162, %p163
      %p166 = scmp.ne.s32.totalorder %s149, %s165
      %p167 = scmp.eq.s32.totalorder %s31, 0
      %p168 = por %p166, %p167
      %s170 = sadd.s32 %s169, 1
      %p173 = scmp.eq.s32.totalorder %s25, 1
      %p174 = scmp.ne.s32.totalorder %s169, %s171
      %p175 = scmp.eq.s32.totalorder %s25, 0
      %p176 = por %p174, %p175
      %p177 = scmp.ne.s32.totalorder %s169, %s171
      %p178 = scmp.eq.s32.totalorder %s30, 1
      %p179 = por %p177, %p178
      %p180 = scmp.ne.s32.totalorder %s171, %s172
      %p181 = scmp.eq.s32.totalorder %s30, 0
      %p182 = por %p180, %p181
      %p183 = scmp.ne.s32.totalorder %s171, %s172
      %p184 = scmp.eq.s32.totalorder %s31, 1
      %p185 = por %p183, %p184
      %p187 = scmp.ne.s32.totalorder %s172, %s186
      %p188 = scmp.eq.s32.totalorder %s31, 0
      %p189 = por %p187, %p188
      %s190 = ssub.s32 %s25, %s32
      %p191 = scmp.eq.s32.totalorder %s190, 0
      %s193 = sadd.s32 %s192, 1
      %s194 = scalar_select %p191, %s192, %s193
      %p197 = pneg %p191
      %p198 = scmp.eq.s32.totalorder %s25, 1
      %p199 = por %p197, %p198
      %p200 = scmp.ne.s32.totalorder %s192, %s195
      %p201 = scmp.eq.s32.totalorder %s25, 0
      %p202 = por %p200, %p201
      %p203 = scmp.ne.s32.totalorder %s192, %s195
      %p204 = scmp.eq.s32.totalorder %s30, 1
      %p205 = por %p203, %p204
      %p206 = scmp.ne.s32.totalorder %s195, %s196
      %p207 = scmp.eq.s32.totalorder %s30, 0
      %p208 = por %p206, %p207
      %p209 = scmp.ne.s32.totalorder %s195, %s196
      %p210 = scmp.eq.s32.totalorder %s31, 1
      %p211 = por %p209, %p210
      %p213 = scmp.ne.s32.totalorder %s196, %s212
      %p214 = scmp.eq.s32.totalorder %s31, 0
      %p215 = por %p213, %p214
      %p216 = scmp.le.s32.totalorder 1, %s25
      %p217 = scmp.lt.s32.totalorder %s25, 3
      %p218 = pnand %p216, %p217
      %p219 = pneg %p218
      // Predicated region
      $region9: #{tpu_custom_call.1} parent=5 // pred_check
        _
      $region10: #{tpu_custom_call.1} parent=5 // pred_check_branch
        %221 = sbr.rel (%p218) target = $region12
      $region11: #{tpu_custom_call.1} parent=5 // pred_region
        %s222 = ssub.s32 %s25, 1
        // Predicated region
        $region13: #{tpu_custom_call.1} parent=11 // pred_check
          %p223 = pneg %p46
        $region14: #{tpu_custom_call.1} parent=11 // pred_check_branch
          %225 = sbr.rel (%p223) target = $region16
        $region15: #{tpu_custom_call.1} parent=11 // pred_region
          %s227 = ssub.s32 4096, 4096
          %228 = vsyncadd [#allocation3], %s227
          %s229 = sshll.u32 [#allocation2], 4
          %s230 = int_to_ptr.vmem [resolvable:$true] %s229
          %235 = dma.hbm_to_vmem [thread:$0]  %s0, 4096, %s230, [#allocation3], 128, 128, 8
        $region16: #{tpu_custom_call.1} parent=11 // pred_fallthru
          _
        // Predicated region
        $region17: #{tpu_custom_call.1} parent=11 // pred_check
          %p236 = pneg %p93
        $region18: #{tpu_custom_call.1} parent=11 // pred_check_branch
          %238 = sbr.rel (%p236) target = $region20
        $region19: #{tpu_custom_call.1} parent=11 // pred_region
          %s240 = ssub.s32 256, 256
          %241 = vsyncadd [#allocation7], %s240
          %s242 = sshll.u32 [#allocation8], 4
          %s243 = int_to_ptr.vmem [resolvable:$true] %s242
          %248 = dma.hbm_to_vmem [thread:$0]  %s2, 256, %s243, [#allocation7], 64, 64, 4
        $region20: #{tpu_custom_call.1} parent=11 // pred_fallthru
          _
        // Predicated region
        $region21: #{tpu_custom_call.1} parent=11 // pred_check
          %p249 = pneg %p114
        $region22: #{tpu_custom_call.1} parent=11 // pred_check_branch
          %251 = sbr.rel (%p249) target = $region24
        $region23: #{tpu_custom_call.1} parent=11 // pred_region
          %s253 = ssub.s32 64, 64
          %254 = vsyncadd [#allocation10], %s253
          %s256 = sshll.u32 [#allocation9], 4
          %s257 = int_to_ptr.vmem [resolvable:$true] %s256
          %259 = dma.hbm_to_vmem [thread:$0]  %s3, 64, %s257, [#allocation10]
        $region24: #{tpu_custom_call.1} parent=11 // pred_fallthru
          _
        // Predicated region
        $region25: #{tpu_custom_call.1} parent=11 // pred_check
          %p260 = pneg %p135
        $region26: #{tpu_custom_call.1} parent=11 // pred_check_branch
          %262 = sbr.rel (%p260) target = $region28
        $region27: #{tpu_custom_call.1} parent=11 // pred_region
          %s264 = ssub.s32 512, 512
          %265 = vsyncadd [#allocation10], %s264
          %s266 = sshll.u32 [#allocation11], 4
          %s267 = int_to_ptr.vmem [resolvable:$true] %s266
          %272 = dma.hbm_to_vmem [thread:$0]  %s4, 512, %s267, [#allocation10], 128, 128, 8
        $region28: #{tpu_custom_call.1} parent=11 // pred_fallthru
          _
        // Predicated region
        $region29: #{tpu_custom_call.1} parent=11 // pred_check
          %p273 = pneg %p182
        $region30: #{tpu_custom_call.1} parent=11 // pred_check_branch
          %275 = sbr.rel (%p273) target = $region32
        $region31: #{tpu_custom_call.1} parent=11 // pred_region
          %s277 = ssub.s32 64, 64
          %278 = vsyncadd [#allocation5], %s277
          %281 = dma.hbm_to_smem %s6, 64, [#allocation14], [#allocation5]
        $region32: #{tpu_custom_call.1} parent=11 // pred_fallthru
          _
      $region12: #{tpu_custom_call.1} parent=5 // pred_fallthru
        _
      %p282 = scmp.lt.s32.totalorder %s25, 2
      // Predicated region
      $region33: #{tpu_custom_call.1} parent=5 // pred_check
        %p283 = pneg %p282
      $region34: #{tpu_custom_call.1} parent=5 // pred_check_branch
        %285 = sbr.rel (%p283) target = $region36
      $region35: #{tpu_custom_call.1} parent=5 // pred_region
        // Predicated region
        $region37: #{tpu_custom_call.1} parent=35 // pred_check
          %p286 = pneg %p66
        $region38: #{tpu_custom_call.1} parent=35 // pred_check_branch
          %288 = sbr.rel (%p286) target = $region40
        $region39: #{tpu_custom_call.1} parent=35 // pred_region
          %s289 = sand.u32 %s25, 1
          %s290 = scalar_lea.sflag [#allocation7], %s289
          %s291 = sand.u32 %s56, 1
          %s292 = smul.addr %s291, 128
          %s293 = scalar_lea.vmem [#allocation6], %s292
          %s294 = smul.u32 16, %s25
          %s296 = ssub.s32 2048, 2048
          %297 = vsyncadd %s290, %s296
          %s298 = smul.addr %s294, 128
          %s299 = scalar_lea.hbm %s1, %s298
          %s300 = sshll.u32 %s293, 4
          %s301 = int_to_ptr.vmem [resolvable:$true] %s300
          %306 = dma.hbm_to_vmem [thread:$0]  %s299, 2048, %s301, %s290, 128, 128, 8
        $region40: #{tpu_custom_call.1} parent=35 // pred_fallthru
          _
        // Predicated region
        $region41: #{tpu_custom_call.1} parent=35 // pred_check
          %p307 = pneg %p155
        $region42: #{tpu_custom_call.1} parent=35 // pred_check_branch
          %309 = sbr.rel (%p307) target = $region44
        $region43: #{tpu_custom_call.1} parent=35 // pred_region
          %s310 = sand.u32 %s145, 1
          %s311 = scalar_lea.sflag [#allocation13], %s310
          %s312 = sand.u32 %s145, 1
          %s313 = smul.addr %s312, 256
          %s314 = scalar_lea.vmem [#allocation12], %s313
          %s315 = smul.u32 16, %s25
          %s317 = ssub.s32 4096, 4096
          %318 = vsyncadd %s311, %s317
          %s319 = smul.addr %s315, 2
          %s320 = smul.addr %s319, 128
          %s321 = scalar_lea.hbm %s5, %s320
          %s322 = sshll.u32 %s314, 4
          %s323 = int_to_ptr.vmem [resolvable:$true] %s322
          %328 = dma.hbm_to_vmem [thread:$0]  %s321, 4096, %s323, %s311, 256, 256, 16
        $region44: #{tpu_custom_call.1} parent=35 // pred_fallthru
          _
      $region36: #{tpu_custom_call.1} parent=5 // pred_fallthru
        _
      %p329 = scmp.le.s32.totalorder 1, %s25
      %p330 = scmp.lt.s32.totalorder %s25, 3
      %p331 = pnand %p329, %p330
      %p332 = pneg %p331
      // Predicated region
      $region45: #{tpu_custom_call.1} parent=5 // pred_check
        _
      $region46: #{tpu_custom_call.1} parent=5 // pred_check_branch
        %334 = sbr.rel (%p331) target = $region48
      $region47: #{tpu_custom_call.1} parent=5 // pred_region
        %s335 = ssub.s32 %s25, 1
        // Predicated region
        $region49: #{tpu_custom_call.1} parent=47 // pred_check
          %p336 = pneg %p46
        $region50: #{tpu_custom_call.1} parent=47 // pred_check_branch
          %338 = sbr.rel (%p336) target = $region52
        $region51: #{tpu_custom_call.1} parent=47 // pred_region
          %339 = dma.done [#allocation3], 4096
        $region52: #{tpu_custom_call.1} parent=47 // pred_fallthru
          _
        %s340 = sand.u32 %s30, 1
        %s341 = scalar_lea.sflag [#allocation7], %s340
        %s342 = sand.u32 %s59, 1
        %s343 = smul.addr %s342, 128
        %s344 = scalar_lea.vmem [#allocation6], %s343
        // Predicated region
        $region53: #{tpu_custom_call.1} parent=47 // pred_check
          %p345 = pneg %p72
        $region54: #{tpu_custom_call.1} parent=47 // pred_check_branch
          %347 = sbr.rel (%p345) target = $region56
        $region55: #{tpu_custom_call.1} parent=47 // pred_region
          %348 = dma.done %s341, 2048
        $region56: #{tpu_custom_call.1} parent=47 // pred_fallthru
          _
        // Predicated region
        $region57: #{tpu_custom_call.1} parent=47 // pred_check
          %p349 = pneg %p93
        $region58: #{tpu_custom_call.1} parent=47 // pred_check_branch
          %351 = sbr.rel (%p349) target = $region60
        $region59: #{tpu_custom_call.1} parent=47 // pred_region
          %352 = dma.done [#allocation7], 256
        $region60: #{tpu_custom_call.1} parent=47 // pred_fallthru
          _
        // Predicated region
        $region61: #{tpu_custom_call.1} parent=47 // pred_check
          %p353 = pneg %p114
        $region62: #{tpu_custom_call.1} parent=47 // pred_check_branch
          %355 = sbr.rel (%p353) target = $region64
        $region63: #{tpu_custom_call.1} parent=47 // pred_region
          %356 = dma.done [#allocation10], 64
        $region64: #{tpu_custom_call.1} parent=47 // pred_fallthru
          _
        // Predicated region
        $region65: #{tpu_custom_call.1} parent=47 // pred_check
          %p357 = pneg %p135
        $region66: #{tpu_custom_call.1} parent=47 // pred_check_branch
          %359 = sbr.rel (%p357) target = $region68
        $region67: #{tpu_custom_call.1} parent=47 // pred_region
          %360 = dma.done [#allocation10], 512
        $region68: #{tpu_custom_call.1} parent=47 // pred_fallthru
          _
        %s361 = sand.u32 %s148, 1
        %s362 = scalar_lea.sflag [#allocation13], %s361
        %s363 = sand.u32 %s148, 1
        %s364 = smul.addr %s363, 256
        %s365 = scalar_lea.vmem [#allocation12], %s364
        // Predicated region
        $region69: #{tpu_custom_call.1} parent=47 // pred_check
          %p366 = pneg %p161
        $region70: #{tpu_custom_call.1} parent=47 // pred_check_branch
          %368 = sbr.rel (%p366) target = $region72
        $region71: #{tpu_custom_call.1} parent=47 // pred_region
          %369 = dma.done %s362, 4096
        $region72: #{tpu_custom_call.1} parent=47 // pred_fallthru
          _
        // Predicated region
        $region73: #{tpu_custom_call.1} parent=47 // pred_check
          %p370 = pneg %p182
        $region74: #{tpu_custom_call.1} parent=47 // pred_check_branch
          %372 = sbr.rel (%p370) target = $region76
        $region75: #{tpu_custom_call.1} parent=47 // pred_region
          %373 = dma.done [#allocation5], 64
        $region76: #{tpu_custom_call.1} parent=47 // pred_fallthru
          _
        %374 = sfence
        %p375 = pneg %p46
        %p376 = pneg %p43
        %s377 = sand.u32 %s30, 1
        %s378 = scalar_lea.sflag [#allocation7], %s377
        %s379 = sand.u32 %s59, 1
        %s380 = smul.addr %s379, 128
        %s381 = scalar_lea.vmem [#allocation6], %s380
        %p382 = pneg %p72
        %p383 = pneg %p69
        %p384 = pneg %p93
        %p385 = pneg %p90
        %p386 = pneg %p114
        %p387 = pneg %p111
        %p388 = pneg %p135
        %p389 = pneg %p132
        %s390 = sand.u32 %s148, 1
        %s391 = scalar_lea.sflag [#allocation13], %s390
        %s392 = sand.u32 %s148, 1
        %s393 = smul.addr %s392, 256
        %s394 = scalar_lea.vmem [#allocation12], %s393
        %p395 = pneg %p161
        %p396 = pneg %p158
        %p397 = pneg %p182
        %p398 = pneg %p179
        %p399 = pneg %p208
        %p400 = pneg %p205
        %s401 = sand.u32 %s195, 1
        %s402 = scalar_lea.sflag [#allocation4], %s401
        %s403 = sand.u32 %s195, 1
        %s404 = smul.addr %s403, 128
        %s405 = scalar_lea.vmem [#allocation15], %s404
        %s406 = smul.u32 16, %s30
        %s407 = smul.u32 16, %s30
        %s408 = smul.u32 16, %s30
        %v410 = vld [vmem:[#allocation2] sm:$0xff]
        %v411 = vld [vmem:[#allocation2 + $0x8] sm:$0xff]
        %v412 = vld [vmem:[#allocation2 + $0x10] sm:$0xff]
        %v413 = vld [vmem:[#allocation2 + $0x18] sm:$0xff]
        %v414 = vld [vmem:[#allocation2 + $0x20] sm:$0xff]
        %v415 = vld [vmem:[#allocation2 + $0x28] sm:$0xff]
        %v416 = vld [vmem:[#allocation2 + $0x30] sm:$0xff]
        %v417 = vld [vmem:[#allocation2 + $0x38] sm:$0xff]
        %v418 = vld [vmem:[#allocation2 + $0x40] sm:$0xff]
        %v419 = vld [vmem:[#allocation2 + $0x48] sm:$0xff]
        %v420 = vld [vmem:[#allocation2 + $0x50] sm:$0xff]
        %v421 = vld [vmem:[#allocation2 + $0x58] sm:$0xff]
        %v422 = vld [vmem:[#allocation2 + $0x60] sm:$0xff]
        %v423 = vld [vmem:[#allocation2 + $0x68] sm:$0xff]
        %v424 = vld [vmem:[#allocation2 + $0x70] sm:$0xff]
        %v425 = vld [vmem:[#allocation2 + $0x78] sm:$0xff]
        %v426 = vld [vmem:[#allocation2 + $0x80] sm:$0xff]
        %v427 = vld [vmem:[#allocation2 + $0x88] sm:$0xff]
        %v428 = vld [vmem:[#allocation2 + $0x90] sm:$0xff]
        %v429 = vld [vmem:[#allocation2 + $0x98] sm:$0xff]
        %v430 = vld [vmem:[#allocation2 + $0xa0] sm:$0xff]
        %v431 = vld [vmem:[#allocation2 + $0xa8] sm:$0xff]
        %v432 = vld [vmem:[#allocation2 + $0xb0] sm:$0xff]
        %v433 = vld [vmem:[#allocation2 + $0xb8] sm:$0xff]
        %v434 = vld [vmem:[#allocation2 + $0xc0] sm:$0xff]
        %v435 = vld [vmem:[#allocation2 + $0xc8] sm:$0xff]
        %v436 = vld [vmem:[#allocation2 + $0xd0] sm:$0xff]
        %v437 = vld [vmem:[#allocation2 + $0xd8] sm:$0xff]
        %v438 = vld [vmem:[#allocation2 + $0xe0] sm:$0xff]
        %v439 = vld [vmem:[#allocation2 + $0xe8] sm:$0xff]
        %v440 = vld [vmem:[#allocation2 + $0xf0] sm:$0xff]
        %v441 = vld [vmem:[#allocation2 + $0xf8] sm:$0xff]
        %v442 = vpack.c.bf16 %v411, %v410
        %v443 = vpack.c.bf16 %v413, %v412
        %v444 = vpack.c.bf16 %v415, %v414
        %v445 = vpack.c.bf16 %v417, %v416
        %v446 = vpack.c.bf16 %v419, %v418
        %v447 = vpack.c.bf16 %v421, %v420
        %v448 = vpack.c.bf16 %v423, %v422
        %v449 = vpack.c.bf16 %v425, %v424
        %v450 = vpack.c.bf16 %v427, %v426
        %v451 = vpack.c.bf16 %v429, %v428
        %v452 = vpack.c.bf16 %v431, %v430
        %v453 = vpack.c.bf16 %v433, %v432
        %v454 = vpack.c.bf16 %v435, %v434
        %v455 = vpack.c.bf16 %v437, %v436
        %v456 = vpack.c.bf16 %v439, %v438
        %v457 = vpack.c.bf16 %v441, %v440
        %v458 = vld [vmem:[#allocation8] sm:$0xf]
        %v459 = vld [vmem:[#allocation8 + $0x4] sm:$0xf]
        %v460 = vld [vmem:[#allocation8 + $0x8] sm:$0xf]
        %v461 = vld [vmem:[#allocation8 + $0xc] sm:$0xf]
        %v466 = vunpack.c.l.b16 %v458
        %v467 = vunpack.c.l.b16 %v459
        %v468 = vunpack.c.l.b16 %v460
        %v469 = vunpack.c.l.b16 %v461
        %v470 = vpack.c.b16 %v467, %v466
        %v471 = vpack.c.b16 %v469, %v468
        %vm474 = vcmask 261120
        %v476 = vsel %vm474, %v442, 0
        %v479 = vsel %vm474, %v443, 0
        %v482 = vsel %vm474, %v444, 0
        %v485 = vsel %vm474, %v445, 0
        %v488 = vsel %vm474, %v446, 0
        %v491 = vsel %vm474, %v447, 0
        %v494 = vsel %vm474, %v448, 0
        %v497 = vsel %vm474, %v449, 0
        %v500 = vsel %vm474, %v450, 0
        %v503 = vsel %vm474, %v451, 0
        %v506 = vsel %vm474, %v452, 0
        %v509 = vsel %vm474, %v453, 0
        %v512 = vsel %vm474, %v454, 0
        %v515 = vsel %vm474, %v455, 0
        %v518 = vsel %vm474, %v456, 0
        %v521 = vsel %vm474, %v457, 0
        %523 = vmatprep.subr.bf16.mxu0 0
        %524 = vmatpush1.bf16.msra.mxu0 %v470
        %525 = vmatprep.subr.bf16.mxu0 0
        %526 = vmatpush1.bf16.msra.mxu0 %v471
        %527 = vmatprep.subr.bf16.mxu0 0
        %528 = vmatpush1.bf16.msra.mxu0 0
        %529 = vmatprep.subr.bf16.mxu0 0
        %530 = vmatpush1.bf16.msra.mxu0 0
        %531 = vmatprep.subr.bf16.mxu0 0
        %532 = vmatpush1.bf16.msra.mxu0 0
        %533 = vmatprep.subr.bf16.mxu0 0
        %534 = vmatpush1.bf16.msra.mxu0 0
        %535 = vmatprep.subr.bf16.mxu0 0
        %536 = vmatpush1.bf16.msra.mxu0 0
        %537 = vmatprep.subr.bf16.mxu0 0
        %538 = vmatpush1.bf16.msra.mxu0 0
        %539 = vmatprep.subr.bf16.mxu0 0
        %540 = vmatpush1.bf16.msra.mxu0 0
        %541 = vmatprep.subr.bf16.mxu0 0
        %542 = vmatpush1.bf16.msra.mxu0 0
        %543 = vmatprep.subr.bf16.mxu0 0
        %544 = vmatpush1.bf16.msra.mxu0 0
        %545 = vmatprep.subr.bf16.mxu0 0
        %546 = vmatpush1.bf16.msra.mxu0 0
        %547 = vmatprep.subr.bf16.mxu0 0
        %548 = vmatpush1.bf16.msra.mxu0 0
        %549 = vmatprep.subr.bf16.mxu0 0
        %550 = vmatpush1.bf16.msra.mxu0 0
        %551 = vmatprep.subr.bf16.mxu0 0
        %552 = vmatpush1.bf16.msra.mxu0 0
        %553 = vmatprep.subr.bf16.mxu0 0
        %554 = vmatpush1.bf16.msra.mxu0 0
        %555 = vmatprep.mubr.bf16.mxu0 0
        %556 = vmatmul.mubr.bf16.gmra.mrb[0].mxu0 %v476
        %v557 = vpop.f32.mrb[0].mxu0
        %v558 = vadd.f32 0.0, %v557
        %v559 = vpop.f32.mrb[0].mxu0
        %v560 = vpop.f32.mrb[0].mxu0
        %v561 = vadd.f32 0.0, %v560
        %v562 = vpop.f32.mrb[0].mxu0
        %563 = vmatprep.mubr.bf16.mxu0 0
        %564 = vmatmul.mubr.bf16.gmra.mrb[0].mxu0 %v479
        %v565 = vpop.f32.mrb[0].mxu0
        %v566 = vadd.f32 0.0, %v565
        %v567 = vpop.f32.mrb[0].mxu0
        %v568 = vpop.f32.mrb[0].mxu0
        %v569 = vadd.f32 0.0, %v568
        %v570 = vpop.f32.mrb[0].mxu0
        %571 = vmatprep.mubr.bf16.mxu0 0
        %572 = vmatmul.mubr.bf16.gmra.mrb[0].mxu0 %v482
        %v573 = vpop.f32.mrb[0].mxu0
        %v574 = vadd.f32 0.0, %v573
        %v575 = vpop.f32.mrb[0].mxu0
        %v576 = vpop.f32.mrb[0].mxu0
        %v577 = vadd.f32 0.0, %v576
        %v578 = vpop.f32.mrb[0].mxu0
        %579 = vmatprep.mubr.bf16.mxu0 0
        %580 = vmatmul.mubr.bf16.gmra.mrb[0].mxu0 %v485
        %v581 = vpop.f32.mrb[0].mxu0
        %v582 = vadd.f32 0.0, %v581
        %v583 = vpop.f32.mrb[0].mxu0
        %v584 = vpop.f32.mrb[0].mxu0
        %v585 = vadd.f32 0.0, %v584
        %v586 = vpop.f32.mrb[0].mxu0
        %587 = vmatprep.mubr.bf16.mxu0 0
        %588 = vmatmul.mubr.bf16.gmra.mrb[0].mxu0 %v488
        %v589 = vpop.f32.mrb[0].mxu0
        %v590 = vadd.f32 0.0, %v589
        %v591 = vpop.f32.mrb[0].mxu0
        %v592 = vpop.f32.mrb[0].mxu0
        %v593 = vadd.f32 0.0, %v592
        %v594 = vpop.f32.mrb[0].mxu0
        %595 = vmatprep.mubr.bf16.mxu0 0
        %596 = vmatmul.mubr.bf16.gmra.mrb[0].mxu0 %v491
        %v597 = vpop.f32.mrb[0].mxu0
        %v598 = vadd.f32 0.0, %v597
        %v599 = vpop.f32.mrb[0].mxu0
        %v600 = vpop.f32.mrb[0].mxu0
        %v601 = vadd.f32 0.0, %v600
        %v602 = vpop.f32.mrb[0].mxu0
        %603 = vmatprep.mubr.bf16.mxu0 0
        %604 = vmatmul.mubr.bf16.gmra.mrb[0].mxu0 %v494
        %v605 = vpop.f32.mrb[0].mxu0
        %v606 = vadd.f32 0.0, %v605
        %v607 = vpop.f32.mrb[0].mxu0
        %v608 = vpop.f32.mrb[0].mxu0
        %v609 = vadd.f32 0.0, %v608
        %v610 = vpop.f32.mrb[0].mxu0
        %611 = vmatprep.mubr.bf16.mxu0 0
        %612 = vmatmul.mubr.bf16.gmra.mrb[0].mxu0 %v497
        %v613 = vpop.f32.mrb[0].mxu0
        %v614 = vadd.f32 0.0, %v613
        %v615 = vpop.f32.mrb[0].mxu0
        %v616 = vpop.f32.mrb[0].mxu0
        %v617 = vadd.f32 0.0, %v616
        %v618 = vpop.f32.mrb[0].mxu0
        %619 = vmatprep.mubr.bf16.mxu0 0
        %620 = vmatmul.mubr.bf16.gmra.mrb[0].mxu0 %v500
        %v621 = vpop.f32.mrb[0].mxu0
        %v622 = vadd.f32 0.0, %v621
        %v623 = vpop.f32.mrb[0].mxu0
        %v624 = vpop.f32.mrb[0].mxu0
        %v625 = vadd.f32 0.0, %v624
        %v626 = vpop.f32.mrb[0].mxu0
        %627 = vmatprep.mubr.bf16.mxu0 0
        %628 = vmatmul.mubr.bf16.gmra.mrb[0].mxu0 %v503
        %v629 = vpop.f32.mrb[0].mxu0
        %v630 = vadd.f32 0.0, %v629
        %v631 = vpop.f32.mrb[0].mxu0
        %v632 = vpop.f32.mrb[0].mxu0
        %v633 = vadd.f32 0.0, %v632
        %v634 = vpop.f32.mrb[0].mxu0
        %635 = vmatprep.mubr.bf16.mxu0 0
        %636 = vmatmul.mubr.bf16.gmra.mrb[0].mxu0 %v506
        %v637 = vpop.f32.mrb[0].mxu0
        %v638 = vadd.f32 0.0, %v637
        %v639 = vpop.f32.mrb[0].mxu0
        %v640 = vpop.f32.mrb[0].mxu0
        %v641 = vadd.f32 0.0, %v640
        %v642 = vpop.f32.mrb[0].mxu0
        %643 = vmatprep.mubr.bf16.mxu0 0
        %644 = vmatmul.mubr.bf16.gmra.mrb[0].mxu0 %v509
        %v645 = vpop.f32.mrb[0].mxu0
        %v646 = vadd.f32 0.0, %v645
        %v647 = vpop.f32.mrb[0].mxu0
        %v648 = vpop.f32.mrb[0].mxu0
        %v649 = vadd.f32 0.0, %v648
        %v650 = vpop.f32.mrb[0].mxu0
        %651 = vmatprep.mubr.bf16.mxu0 0
        %652 = vmatmul.mubr.bf16.gmra.mrb[0].mxu0 %v512
        %v653 = vpop.f32.mrb[0].mxu0
        %v654 = vadd.f32 0.0, %v653
        %v655 = vpop.f32.mrb[0].mxu0
        %v656 = vpop.f32.mrb[0].mxu0
        %v657 = vadd.f32 0.0, %v656
        %v658 = vpop.f32.mrb[0].mxu0
        %659 = vmatprep.mubr.bf16.mxu0 0
        %660 = vmatmul.mubr.bf16.gmra.mrb[0].mxu0 %v515
        %v661 = vpop.f32.mrb[0].mxu0
        %v662 = vadd.f32 0.0, %v661
        %v663 = vpop.f32.mrb[0].mxu0
        %v664 = vpop.f32.mrb[0].mxu0
        %v665 = vadd.f32 0.0, %v664
        %v666 = vpop.f32.mrb[0].mxu0
        %667 = vmatprep.mubr.bf16.mxu0 0
        %668 = vmatmul.mubr.bf16.gmra.mrb[0].mxu0 %v518
        %v669 = vpop.f32.mrb[0].mxu0
        %v670 = vadd.f32 0.0, %v669
        %v671 = vpop.f32.mrb[0].mxu0
        %v672 = vpop.f32.mrb[0].mxu0
        %v673 = vadd.f32 0.0, %v672
        %v674 = vpop.f32.mrb[0].mxu0
        %675 = vmatprep.mubr.bf16.mxu0 0
        %676 = vmatmul.mubr.bf16.gmra.mrb[0].mxu0 %v521
        %v677 = vpop.f32.mrb[0].mxu0
        %v678 = vadd.f32 0.0, %v677
        %v679 = vpop.f32.mrb[0].mxu0
        %v680 = vpop.f32.mrb[0].mxu0
        %v681 = vadd.f32 0.0, %v680
        %v682 = vpop.f32.mrb[0].mxu0
        %683 = vdwg.mxu0
        %v684 = vld [vmem:[#allocation9] sm:$0xf]
        %v686 = vsel %vm474, %v684, 0
        %v689 = vsel %vm474, %v410, 0
        %v692 = vsel %vm474, %v411, 0
        %v695 = vsel %vm474, %v412, 0
        %v698 = vsel %vm474, %v413, 0
        %v701 = vsel %vm474, %v414, 0
        %v704 = vsel %vm474, %v415, 0
        %v707 = vsel %vm474, %v416, 0
        %v710 = vsel %vm474, %v417, 0
        %v713 = vsel %vm474, %v418, 0
        %v716 = vsel %vm474, %v419, 0
        %v719 = vsel %vm474, %v420, 0
        %v722 = vsel %vm474, %v421, 0
        %v725 = vsel %vm474, %v422, 0
        %v728 = vsel %vm474, %v423, 0
        %v731 = vsel %vm474, %v424, 0
        %v734 = vsel %vm474, %v425, 0
        %v737 = vsel %vm474, %v426, 0
        %v740 = vsel %vm474, %v427, 0
        %v743 = vsel %vm474, %v428, 0
        %v746 = vsel %vm474, %v429, 0
        %v749 = vsel %vm474, %v430, 0
        %v752 = vsel %vm474, %v431, 0
        %v755 = vsel %vm474, %v432, 0
        %v758 = vsel %vm474, %v433, 0
        %v761 = vsel %vm474, %v434, 0
        %v764 = vsel %vm474, %v435, 0
        %v767 = vsel %vm474, %v436, 0
        %v770 = vsel %vm474, %v437, 0
        %v773 = vsel %vm474, %v438, 0
        %v776 = vsel %vm474, %v439, 0
        %v779 = vsel %vm474, %v440, 0
        %v782 = vsel %vm474, %v441, 0
        %784 = vmatprep.subr.mxu0 0.0
        %785 = vmatpush1.xpose.msra.mxu0 %v689
        %786 = vmatprep.subr.mxu0 0.0
        %787 = vmatpush1.xpose.msra.mxu0 %v692
        %788 = vmatprep.subr.mxu0 0.0
        %789 = vmatpush1.xpose.msra.mxu0 %v695
        %790 = vmatprep.subr.mxu0 0.0
        %791 = vmatpush1.xpose.msra.mxu0 %v698
        %792 = vmatprep.subr.mxu0 0.0
        %793 = vmatpush1.xpose.msra.mxu0 %v701
        %794 = vmatprep.subr.mxu0 0.0
        %795 = vmatpush1.xpose.msra.mxu0 %v704
        %796 = vmatprep.subr.mxu0 0.0
        %797 = vmatpush1.xpose.msra.mxu0 %v707
        %798 = vmatprep.subr.mxu0 0.0
        %799 = vmatpush1.xpose.msra.mxu0 %v710
        %800 = vmatprep.subr.mxu0 0.0
        %801 = vmatpush1.xpose.msra.mxu0 %v713
        %802 = vmatprep.subr.mxu0 0.0
        %803 = vmatpush1.xpose.msra.mxu0 %v716
        %804 = vmatprep.subr.mxu0 0.0
        %805 = vmatpush1.xpose.msra.mxu0 %v719
        %806 = vmatprep.subr.mxu0 0.0
        %807 = vmatpush1.xpose.msra.mxu0 %v722
        %808 = vmatprep.subr.mxu0 0.0
        %809 = vmatpush1.xpose.msra.mxu0 %v725
        %810 = vmatprep.subr.mxu0 0.0
        %811 = vmatpush1.xpose.msra.mxu0 %v728
        %812 = vmatprep.subr.mxu0 0.0
        %813 = vmatpush1.xpose.msra.mxu0 %v731
        %814 = vmatprep.subr.mxu0 0.0
        %815 = vmatpush1.xpose.msra.mxu0 %v734
        %816 = vmatprep.subr.mxu0 0.0
        %817 = vmatpush1.xpose.msra.mxu0 %v737
        %818 = vmatprep.subr.mxu0 0.0
        %819 = vmatpush1.xpose.msra.mxu0 %v740
        %820 = vmatprep.subr.mxu0 0.0
        %821 = vmatpush1.xpose.msra.mxu0 %v743
        %822 = vmatprep.subr.mxu0 0.0
        %823 = vmatpush1.xpose.msra.mxu0 %v746
        %824 = vmatprep.subr.mxu0 0.0
        %825 = vmatpush1.xpose.msra.mxu0 %v749
        %826 = vmatprep.subr.mxu0 0.0
        %827 = vmatpush1.xpose.msra.mxu0 %v752
        %828 = vmatprep.subr.mxu0 0.0
        %829 = vmatpush1.xpose.msra.mxu0 %v755
        %830 = vmatprep.subr.mxu0 0.0
        %831 = vmatpush1.xpose.msra.mxu0 %v758
        %832 = vmatprep.subr.mxu0 0.0
        %833 = vmatpush1.xpose.msra.mxu0 %v761
        %834 = vmatprep.subr.mxu0 0.0
        %835 = vmatpush1.xpose.msra.mxu0 %v764
        %836 = vmatprep.subr.mxu0 0.0
        %837 = vmatpush1.xpose.msra.mxu0 %v767
        %838 = vmatprep.subr.mxu0 0.0
        %839 = vmatpush1.xpose.msra.mxu0 %v770
        %840 = vmatprep.subr.mxu0 0.0
        %841 = vmatpush1.xpose.msra.mxu0 %v773
        %842 = vmatprep.subr.mxu0 0.0
        %843 = vmatpush1.xpose.msra.mxu0 %v776
        %844 = vmatprep.subr.mxu0 0.0
        %845 = vmatpush1.xpose.msra.mxu0 %v779
        %846 = vmatprep.subr.mxu0 0.0
        %847 = vmatpush1.xpose.msra.mxu0 %v782
        %848 = vmatprep.mubr.f32.mxu0 0.0
        %849 = vmatmul.mubr.f32.gmra.mrb[0].mxu0 %v686
        %v850 = vpop.f32.mrb[0].mxu0
        %v851 = vadd.f32 0.0, %v850
        %v852 = vpop.f32.mrb[0].mxu0
        %v853 = vadd.f32 0.0, %v852
        %854 = vdwg.mxu0
        %v855 = vld [vmem:[%s344] sm:$0xff]
        %v856 = vld [vmem:[%s344 + $0x8] sm:$0xff]
        %v857 = vld [vmem:[%s344 + $0x10] sm:$0xff]
        %v858 = vld [vmem:[%s344 + $0x18] sm:$0xff]
        %v859 = vld [vmem:[%s344 + $0x20] sm:$0xff]
        %v860 = vld [vmem:[%s344 + $0x28] sm:$0xff]
        %v861 = vld [vmem:[%s344 + $0x30] sm:$0xff]
        %v862 = vld [vmem:[%s344 + $0x38] sm:$0xff]
        %v863 = vld [vmem:[%s344 + $0x40] sm:$0xff]
        %v864 = vld [vmem:[%s344 + $0x48] sm:$0xff]
        %v865 = vld [vmem:[%s344 + $0x50] sm:$0xff]
        %v866 = vld [vmem:[%s344 + $0x58] sm:$0xff]
        %v867 = vld [vmem:[%s344 + $0x60] sm:$0xff]
        %v868 = vld [vmem:[%s344 + $0x68] sm:$0xff]
        %v869 = vld [vmem:[%s344 + $0x70] sm:$0xff]
        %v870 = vld [vmem:[%s344 + $0x78] sm:$0xff]
        %v871 = vld [vmem:[#allocation11] sm:$0xff]
        %v872 = vld [vmem:[#allocation11 + $0x8] sm:$0xff]
        %v873 = vld [vmem:[#allocation11 + $0x10] sm:$0xff]
        %v874 = vld [vmem:[#allocation11 + $0x18] sm:$0xff]
        %v876 = vsel %vm474, %v855, 0
        %v879 = vsel %vm474, %v856, 0
        %v882 = vsel %vm474, %v857, 0
        %v885 = vsel %vm474, %v858, 0
        %v888 = vsel %vm474, %v859, 0
        %v891 = vsel %vm474, %v860, 0
        %v894 = vsel %vm474, %v861, 0
        %v897 = vsel %vm474, %v862, 0
        %v900 = vsel %vm474, %v863, 0
        %v903 = vsel %vm474, %v864, 0
        %v906 = vsel %vm474, %v865, 0
        %v909 = vsel %vm474, %v866, 0
        %v912 = vsel %vm474, %v867, 0
        %v915 = vsel %vm474, %v868, 0
        %v918 = vsel %vm474, %v869, 0
        %v921 = vsel %vm474, %v870, 0
        %923 = vmatprep.subr.mxu0 0.0
        %924 = vmatpush1.msra.mxu0 %v871
        %925 = vmatprep.subr.mxu0 0.0
        %926 = vmatpush1.msra.mxu0 %v872
        %927 = vmatprep.subr.mxu0 0.0
        %928 = vmatpush1.msra.mxu0 %v873
        %929 = vmatprep.subr.mxu0 0.0
        %930 = vmatpush1.msra.mxu0 %v874
        %931 = vmatprep.subr.mxu0 0.0
        %932 = vmatpush1.msra.mxu0 0.0
        %933 = vmatprep.subr.mxu0 0.0
        %934 = vmatpush1.msra.mxu0 0.0
        %935 = vmatprep.subr.mxu0 0.0
        %936 = vmatpush1.msra.mxu0 0.0
        %937 = vmatprep.subr.mxu0 0.0
        %938 = vmatpush1.msra.mxu0 0.0
        %939 = vmatprep.subr.mxu0 0.0
        %940 = vmatpush1.msra.mxu0 0.0
        %941 = vmatprep.subr.mxu0 0.0
        %942 = vmatpush1.msra.mxu0 0.0
        %943 = vmatprep.subr.mxu0 0.0
        %944 = vmatpush1.msra.mxu0 0.0
        %945 = vmatprep.subr.mxu0 0.0
        %946 = vmatpush1.msra.mxu0 0.0
        %947 = vmatprep.subr.mxu0 0.0
        %948 = vmatpush1.msra.mxu0 0.0
        %949 = vmatprep.subr.mxu0 0.0
        %950 = vmatpush1.msra.mxu0 0.0
        %951 = vmatprep.subr.mxu0 0.0
        %952 = vmatpush1.msra.mxu0 0.0
        %953 = vmatprep.subr.mxu0 0.0
        %954 = vmatpush1.msra.mxu0 0.0
        %955 = vmatprep.subr.mxu0 0.0
        %956 = vmatpush1.msra.mxu0 0.0
        %957 = vmatprep.subr.mxu0 0.0
        %958 = vmatpush1.msra.mxu0 0.0
        %959 = vmatprep.subr.mxu0 0.0
        %960 = vmatpush1.msra.mxu0 0.0
        %961 = vmatprep.subr.mxu0 0.0
        %962 = vmatpush1.msra.mxu0 0.0
        %963 = vmatprep.subr.mxu0 0.0
        %964 = vmatpush1.msra.mxu0 0.0
        %965 = vmatprep.subr.mxu0 0.0
        %966 = vmatpush1.msra.mxu0 0.0
        %967 = vmatprep.subr.mxu0 0.0
        %968 = vmatpush1.msra.mxu0 0.0
        %969 = vmatprep.subr.mxu0 0.0
        %970 = vmatpush1.msra.mxu0 0.0
        %971 = vmatprep.subr.mxu0 0.0
        %972 = vmatpush1.msra.mxu0 0.0
        %973 = vmatprep.subr.mxu0 0.0
        %974 = vmatpush1.msra.mxu0 0.0
        %975 = vmatprep.subr.mxu0 0.0
        %976 = vmatpush1.msra.mxu0 0.0
        %977 = vmatprep.subr.mxu0 0.0
        %978 = vmatpush1.msra.mxu0 0.0
        %979 = vmatprep.subr.mxu0 0.0
        %980 = vmatpush1.msra.mxu0 0.0
        %981 = vmatprep.subr.mxu0 0.0
        %982 = vmatpush1.msra.mxu0 0.0
        %983 = vmatprep.subr.mxu0 0.0
        %984 = vmatpush1.msra.mxu0 0.0
        %985 = vmatprep.subr.mxu0 0.0
        %986 = vmatpush1.msra.mxu0 0.0
        %987 = vmatprep.mubr.f32.mxu0 0.0
        %988 = vmatmul.mubr.f32.gmra.mrb[0].mxu0 %v876
        %v989 = vpop.f32.mrb[0].mxu0
        %v990 = vadd.f32 0.0, %v989
        %v991 = vpop.f32.mrb[0].mxu0
        %992 = vmatprep.mubr.f32.mxu0 0.0
        %993 = vmatmul.mubr.f32.gmra.mrb[0].mxu0 %v879
        %v994 = vpop.f32.mrb[0].mxu0
        %v995 = vadd.f32 0.0, %v994
        %v996 = vpop.f32.mrb[0].mxu0
        %997 = vmatprep.mubr.f32.mxu0 0.0
        %998 = vmatmul.mubr.f32.gmra.mrb[0].mxu0 %v882
        %v999 = vpop.f32.mrb[0].mxu0
        %v1000 = vadd.f32 0.0, %v999
        %v1001 = vpop.f32.mrb[0].mxu0
        %1002 = vmatprep.mubr.f32.mxu0 0.0
        %1003 = vmatmul.mubr.f32.gmra.mrb[0].mxu0 %v885
        %v1004 = vpop.f32.mrb[0].mxu0
        %v1005 = vadd.f32 0.0, %v1004
        %v1006 = vpop.f32.mrb[0].mxu0
        %1007 = vmatprep.mubr.f32.mxu0 0.0
        %1008 = vmatmul.mubr.f32.gmra.mrb[0].mxu0 %v888
        %v1009 = vpop.f32.mrb[0].mxu0
        %v1010 = vadd.f32 0.0, %v1009
        %v1011 = vpop.f32.mrb[0].mxu0
        %1012 = vmatprep.mubr.f32.mxu0 0.0
        %1013 = vmatmul.mubr.f32.gmra.mrb[0].mxu0 %v891
        %v1014 = vpop.f32.mrb[0].mxu0
        %v1015 = vadd.f32 0.0, %v1014
        %v1016 = vpop.f32.mrb[0].mxu0
        %1017 = vmatprep.mubr.f32.mxu0 0.0
        %1018 = vmatmul.mubr.f32.gmra.mrb[0].mxu0 %v894
        %v1019 = vpop.f32.mrb[0].mxu0
        %v1020 = vadd.f32 0.0, %v1019
        %v1021 = vpop.f32.mrb[0].mxu0
        %1022 = vmatprep.mubr.f32.mxu0 0.0
        %1023 = vmatmul.mubr.f32.gmra.mrb[0].mxu0 %v897
        %v1024 = vpop.f32.mrb[0].mxu0
        %v1025 = vadd.f32 0.0, %v1024
        %v1026 = vpop.f32.mrb[0].mxu0
        %1027 = vmatprep.mubr.f32.mxu0 0.0
        %1028 = vmatmul.mubr.f32.gmra.mrb[0].mxu0 %v900
        %v1029 = vpop.f32.mrb[0].mxu0
        %v1030 = vadd.f32 0.0, %v1029
        %v1031 = vpop.f32.mrb[0].mxu0
        %1032 = vmatprep.mubr.f32.mxu0 0.0
        %1033 = vmatmul.mubr.f32.gmra.mrb[0].mxu0 %v903
        %v1034 = vpop.f32.mrb[0].mxu0
        %v1035 = vadd.f32 0.0, %v1034
        %v1036 = vpop.f32.mrb[0].mxu0
        %1037 = vmatprep.mubr.f32.mxu0 0.0
        %1038 = vmatmul.mubr.f32.gmra.mrb[0].mxu0 %v906
        %v1039 = vpop.f32.mrb[0].mxu0
        %v1040 = vadd.f32 0.0, %v1039
        %v1041 = vpop.f32.mrb[0].mxu0
        %1042 = vmatprep.mubr.f32.mxu0 0.0
        %1043 = vmatmul.mubr.f32.gmra.mrb[0].mxu0 %v909
        %v1044 = vpop.f32.mrb[0].mxu0
        %v1045 = vadd.f32 0.0, %v1044
        %v1046 = vpop.f32.mrb[0].mxu0
        %1047 = vmatprep.mubr.f32.mxu0 0.0
        %1048 = vmatmul.mubr.f32.gmra.mrb[0].mxu0 %v912
        %v1049 = vpop.f32.mrb[0].mxu0
        %v1050 = vadd.f32 0.0, %v1049
        %v1051 = vpop.f32.mrb[0].mxu0
        %1052 = vmatprep.mubr.f32.mxu0 0.0
        %1053 = vmatmul.mubr.f32.gmra.mrb[0].mxu0 %v915
        %v1054 = vpop.f32.mrb[0].mxu0
        %v1055 = vadd.f32 0.0, %v1054
        %v1056 = vpop.f32.mrb[0].mxu0
        %1057 = vmatprep.mubr.f32.mxu0 0.0
        %1058 = vmatmul.mubr.f32.gmra.mrb[0].mxu0 %v918
        %v1059 = vpop.f32.mrb[0].mxu0
        %v1060 = vadd.f32 0.0, %v1059
        %v1061 = vpop.f32.mrb[0].mxu0
        %1062 = vmatprep.mubr.f32.mxu0 0.0
        %1063 = vmatmul.mubr.f32.gmra.mrb[0].mxu0 %v921
        %v1064 = vpop.f32.mrb[0].mxu0
        %v1065 = vadd.f32 0.0, %v1064
        %v1066 = vpop.f32.mrb[0].mxu0
        %1067 = vdwg.mxu0
        %v1068 = vld [vmem:[%s365] sm:$0xff]
        %v1069 = vld [vmem:[%s365 + $0x8] sm:$0xff]
        %v1070 = vld [vmem:[%s365 + $0x10] sm:$0xff]
        %v1071 = vld [vmem:[%s365 + $0x18] sm:$0xff]
        %v1072 = vld [vmem:[%s365 + $0x20] sm:$0xff]
        %v1073 = vld [vmem:[%s365 + $0x28] sm:$0xff]
        %v1074 = vld [vmem:[%s365 + $0x30] sm:$0xff]
        %v1075 = vld [vmem:[%s365 + $0x38] sm:$0xff]
        %v1076 = vld [vmem:[%s365 + $0x40] sm:$0xff]
        %v1077 = vld [vmem:[%s365 + $0x48] sm:$0xff]
        %v1078 = vld [vmem:[%s365 + $0x50] sm:$0xff]
        %v1079 = vld [vmem:[%s365 + $0x58] sm:$0xff]
        %v1080 = vld [vmem:[%s365 + $0x60] sm:$0xff]
        %v1081 = vld [vmem:[%s365 + $0x68] sm:$0xff]
        %v1082 = vld [vmem:[%s365 + $0x70] sm:$0xff]
        %v1083 = vld [vmem:[%s365 + $0x78] sm:$0xff]
        %v1084 = vld [vmem:[%s365 + $0x80] sm:$0xff]
        %v1085 = vld [vmem:[%s365 + $0x88] sm:$0xff]
        %v1086 = vld [vmem:[%s365 + $0x90] sm:$0xff]
        %v1087 = vld [vmem:[%s365 + $0x98] sm:$0xff]
        %v1088 = vld [vmem:[%s365 + $0xa0] sm:$0xff]
        %v1089 = vld [vmem:[%s365 + $0xa8] sm:$0xff]
        %v1090 = vld [vmem:[%s365 + $0xb0] sm:$0xff]
        %v1091 = vld [vmem:[%s365 + $0xb8] sm:$0xff]
        %v1092 = vld [vmem:[%s365 + $0xc0] sm:$0xff]
        %v1093 = vld [vmem:[%s365 + $0xc8] sm:$0xff]
        %v1094 = vld [vmem:[%s365 + $0xd0] sm:$0xff]
        %v1095 = vld [vmem:[%s365 + $0xd8] sm:$0xff]
        %v1096 = vld [vmem:[%s365 + $0xe0] sm:$0xff]
        %v1097 = vld [vmem:[%s365 + $0xe8] sm:$0xff]
        %v1098 = vld [vmem:[%s365 + $0xf0] sm:$0xff]
        %v1099 = vld [vmem:[%s365 + $0xf8] sm:$0xff]
        %vm1100 = vcmp.gt.s32.totalorder %v1068, 0
        %vm1101 = vcmp.gt.s32.totalorder %v1069, 0
        %vm1102 = vcmp.gt.s32.totalorder %v1070, 0
        %vm1103 = vcmp.gt.s32.totalorder %v1071, 0
        %vm1104 = vcmp.gt.s32.totalorder %v1072, 0
        %vm1105 = vcmp.gt.s32.totalorder %v1073, 0
        %vm1106 = vcmp.gt.s32.totalorder %v1074, 0
        %vm1107 = vcmp.gt.s32.totalorder %v1075, 0
        %vm1108 = vcmp.gt.s32.totalorder %v1076, 0
        %vm1109 = vcmp.gt.s32.totalorder %v1077, 0
        %vm1110 = vcmp.gt.s32.totalorder %v1078, 0
        %vm1111 = vcmp.gt.s32.totalorder %v1079, 0
        %vm1112 = vcmp.gt.s32.totalorder %v1080, 0
        %vm1113 = vcmp.gt.s32.totalorder %v1081, 0
        %vm1114 = vcmp.gt.s32.totalorder %v1082, 0
        %vm1115 = vcmp.gt.s32.totalorder %v1083, 0
        %vm1116 = vcmp.gt.s32.totalorder %v1084, 0
        %vm1117 = vcmp.gt.s32.totalorder %v1085, 0
        %vm1118 = vcmp.gt.s32.totalorder %v1086, 0
        %vm1119 = vcmp.gt.s32.totalorder %v1087, 0
        %vm1120 = vcmp.gt.s32.totalorder %v1088, 0
        %vm1121 = vcmp.gt.s32.totalorder %v1089, 0
        %vm1122 = vcmp.gt.s32.totalorder %v1090, 0
        %vm1123 = vcmp.gt.s32.totalorder %v1091, 0
        %vm1124 = vcmp.gt.s32.totalorder %v1092, 0
        %vm1125 = vcmp.gt.s32.totalorder %v1093, 0
        %vm1126 = vcmp.gt.s32.totalorder %v1094, 0
        %vm1127 = vcmp.gt.s32.totalorder %v1095, 0
        %vm1128 = vcmp.gt.s32.totalorder %v1096, 0
        %vm1129 = vcmp.gt.s32.totalorder %v1097, 0
        %vm1130 = vcmp.gt.s32.totalorder %v1098, 0
        %vm1131 = vcmp.gt.s32.totalorder %v1099, 0
        %v1132 = vsel %vm1100, 1, 0
        %v1133 = vsel %vm1101, 1, 0
        %v1134 = vsel %vm1102, 1, 0
        %v1135 = vsel %vm1103, 1, 0
        %v1136 = vsel %vm1104, 1, 0
        %v1137 = vsel %vm1105, 1, 0
        %v1138 = vsel %vm1106, 1, 0
        %v1139 = vsel %vm1107, 1, 0
        %v1140 = vsel %vm1108, 1, 0
        %v1141 = vsel %vm1109, 1, 0
        %v1142 = vsel %vm1110, 1, 0
        %v1143 = vsel %vm1111, 1, 0
        %v1144 = vsel %vm1112, 1, 0
        %v1145 = vsel %vm1113, 1, 0
        %v1146 = vsel %vm1114, 1, 0
        %v1147 = vsel %vm1115, 1, 0
        %v1148 = vsel %vm1116, 1, 0
        %v1149 = vsel %vm1117, 1, 0
        %v1150 = vsel %vm1118, 1, 0
        %v1151 = vsel %vm1119, 1, 0
        %v1152 = vsel %vm1120, 1, 0
        %v1153 = vsel %vm1121, 1, 0
        %v1154 = vsel %vm1122, 1, 0
        %v1155 = vsel %vm1123, 1, 0
        %v1156 = vsel %vm1124, 1, 0
        %v1157 = vsel %vm1125, 1, 0
        %v1158 = vsel %vm1126, 1, 0
        %v1159 = vsel %vm1127, 1, 0
        %v1160 = vsel %vm1128, 1, 0
        %v1161 = vsel %vm1129, 1, 0
        %v1162 = vsel %vm1130, 1, 0
        %v1163 = vsel %vm1131, 1, 0
        %v1164 = vcvt.s32.f32 %v1132
        %v1165 = vcvt.s32.f32 %v1133
        %v1166 = vcvt.s32.f32 %v1134
        %v1167 = vcvt.s32.f32 %v1135
        %v1168 = vcvt.s32.f32 %v1136
        %v1169 = vcvt.s32.f32 %v1137
        %v1170 = vcvt.s32.f32 %v1138
        %v1171 = vcvt.s32.f32 %v1139
        %v1172 = vcvt.s32.f32 %v1140
        %v1173 = vcvt.s32.f32 %v1141
        %v1174 = vcvt.s32.f32 %v1142
        %v1175 = vcvt.s32.f32 %v1143
        %v1176 = vcvt.s32.f32 %v1144
        %v1177 = vcvt.s32.f32 %v1145
        %v1178 = vcvt.s32.f32 %v1146
        %v1179 = vcvt.s32.f32 %v1147
        %v1180 = vcvt.s32.f32 %v1148
        %v1181 = vcvt.s32.f32 %v1149
        %v1182 = vcvt.s32.f32 %v1150
        %v1183 = vcvt.s32.f32 %v1151
        %v1184 = vcvt.s32.f32 %v1152
        %v1185 = vcvt.s32.f32 %v1153
        %v1186 = vcvt.s32.f32 %v1154
        %v1187 = vcvt.s32.f32 %v1155
        %v1188 = vcvt.s32.f32 %v1156
        %v1189 = vcvt.s32.f32 %v1157
        %v1190 = vcvt.s32.f32 %v1158
        %v1191 = vcvt.s32.f32 %v1159
        %v1192 = vcvt.s32.f32 %v1160
        %v1193 = vcvt.s32.f32 %v1161
        %v1194 = vcvt.s32.f32 %v1162
        %v1195 = vcvt.s32.f32 %v1163
        %vm1196 = vcmp.eq.s32.totalorder %v1068, 1
        %vm1197 = vcmp.eq.s32.totalorder %v1069, 1
        %vm1198 = vcmp.eq.s32.totalorder %v1070, 1
        %vm1199 = vcmp.eq.s32.totalorder %v1071, 1
        %vm1200 = vcmp.eq.s32.totalorder %v1072, 1
        %vm1201 = vcmp.eq.s32.totalorder %v1073, 1
        %vm1202 = vcmp.eq.s32.totalorder %v1074, 1
        %vm1203 = vcmp.eq.s32.totalorder %v1075, 1
        %vm1204 = vcmp.eq.s32.totalorder %v1076, 1
        %vm1205 = vcmp.eq.s32.totalorder %v1077, 1
        %vm1206 = vcmp.eq.s32.totalorder %v1078, 1
        %vm1207 = vcmp.eq.s32.totalorder %v1079, 1
        %vm1208 = vcmp.eq.s32.totalorder %v1080, 1
        %vm1209 = vcmp.eq.s32.totalorder %v1081, 1
        %vm1210 = vcmp.eq.s32.totalorder %v1082, 1
        %vm1211 = vcmp.eq.s32.totalorder %v1083, 1
        %vm1212 = vcmp.eq.s32.totalorder %v1084, 1
        %vm1213 = vcmp.eq.s32.totalorder %v1085, 1
        %vm1214 = vcmp.eq.s32.totalorder %v1086, 1
        %vm1215 = vcmp.eq.s32.totalorder %v1087, 1
        %vm1216 = vcmp.eq.s32.totalorder %v1088, 1
        %vm1217 = vcmp.eq.s32.totalorder %v1089, 1
        %vm1218 = vcmp.eq.s32.totalorder %v1090, 1
        %vm1219 = vcmp.eq.s32.totalorder %v1091, 1
        %vm1220 = vcmp.eq.s32.totalorder %v1092, 1
        %vm1221 = vcmp.eq.s32.totalorder %v1093, 1
        %vm1222 = vcmp.eq.s32.totalorder %v1094, 1
        %vm1223 = vcmp.eq.s32.totalorder %v1095, 1
        %vm1224 = vcmp.eq.s32.totalorder %v1096, 1
        %vm1225 = vcmp.eq.s32.totalorder %v1097, 1
        %vm1226 = vcmp.eq.s32.totalorder %v1098, 1
        %vm1227 = vcmp.eq.s32.totalorder %v1099, 1
        %v1228 = vsel %vm1196, 1, 0
        %v1229 = vsel %vm1197, 1, 0
        %v1230 = vsel %vm1198, 1, 0
        %v1231 = vsel %vm1199, 1, 0
        %v1232 = vsel %vm1200, 1, 0
        %v1233 = vsel %vm1201, 1, 0
        %v1234 = vsel %vm1202, 1, 0
        %v1235 = vsel %vm1203, 1, 0
        %v1236 = vsel %vm1204, 1, 0
        %v1237 = vsel %vm1205, 1, 0
        %v1238 = vsel %vm1206, 1, 0
        %v1239 = vsel %vm1207, 1, 0
        %v1240 = vsel %vm1208, 1, 0
        %v1241 = vsel %vm1209, 1, 0
        %v1242 = vsel %vm1210, 1, 0
        %v1243 = vsel %vm1211, 1, 0
        %v1244 = vsel %vm1212, 1, 0
        %v1245 = vsel %vm1213, 1, 0
        %v1246 = vsel %vm1214, 1, 0
        %v1247 = vsel %vm1215, 1, 0
        %v1248 = vsel %vm1216, 1, 0
        %v1249 = vsel %vm1217, 1, 0
        %v1250 = vsel %vm1218, 1, 0
        %v1251 = vsel %vm1219, 1, 0
        %v1252 = vsel %vm1220, 1, 0
        %v1253 = vsel %vm1221, 1, 0
        %v1254 = vsel %vm1222, 1, 0
        %v1255 = vsel %vm1223, 1, 0
        %v1256 = vsel %vm1224, 1, 0
        %v1257 = vsel %vm1225, 1, 0
        %v1258 = vsel %vm1226, 1, 0
        %v1259 = vsel %vm1227, 1, 0
        %v1260 = vcvt.s32.f32 %v1228
        %v1261 = vcvt.s32.f32 %v1229
        %v1262 = vcvt.s32.f32 %v1230
        %v1263 = vcvt.s32.f32 %v1231
        %v1264 = vcvt.s32.f32 %v1232
        %v1265 = vcvt.s32.f32 %v1233
        %v1266 = vcvt.s32.f32 %v1234
        %v1267 = vcvt.s32.f32 %v1235
        %v1268 = vcvt.s32.f32 %v1236
        %v1269 = vcvt.s32.f32 %v1237
        %v1270 = vcvt.s32.f32 %v1238
        %v1271 = vcvt.s32.f32 %v1239
        %v1272 = vcvt.s32.f32 %v1240
        %v1273 = vcvt.s32.f32 %v1241
        %v1274 = vcvt.s32.f32 %v1242
        %v1275 = vcvt.s32.f32 %v1243
        %v1276 = vcvt.s32.f32 %v1244
        %v1277 = vcvt.s32.f32 %v1245
        %v1278 = vcvt.s32.f32 %v1246
        %v1279 = vcvt.s32.f32 %v1247
        %v1280 = vcvt.s32.f32 %v1248
        %v1281 = vcvt.s32.f32 %v1249
        %v1282 = vcvt.s32.f32 %v1250
        %v1283 = vcvt.s32.f32 %v1251
        %v1284 = vcvt.s32.f32 %v1252
        %v1285 = vcvt.s32.f32 %v1253
        %v1286 = vcvt.s32.f32 %v1254
        %v1287 = vcvt.s32.f32 %v1255
        %v1288 = vcvt.s32.f32 %v1256
        %v1289 = vcvt.s32.f32 %v1257
        %v1290 = vcvt.s32.f32 %v1258
        %v1291 = vcvt.s32.f32 %v1259
        %vm1292 = vcmp.eq.s32.totalorder %v1068, 2
        %vm1293 = vcmp.eq.s32.totalorder %v1069, 2
        %vm1294 = vcmp.eq.s32.totalorder %v1070, 2
        %vm1295 = vcmp.eq.s32.totalorder %v1071, 2
        %vm1296 = vcmp.eq.s32.totalorder %v1072, 2
        %vm1297 = vcmp.eq.s32.totalorder %v1073, 2
        %vm1298 = vcmp.eq.s32.totalorder %v1074, 2
        %vm1299 = vcmp.eq.s32.totalorder %v1075, 2
        %vm1300 = vcmp.eq.s32.totalorder %v1076, 2
        %vm1301 = vcmp.eq.s32.totalorder %v1077, 2
        %vm1302 = vcmp.eq.s32.totalorder %v1078, 2
        %vm1303 = vcmp.eq.s32.totalorder %v1079, 2
        %vm1304 = vcmp.eq.s32.totalorder %v1080, 2
        %vm1305 = vcmp.eq.s32.totalorder %v1081, 2
        %vm1306 = vcmp.eq.s32.totalorder %v1082, 2
        %vm1307 = vcmp.eq.s32.totalorder %v1083, 2
        %vm1308 = vcmp.eq.s32.totalorder %v1084, 2
        %vm1309 = vcmp.eq.s32.totalorder %v1085, 2
        %vm1310 = vcmp.eq.s32.totalorder %v1086, 2
        %vm1311 = vcmp.eq.s32.totalorder %v1087, 2
        %vm1312 = vcmp.eq.s32.totalorder %v1088, 2
        %vm1313 = vcmp.eq.s32.totalorder %v1089, 2
        %vm1314 = vcmp.eq.s32.totalorder %v1090, 2
        %vm1315 = vcmp.eq.s32.totalorder %v1091, 2
        %vm1316 = vcmp.eq.s32.totalorder %v1092, 2
        %vm1317 = vcmp.eq.s32.totalorder %v1093, 2
        %vm1318 = vcmp.eq.s32.totalorder %v1094, 2
        %vm1319 = vcmp.eq.s32.totalorder %v1095, 2
        %vm1320 = vcmp.eq.s32.totalorder %v1096, 2
        %vm1321 = vcmp.eq.s32.totalorder %v1097, 2
        %vm1322 = vcmp.eq.s32.totalorder %v1098, 2
        %vm1323 = vcmp.eq.s32.totalorder %v1099, 2
        %v1324 = vsel %vm1292, 1, 0
        %v1325 = vsel %vm1293, 1, 0
        %v1326 = vsel %vm1294, 1, 0
        %v1327 = vsel %vm1295, 1, 0
        %v1328 = vsel %vm1296, 1, 0
        %v1329 = vsel %vm1297, 1, 0
        %v1330 = vsel %vm1298, 1, 0
        %v1331 = vsel %vm1299, 1, 0
        %v1332 = vsel %vm1300, 1, 0
        %v1333 = vsel %vm1301, 1, 0
        %v1334 = vsel %vm1302, 1, 0
        %v1335 = vsel %vm1303, 1, 0
        %v1336 = vsel %vm1304, 1, 0
        %v1337 = vsel %vm1305, 1, 0
        %v1338 = vsel %vm1306, 1, 0
        %v1339 = vsel %vm1307, 1, 0
        %v1340 = vsel %vm1308, 1, 0
        %v1341 = vsel %vm1309, 1, 0
        %v1342 = vsel %vm1310, 1, 0
        %v1343 = vsel %vm1311, 1, 0
        %v1344 = vsel %vm1312, 1, 0
        %v1345 = vsel %vm1313, 1, 0
        %v1346 = vsel %vm1314, 1, 0
        %v1347 = vsel %vm1315, 1, 0
        %v1348 = vsel %vm1316, 1, 0
        %v1349 = vsel %vm1317, 1, 0
        %v1350 = vsel %vm1318, 1, 0
        %v1351 = vsel %vm1319, 1, 0
        %v1352 = vsel %vm1320, 1, 0
        %v1353 = vsel %vm1321, 1, 0
        %v1354 = vsel %vm1322, 1, 0
        %v1355 = vsel %vm1323, 1, 0
        %v1356 = vcvt.s32.f32 %v1324
        %v1357 = vcvt.s32.f32 %v1325
        %v1358 = vcvt.s32.f32 %v1326
        %v1359 = vcvt.s32.f32 %v1327
        %v1360 = vcvt.s32.f32 %v1328
        %v1361 = vcvt.s32.f32 %v1329
        %v1362 = vcvt.s32.f32 %v1330
        %v1363 = vcvt.s32.f32 %v1331
        %v1364 = vcvt.s32.f32 %v1332
        %v1365 = vcvt.s32.f32 %v1333
        %v1366 = vcvt.s32.f32 %v1334
        %v1367 = vcvt.s32.f32 %v1335
        %v1368 = vcvt.s32.f32 %v1336
        %v1369 = vcvt.s32.f32 %v1337
        %v1370 = vcvt.s32.f32 %v1338
        %v1371 = vcvt.s32.f32 %v1339
        %v1372 = vcvt.s32.f32 %v1340
        %v1373 = vcvt.s32.f32 %v1341
        %v1374 = vcvt.s32.f32 %v1342
        %v1375 = vcvt.s32.f32 %v1343
        %v1376 = vcvt.s32.f32 %v1344
        %v1377 = vcvt.s32.f32 %v1345
        %v1378 = vcvt.s32.f32 %v1346
        %v1379 = vcvt.s32.f32 %v1347
        %v1380 = vcvt.s32.f32 %v1348
        %v1381 = vcvt.s32.f32 %v1349
        %v1382 = vcvt.s32.f32 %v1350
        %v1383 = vcvt.s32.f32 %v1351
        %v1384 = vcvt.s32.f32 %v1352
        %v1385 = vcvt.s32.f32 %v1353
        %v1386 = vcvt.s32.f32 %v1354
        %v1387 = vcvt.s32.f32 %v1355
        %vm1388 = vcmp.eq.s32.totalorder %v1068, 3
        %vm1389 = vcmp.eq.s32.totalorder %v1069, 3
        %vm1390 = vcmp.eq.s32.totalorder %v1070, 3
        %vm1391 = vcmp.eq.s32.totalorder %v1071, 3
        %vm1392 = vcmp.eq.s32.totalorder %v1072, 3
        %vm1393 = vcmp.eq.s32.totalorder %v1073, 3
        %vm1394 = vcmp.eq.s32.totalorder %v1074, 3
        %vm1395 = vcmp.eq.s32.totalorder %v1075, 3
        %vm1396 = vcmp.eq.s32.totalorder %v1076, 3
        %vm1397 = vcmp.eq.s32.totalorder %v1077, 3
        %vm1398 = vcmp.eq.s32.totalorder %v1078, 3
        %vm1399 = vcmp.eq.s32.totalorder %v1079, 3
        %vm1400 = vcmp.eq.s32.totalorder %v1080, 3
        %vm1401 = vcmp.eq.s32.totalorder %v1081, 3
        %vm1402 = vcmp.eq.s32.totalorder %v1082, 3
        %vm1403 = vcmp.eq.s32.totalorder %v1083, 3
        %vm1404 = vcmp.eq.s32.totalorder %v1084, 3
        %vm1405 = vcmp.eq.s32.totalorder %v1085, 3
        %vm1406 = vcmp.eq.s32.totalorder %v1086, 3
        %vm1407 = vcmp.eq.s32.totalorder %v1087, 3
        %vm1408 = vcmp.eq.s32.totalorder %v1088, 3
        %vm1409 = vcmp.eq.s32.totalorder %v1089, 3
        %vm1410 = vcmp.eq.s32.totalorder %v1090, 3
        %vm1411 = vcmp.eq.s32.totalorder %v1091, 3
        %vm1412 = vcmp.eq.s32.totalorder %v1092, 3
        %vm1413 = vcmp.eq.s32.totalorder %v1093, 3
        %vm1414 = vcmp.eq.s32.totalorder %v1094, 3
        %vm1415 = vcmp.eq.s32.totalorder %v1095, 3
        %vm1416 = vcmp.eq.s32.totalorder %v1096, 3
        %vm1417 = vcmp.eq.s32.totalorder %v1097, 3
        %vm1418 = vcmp.eq.s32.totalorder %v1098, 3
        %vm1419 = vcmp.eq.s32.totalorder %v1099, 3
        %v1420 = vsel %vm1388, 1, 0
        %v1421 = vsel %vm1389, 1, 0
        %v1422 = vsel %vm1390, 1, 0
        %v1423 = vsel %vm1391, 1, 0
        %v1424 = vsel %vm1392, 1, 0
        %v1425 = vsel %vm1393, 1, 0
        %v1426 = vsel %vm1394, 1, 0
        %v1427 = vsel %vm1395, 1, 0
        %v1428 = vsel %vm1396, 1, 0
        %v1429 = vsel %vm1397, 1, 0
        %v1430 = vsel %vm1398, 1, 0
        %v1431 = vsel %vm1399, 1, 0
        %v1432 = vsel %vm1400, 1, 0
        %v1433 = vsel %vm1401, 1, 0
        %v1434 = vsel %vm1402, 1, 0
        %v1435 = vsel %vm1403, 1, 0
        %v1436 = vsel %vm1404, 1, 0
        %v1437 = vsel %vm1405, 1, 0
        %v1438 = vsel %vm1406, 1, 0
        %v1439 = vsel %vm1407, 1, 0
        %v1440 = vsel %vm1408, 1, 0
        %v1441 = vsel %vm1409, 1, 0
        %v1442 = vsel %vm1410, 1, 0
        %v1443 = vsel %vm1411, 1, 0
        %v1444 = vsel %vm1412, 1, 0
        %v1445 = vsel %vm1413, 1, 0
        %v1446 = vsel %vm1414, 1, 0
        %v1447 = vsel %vm1415, 1, 0
        %v1448 = vsel %vm1416, 1, 0
        %v1449 = vsel %vm1417, 1, 0
        %v1450 = vsel %vm1418, 1, 0
        %v1451 = vsel %vm1419, 1, 0
        %v1452 = vcvt.s32.f32 %v1420
        %v1453 = vcvt.s32.f32 %v1421
        %v1454 = vcvt.s32.f32 %v1422
        %v1455 = vcvt.s32.f32 %v1423
        %v1456 = vcvt.s32.f32 %v1424
        %v1457 = vcvt.s32.f32 %v1425
        %v1458 = vcvt.s32.f32 %v1426
        %v1459 = vcvt.s32.f32 %v1427
        %v1460 = vcvt.s32.f32 %v1428
        %v1461 = vcvt.s32.f32 %v1429
        %v1462 = vcvt.s32.f32 %v1430
        %v1463 = vcvt.s32.f32 %v1431
        %v1464 = vcvt.s32.f32 %v1432
        %v1465 = vcvt.s32.f32 %v1433
        %v1466 = vcvt.s32.f32 %v1434
        %v1467 = vcvt.s32.f32 %v1435
        %v1468 = vcvt.s32.f32 %v1436
        %v1469 = vcvt.s32.f32 %v1437
        %v1470 = vcvt.s32.f32 %v1438
        %v1471 = vcvt.s32.f32 %v1439
        %v1472 = vcvt.s32.f32 %v1440
        %v1473 = vcvt.s32.f32 %v1441
        %v1474 = vcvt.s32.f32 %v1442
        %v1475 = vcvt.s32.f32 %v1443
        %v1476 = vcvt.s32.f32 %v1444
        %v1477 = vcvt.s32.f32 %v1445
        %v1478 = vcvt.s32.f32 %v1446
        %v1479 = vcvt.s32.f32 %v1447
        %v1480 = vcvt.s32.f32 %v1448
        %v1481 = vcvt.s32.f32 %v1449
        %v1482 = vcvt.s32.f32 %v1450
        %v1483 = vcvt.s32.f32 %v1451
        %v1484 = vpack.c.bf16 %v561, %v558
        %v1485 = vpack.c.bf16 %v569, %v566
        %v1486 = vpack.c.bf16 %v577, %v574
        %v1487 = vpack.c.bf16 %v585, %v582
        %v1488 = vpack.c.bf16 %v593, %v590
        %v1489 = vpack.c.bf16 %v601, %v598
        %v1490 = vpack.c.bf16 %v609, %v606
        %v1491 = vpack.c.bf16 %v617, %v614
        %v1492 = vpack.c.bf16 %v625, %v622
        %v1493 = vpack.c.bf16 %v633, %v630
        %v1494 = vpack.c.bf16 %v641, %v638
        %v1495 = vpack.c.bf16 %v649, %v646
        %v1496 = vpack.c.bf16 %v657, %v654
        %v1497 = vpack.c.bf16 %v665, %v662
        %v1498 = vpack.c.bf16 %v673, %v670
        %v1499 = vpack.c.bf16 %v681, %v678
        %s1500 = sld [smem:[#allocation14]]
        %v1501 = vstv %s1500
        %v1502 = vmul.f32 %v1260, %v1501
        %v1503 = vmul.f32 %v1261, %v1501
        %v1504 = vmul.f32 %v1262, %v1501
        %v1505 = vmul.f32 %v1263, %v1501
        %v1506 = vmul.f32 %v1264, %v1501
        %v1507 = vmul.f32 %v1265, %v1501
        %v1508 = vmul.f32 %v1266, %v1501
        %v1509 = vmul.f32 %v1267, %v1501
        %v1510 = vmul.f32 %v1268, %v1501
        %v1511 = vmul.f32 %v1269, %v1501
        %v1512 = vmul.f32 %v1270, %v1501
        %v1513 = vmul.f32 %v1271, %v1501
        %v1514 = vmul.f32 %v1272, %v1501
        %v1515 = vmul.f32 %v1273, %v1501
        %v1516 = vmul.f32 %v1274, %v1501
        %v1517 = vmul.f32 %v1275, %v1501
        %v1518 = vmul.f32 %v1276, %v1501
        %v1519 = vmul.f32 %v1277, %v1501
        %v1520 = vmul.f32 %v1278, %v1501
        %v1521 = vmul.f32 %v1279, %v1501
        %v1522 = vmul.f32 %v1280, %v1501
        %v1523 = vmul.f32 %v1281, %v1501
        %v1524 = vmul.f32 %v1282, %v1501
        %v1525 = vmul.f32 %v1283, %v1501
        %v1526 = vmul.f32 %v1284, %v1501
        %v1527 = vmul.f32 %v1285, %v1501
        %v1528 = vmul.f32 %v1286, %v1501
        %v1529 = vmul.f32 %v1287, %v1501
        %v1530 = vmul.f32 %v1288, %v1501
        %v1531 = vmul.f32 %v1289, %v1501
        %v1532 = vmul.f32 %v1290, %v1501
        %v1533 = vmul.f32 %v1291, %v1501
        %s1534 = sld [smem:[#allocation14 + $0x80]]
        %v1535 = vstv %s1534
        %v1536 = vmul.f32 %v1356, %v1535
        %v1537 = vmul.f32 %v1357, %v1535
        %v1538 = vmul.f32 %v1358, %v1535
        %v1539 = vmul.f32 %v1359, %v1535
        %v1540 = vmul.f32 %v1360, %v1535
        %v1541 = vmul.f32 %v1361, %v1535
        %v1542 = vmul.f32 %v1362, %v1535
        %v1543 = vmul.f32 %v1363, %v1535
        %v1544 = vmul.f32 %v1364, %v1535
        %v1545 = vmul.f32 %v1365, %v1535
        %v1546 = vmul.f32 %v1366, %v1535
        %v1547 = vmul.f32 %v1367, %v1535
        %v1548 = vmul.f32 %v1368, %v1535
        %v1549 = vmul.f32 %v1369, %v1535
        %v1550 = vmul.f32 %v1370, %v1535
        %v1551 = vmul.f32 %v1371, %v1535
        %v1552 = vmul.f32 %v1372, %v1535
        %v1553 = vmul.f32 %v1373, %v1535
        %v1554 = vmul.f32 %v1374, %v1535
        %v1555 = vmul.f32 %v1375, %v1535
        %v1556 = vmul.f32 %v1376, %v1535
        %v1557 = vmul.f32 %v1377, %v1535
        %v1558 = vmul.f32 %v1378, %v1535
        %v1559 = vmul.f32 %v1379, %v1535
        %v1560 = vmul.f32 %v1380, %v1535
        %v1561 = vmul.f32 %v1381, %v1535
        %v1562 = vmul.f32 %v1382, %v1535
        %v1563 = vmul.f32 %v1383, %v1535
        %v1564 = vmul.f32 %v1384, %v1535
        %v1565 = vmul.f32 %v1385, %v1535
        %v1566 = vmul.f32 %v1386, %v1535
        %v1567 = vmul.f32 %v1387, %v1535
        %v1568 = vadd.f32 %v1502, %v1536
        %v1569 = vadd.f32 %v1503, %v1537
        %v1570 = vadd.f32 %v1504, %v1538
        %v1571 = vadd.f32 %v1505, %v1539
        %v1572 = vadd.f32 %v1506, %v1540
        %v1573 = vadd.f32 %v1507, %v1541
        %v1574 = vadd.f32 %v1508, %v1542
        %v1575 = vadd.f32 %v1509, %v1543
        %v1576 = vadd.f32 %v1510, %v1544
        %v1577 = vadd.f32 %v1511, %v1545
        %v1578 = vadd.f32 %v1512, %v1546
        %v1579 = vadd.f32 %v1513, %v1547
        %v1580 = vadd.f32 %v1514, %v1548
        %v1581 = vadd.f32 %v1515, %v1549
        %v1582 = vadd.f32 %v1516, %v1550
        %v1583 = vadd.f32 %v1517, %v1551
        %v1584 = vadd.f32 %v1518, %v1552
        %v1585 = vadd.f32 %v1519, %v1553
        %v1586 = vadd.f32 %v1520, %v1554
        %v1587 = vadd.f32 %v1521, %v1555
        %v1588 = vadd.f32 %v1522, %v1556
        %v1589 = vadd.f32 %v1523, %v1557
        %v1590 = vadd.f32 %v1524, %v1558
        %v1591 = vadd.f32 %v1525, %v1559
        %v1592 = vadd.f32 %v1526, %v1560
        %v1593 = vadd.f32 %v1527, %v1561
        %v1594 = vadd.f32 %v1528, %v1562
        %v1595 = vadd.f32 %v1529, %v1563
        %v1596 = vadd.f32 %v1530, %v1564
        %v1597 = vadd.f32 %v1531, %v1565
        %v1598 = vadd.f32 %v1532, %v1566
        %v1599 = vadd.f32 %v1533, %v1567
        %s1600 = sld [smem:[#allocation14 + $0x100]]
        %v1601 = vstv %s1600
        %v1602 = vmul.f32 %v1452, %v1601
        %v1603 = vmul.f32 %v1453, %v1601
        %v1604 = vmul.f32 %v1454, %v1601
        %v1605 = vmul.f32 %v1455, %v1601
        %v1606 = vmul.f32 %v1456, %v1601
        %v1607 = vmul.f32 %v1457, %v1601
        %v1608 = vmul.f32 %v1458, %v1601
        %v1609 = vmul.f32 %v1459, %v1601
        %v1610 = vmul.f32 %v1460, %v1601
        %v1611 = vmul.f32 %v1461, %v1601
        %v1612 = vmul.f32 %v1462, %v1601
        %v1613 = vmul.f32 %v1463, %v1601
        %v1614 = vmul.f32 %v1464, %v1601
        %v1615 = vmul.f32 %v1465, %v1601
        %v1616 = vmul.f32 %v1466, %v1601
        %v1617 = vmul.f32 %v1467, %v1601
        %v1618 = vmul.f32 %v1468, %v1601
        %v1619 = vmul.f32 %v1469, %v1601
        %v1620 = vmul.f32 %v1470, %v1601
        %v1621 = vmul.f32 %v1471, %v1601
        %v1622 = vmul.f32 %v1472, %v1601
        %v1623 = vmul.f32 %v1473, %v1601
        %v1624 = vmul.f32 %v1474, %v1601
        %v1625 = vmul.f32 %v1475, %v1601
        %v1626 = vmul.f32 %v1476, %v1601
        %v1627 = vmul.f32 %v1477, %v1601
        %v1628 = vmul.f32 %v1478, %v1601
        %v1629 = vmul.f32 %v1479, %v1601
        %v1630 = vmul.f32 %v1480, %v1601
        %v1631 = vmul.f32 %v1481, %v1601
        %v1632 = vmul.f32 %v1482, %v1601
        %v1633 = vmul.f32 %v1483, %v1601
        %v1634 = vadd.f32 %v1568, %v1602
        %v1635 = vadd.f32 %v1569, %v1603
        %v1636 = vadd.f32 %v1570, %v1604
        %v1637 = vadd.f32 %v1571, %v1605
        %v1638 = vadd.f32 %v1572, %v1606
        %v1639 = vadd.f32 %v1573, %v1607
        %v1640 = vadd.f32 %v1574, %v1608
        %v1641 = vadd.f32 %v1575, %v1609
        %v1642 = vadd.f32 %v1576, %v1610
        %v1643 = vadd.f32 %v1577, %v1611
        %v1644 = vadd.f32 %v1578, %v1612
        %v1645 = vadd.f32 %v1579, %v1613
        %v1646 = vadd.f32 %v1580, %v1614
        %v1647 = vadd.f32 %v1581, %v1615
        %v1648 = vadd.f32 %v1582, %v1616
        %v1649 = vadd.f32 %v1583, %v1617
        %v1650 = vadd.f32 %v1584, %v1618
        %v1651 = vadd.f32 %v1585, %v1619
        %v1652 = vadd.f32 %v1586, %v1620
        %v1653 = vadd.f32 %v1587, %v1621
        %v1654 = vadd.f32 %v1588, %v1622
        %v1655 = vadd.f32 %v1589, %v1623
        %v1656 = vadd.f32 %v1590, %v1624
        %v1657 = vadd.f32 %v1591, %v1625
        %v1658 = vadd.f32 %v1592, %v1626
        %v1659 = vadd.f32 %v1593, %v1627
        %v1660 = vadd.f32 %v1594, %v1628
        %v1661 = vadd.f32 %v1595, %v1629
        %v1662 = vadd.f32 %v1596, %v1630
        %v1663 = vadd.f32 %v1597, %v1631
        %v1664 = vadd.f32 %v1598, %v1632
        %v1665 = vadd.f32 %v1599, %v1633
        %1667 = vset.pattern.permute.xlu0 0
        %1668 = vperm.xlu0 %1667, %v990
        %v1669 = vpop.permute.xlu0 %1668
        %1672 = vset.pattern.permute.xlu0 0
        %1673 = vperm.xlu0 %1672, %v995
        %v1674 = vpop.permute.xlu0 %1673
        %1677 = vset.pattern.permute.xlu0 0
        %1678 = vperm.xlu0 %1677, %v1000
        %v1679 = vpop.permute.xlu0 %1678
        %1682 = vset.pattern.permute.xlu0 0
        %1683 = vperm.xlu0 %1682, %v1005
        %v1684 = vpop.permute.xlu0 %1683
        %1687 = vset.pattern.permute.xlu0 0
        %1688 = vperm.xlu0 %1687, %v1010
        %v1689 = vpop.permute.xlu0 %1688
        %1692 = vset.pattern.permute.xlu0 0
        %1693 = vperm.xlu0 %1692, %v1015
        %v1694 = vpop.permute.xlu0 %1693
        %1697 = vset.pattern.permute.xlu0 0
        %1698 = vperm.xlu0 %1697, %v1020
        %v1699 = vpop.permute.xlu0 %1698
        %1702 = vset.pattern.permute.xlu0 0
        %1703 = vperm.xlu0 %1702, %v1025
        %v1704 = vpop.permute.xlu0 %1703
        %1707 = vset.pattern.permute.xlu0 0
        %1708 = vperm.xlu0 %1707, %v1030
        %v1709 = vpop.permute.xlu0 %1708
        %1712 = vset.pattern.permute.xlu0 0
        %1713 = vperm.xlu0 %1712, %v1035
        %v1714 = vpop.permute.xlu0 %1713
        %1717 = vset.pattern.permute.xlu0 0
        %1718 = vperm.xlu0 %1717, %v1040
        %v1719 = vpop.permute.xlu0 %1718
        %1722 = vset.pattern.permute.xlu0 0
        %1723 = vperm.xlu0 %1722, %v1045
        %v1724 = vpop.permute.xlu0 %1723
        %1727 = vset.pattern.permute.xlu0 0
        %1728 = vperm.xlu0 %1727, %v1050
        %v1729 = vpop.permute.xlu0 %1728
        %1732 = vset.pattern.permute.xlu0 0
        %1733 = vperm.xlu0 %1732, %v1055
        %v1734 = vpop.permute.xlu0 %1733
        %1737 = vset.pattern.permute.xlu0 0
        %1738 = vperm.xlu0 %1737, %v1060
        %v1739 = vpop.permute.xlu0 %1738
        %1742 = vset.pattern.permute.xlu0 0
        %1743 = vperm.xlu0 %1742, %v1065
        %v1744 = vpop.permute.xlu0 %1743
        %v1746 = vlaneseq
        %v1747 = vshrl.u32 %v1746, 7
        %v1748 = vsub.s32 0, %v1747
        %v1749 = vrot.slane %v851, %v1748
        %v1750 = vlaneseq
        %v1751 = vshrl.u32 %v1750, 7
        %v1752 = vsub.s32 0, %v1751
        %v1753 = vrot.slane %v853, %v1752
        %v1754 = vadd.f32 %v1669, %v1749
        %v1755 = vadd.f32 %v1669, %v1753
        %v1756 = vadd.f32 %v1674, %v1749
        %v1757 = vadd.f32 %v1674, %v1753
        %v1758 = vadd.f32 %v1679, %v1749
        %v1759 = vadd.f32 %v1679, %v1753
        %v1760 = vadd.f32 %v1684, %v1749
        %v1761 = vadd.f32 %v1684, %v1753
        %v1762 = vadd.f32 %v1689, %v1749
        %v1763 = vadd.f32 %v1689, %v1753
        %v1764 = vadd.f32 %v1694, %v1749
        %v1765 = vadd.f32 %v1694, %v1753
        %v1766 = vadd.f32 %v1699, %v1749
        %v1767 = vadd.f32 %v1699, %v1753
        %v1768 = vadd.f32 %v1704, %v1749
        %v1769 = vadd.f32 %v1704, %v1753
        %v1770 = vadd.f32 %v1709, %v1749
        %v1771 = vadd.f32 %v1709, %v1753
        %v1772 = vadd.f32 %v1714, %v1749
        %v1773 = vadd.f32 %v1714, %v1753
        %v1774 = vadd.f32 %v1719, %v1749
        %v1775 = vadd.f32 %v1719, %v1753
        %v1776 = vadd.f32 %v1724, %v1749
        %v1777 = vadd.f32 %v1724, %v1753
        %v1778 = vadd.f32 %v1729, %v1749
        %v1779 = vadd.f32 %v1729, %v1753
        %v1780 = vadd.f32 %v1734, %v1749
        %v1781 = vadd.f32 %v1734, %v1753
        %v1782 = vadd.f32 %v1739, %v1749
        %v1783 = vadd.f32 %v1739, %v1753
        %v1784 = vadd.f32 %v1744, %v1749
        %v1785 = vadd.f32 %v1744, %v1753
        %v1786 = vadd.f32 %v1754, %v1634
        %v1787 = vadd.f32 %v1755, %v1635
        %v1788 = vadd.f32 %v1756, %v1636
        %v1789 = vadd.f32 %v1757, %v1637
        %v1790 = vadd.f32 %v1758, %v1638
        %v1791 = vadd.f32 %v1759, %v1639
        %v1792 = vadd.f32 %v1760, %v1640
        %v1793 = vadd.f32 %v1761, %v1641
        %v1794 = vadd.f32 %v1762, %v1642
        %v1795 = vadd.f32 %v1763, %v1643
        %v1796 = vadd.f32 %v1764, %v1644
        %v1797 = vadd.f32 %v1765, %v1645
        %v1798 = vadd.f32 %v1766, %v1646
        %v1799 = vadd.f32 %v1767, %v1647
        %v1800 = vadd.f32 %v1768, %v1648
        %v1801 = vadd.f32 %v1769, %v1649
        %v1802 = vadd.f32 %v1770, %v1650
        %v1803 = vadd.f32 %v1771, %v1651
        %v1804 = vadd.f32 %v1772, %v1652
        %v1805 = vadd.f32 %v1773, %v1653
        %v1806 = vadd.f32 %v1774, %v1654
        %v1807 = vadd.f32 %v1775, %v1655
        %v1808 = vadd.f32 %v1776, %v1656
        %v1809 = vadd.f32 %v1777, %v1657
        %v1810 = vadd.f32 %v1778, %v1658
        %v1811 = vadd.f32 %v1779, %v1659
        %v1812 = vadd.f32 %v1780, %v1660
        %v1813 = vadd.f32 %v1781, %v1661
        %v1814 = vadd.f32 %v1782, %v1662
        %v1815 = vadd.f32 %v1783, %v1663
        %v1816 = vadd.f32 %v1784, %v1664
        %v1817 = vadd.f32 %v1785, %v1665
        %vm1818 = vcmp.ge.f32.partialorder %v1786, 0.0
        %vm1819 = vcmp.ge.f32.partialorder %v1787, 0.0
        %vm1820 = vcmp.ge.f32.partialorder %v1788, 0.0
        %vm1821 = vcmp.ge.f32.partialorder %v1789, 0.0
        %vm1822 = vcmp.ge.f32.partialorder %v1790, 0.0
        %vm1823 = vcmp.ge.f32.partialorder %v1791, 0.0
        %vm1824 = vcmp.ge.f32.partialorder %v1792, 0.0
        %vm1825 = vcmp.ge.f32.partialorder %v1793, 0.0
        %vm1826 = vcmp.ge.f32.partialorder %v1794, 0.0
        %vm1827 = vcmp.ge.f32.partialorder %v1795, 0.0
        %vm1828 = vcmp.ge.f32.partialorder %v1796, 0.0
        %vm1829 = vcmp.ge.f32.partialorder %v1797, 0.0
        %vm1830 = vcmp.ge.f32.partialorder %v1798, 0.0
        %vm1831 = vcmp.ge.f32.partialorder %v1799, 0.0
        %vm1832 = vcmp.ge.f32.partialorder %v1800, 0.0
        %vm1833 = vcmp.ge.f32.partialorder %v1801, 0.0
        %vm1834 = vcmp.ge.f32.partialorder %v1802, 0.0
        %vm1835 = vcmp.ge.f32.partialorder %v1803, 0.0
        %vm1836 = vcmp.ge.f32.partialorder %v1804, 0.0
        %vm1837 = vcmp.ge.f32.partialorder %v1805, 0.0
        %vm1838 = vcmp.ge.f32.partialorder %v1806, 0.0
        %vm1839 = vcmp.ge.f32.partialorder %v1807, 0.0
        %vm1840 = vcmp.ge.f32.partialorder %v1808, 0.0
        %vm1841 = vcmp.ge.f32.partialorder %v1809, 0.0
        %vm1842 = vcmp.ge.f32.partialorder %v1810, 0.0
        %vm1843 = vcmp.ge.f32.partialorder %v1811, 0.0
        %vm1844 = vcmp.ge.f32.partialorder %v1812, 0.0
        %vm1845 = vcmp.ge.f32.partialorder %v1813, 0.0
        %vm1846 = vcmp.ge.f32.partialorder %v1814, 0.0
        %vm1847 = vcmp.ge.f32.partialorder %v1815, 0.0
        %vm1848 = vcmp.ge.f32.partialorder %v1816, 0.0
        %vm1849 = vcmp.ge.f32.partialorder %v1817, 0.0
        %v1850 = vmul.f32 %v1786, 0.2
        %v1851 = vmul.f32 %v1787, 0.2
        %v1852 = vmul.f32 %v1788, 0.2
        %v1853 = vmul.f32 %v1789, 0.2
        %v1854 = vmul.f32 %v1790, 0.2
        %v1855 = vmul.f32 %v1791, 0.2
        %v1856 = vmul.f32 %v1792, 0.2
        %v1857 = vmul.f32 %v1793, 0.2
        %v1858 = vmul.f32 %v1794, 0.2
        %v1859 = vmul.f32 %v1795, 0.2
        %v1860 = vmul.f32 %v1796, 0.2
        %v1861 = vmul.f32 %v1797, 0.2
        %v1862 = vmul.f32 %v1798, 0.2
        %v1863 = vmul.f32 %v1799, 0.2
        %v1864 = vmul.f32 %v1800, 0.2
        %v1865 = vmul.f32 %v1801, 0.2
        %v1866 = vmul.f32 %v1802, 0.2
        %v1867 = vmul.f32 %v1803, 0.2
        %v1868 = vmul.f32 %v1804, 0.2
        %v1869 = vmul.f32 %v1805, 0.2
        %v1870 = vmul.f32 %v1806, 0.2
        %v1871 = vmul.f32 %v1807, 0.2
        %v1872 = vmul.f32 %v1808, 0.2
        %v1873 = vmul.f32 %v1809, 0.2
        %v1874 = vmul.f32 %v1810, 0.2
        %v1875 = vmul.f32 %v1811, 0.2
        %v1876 = vmul.f32 %v1812, 0.2
        %v1877 = vmul.f32 %v1813, 0.2
        %v1878 = vmul.f32 %v1814, 0.2
        %v1879 = vmul.f32 %v1815, 0.2
        %v1880 = vmul.f32 %v1816, 0.2
        %v1881 = vmul.f32 %v1817, 0.2
        %v1882 = vsel %vm1818, %v1786, %v1850
        %v1883 = vsel %vm1819, %v1787, %v1851
        %v1884 = vsel %vm1820, %v1788, %v1852
        %v1885 = vsel %vm1821, %v1789, %v1853
        %v1886 = vsel %vm1822, %v1790, %v1854
        %v1887 = vsel %vm1823, %v1791, %v1855
        %v1888 = vsel %vm1824, %v1792, %v1856
        %v1889 = vsel %vm1825, %v1793, %v1857
        %v1890 = vsel %vm1826, %v1794, %v1858
        %v1891 = vsel %vm1827, %v1795, %v1859
        %v1892 = vsel %vm1828, %v1796, %v1860
        %v1893 = vsel %vm1829, %v1797, %v1861
        %v1894 = vsel %vm1830, %v1798, %v1862
        %v1895 = vsel %vm1831, %v1799, %v1863
        %v1896 = vsel %vm1832, %v1800, %v1864
        %v1897 = vsel %vm1833, %v1801, %v1865
        %v1898 = vsel %vm1834, %v1802, %v1866
        %v1899 = vsel %vm1835, %v1803, %v1867
        %v1900 = vsel %vm1836, %v1804, %v1868
        %v1901 = vsel %vm1837, %v1805, %v1869
        %v1902 = vsel %vm1838, %v1806, %v1870
        %v1903 = vsel %vm1839, %v1807, %v1871
        %v1904 = vsel %vm1840, %v1808, %v1872
        %v1905 = vsel %vm1841, %v1809, %v1873
        %v1906 = vsel %vm1842, %v1810, %v1874
        %v1907 = vsel %vm1843, %v1811, %v1875
        %v1908 = vsel %vm1844, %v1812, %v1876
        %v1909 = vsel %vm1845, %v1813, %v1877
        %v1910 = vsel %vm1846, %v1814, %v1878
        %v1911 = vsel %vm1847, %v1815, %v1879
        %v1912 = vsel %vm1848, %v1816, %v1880
        %v1913 = vsel %vm1849, %v1817, %v1881
        %v1914 = vsel %vm1100, %v1882, -1e+30
        %v1915 = vsel %vm1101, %v1883, -1e+30
        %v1916 = vsel %vm1102, %v1884, -1e+30
        %v1917 = vsel %vm1103, %v1885, -1e+30
        %v1918 = vsel %vm1104, %v1886, -1e+30
        %v1919 = vsel %vm1105, %v1887, -1e+30
        %v1920 = vsel %vm1106, %v1888, -1e+30
        %v1921 = vsel %vm1107, %v1889, -1e+30
        %v1922 = vsel %vm1108, %v1890, -1e+30
        %v1923 = vsel %vm1109, %v1891, -1e+30
        %v1924 = vsel %vm1110, %v1892, -1e+30
        %v1925 = vsel %vm1111, %v1893, -1e+30
        %v1926 = vsel %vm1112, %v1894, -1e+30
        %v1927 = vsel %vm1113, %v1895, -1e+30
        %v1928 = vsel %vm1114, %v1896, -1e+30
        %v1929 = vsel %vm1115, %v1897, -1e+30
        %v1930 = vsel %vm1116, %v1898, -1e+30
        %v1931 = vsel %vm1117, %v1899, -1e+30
        %v1932 = vsel %vm1118, %v1900, -1e+30
        %v1933 = vsel %vm1119, %v1901, -1e+30
        %v1934 = vsel %vm1120, %v1902, -1e+30
        %v1935 = vsel %vm1121, %v1903, -1e+30
        %v1936 = vsel %vm1122, %v1904, -1e+30
        %v1937 = vsel %vm1123, %v1905, -1e+30
        %v1938 = vsel %vm1124, %v1906, -1e+30
        %v1939 = vsel %vm1125, %v1907, -1e+30
        %v1940 = vsel %vm1126, %v1908, -1e+30
        %v1941 = vsel %vm1127, %v1909, -1e+30
        %v1942 = vsel %vm1128, %v1910, -1e+30
        %v1943 = vsel %vm1129, %v1911, -1e+30
        %v1944 = vsel %vm1130, %v1912, -1e+30
        %v1945 = vsel %vm1131, %v1913, -1e+30
        %v1946 = vmax.f32 %v1914, %v1915
        %1947 = vmax.xlane.f32.xlu0 %v1946
        %v1948 = vpop.xlane.xlu0 %1947
        %v1949 = vmax.f32 %v1916, %v1917
        %1950 = vmax.xlane.f32.xlu0 %v1949
        %v1951 = vpop.xlane.xlu0 %1950
        %v1952 = vmax.f32 %v1918, %v1919
        %1953 = vmax.xlane.f32.xlu0 %v1952
        %v1954 = vpop.xlane.xlu0 %1953
        %v1955 = vmax.f32 %v1920, %v1921
        %1956 = vmax.xlane.f32.xlu0 %v1955
        %v1957 = vpop.xlane.xlu0 %1956
        %v1958 = vmax.f32 %v1922, %v1923
        %1959 = vmax.xlane.f32.xlu0 %v1958
        %v1960 = vpop.xlane.xlu0 %1959
        %v1961 = vmax.f32 %v1924, %v1925
        %1962 = vmax.xlane.f32.xlu0 %v1961
        %v1963 = vpop.xlane.xlu0 %1962
        %v1964 = vmax.f32 %v1926, %v1927
        %1965 = vmax.xlane.f32.xlu0 %v1964
        %v1966 = vpop.xlane.xlu0 %1965
        %v1967 = vmax.f32 %v1928, %v1929
        %1968 = vmax.xlane.f32.xlu0 %v1967
        %v1969 = vpop.xlane.xlu0 %1968
        %v1970 = vmax.f32 %v1930, %v1931
        %1971 = vmax.xlane.f32.xlu0 %v1970
        %v1972 = vpop.xlane.xlu0 %1971
        %v1973 = vmax.f32 %v1932, %v1933
        %1974 = vmax.xlane.f32.xlu0 %v1973
        %v1975 = vpop.xlane.xlu0 %1974
        %v1976 = vmax.f32 %v1934, %v1935
        %1977 = vmax.xlane.f32.xlu0 %v1976
        %v1978 = vpop.xlane.xlu0 %1977
        %v1979 = vmax.f32 %v1936, %v1937
        %1980 = vmax.xlane.f32.xlu0 %v1979
        %v1981 = vpop.xlane.xlu0 %1980
        %v1982 = vmax.f32 %v1938, %v1939
        %1983 = vmax.xlane.f32.xlu0 %v1982
        %v1984 = vpop.xlane.xlu0 %1983
        %v1985 = vmax.f32 %v1940, %v1941
        %1986 = vmax.xlane.f32.xlu0 %v1985
        %v1987 = vpop.xlane.xlu0 %1986
        %v1988 = vmax.f32 %v1942, %v1943
        %1989 = vmax.xlane.f32.xlu0 %v1988
        %v1990 = vpop.xlane.xlu0 %1989
        %v1991 = vmax.f32 %v1944, %v1945
        %1992 = vmax.xlane.f32.xlu0 %v1991
        %v1993 = vpop.xlane.xlu0 %1992
        %v1994 = vsub.f32 %v1914, %v1948
        %v1995 = vsub.f32 %v1915, %v1948
        %v1996 = vsub.f32 %v1916, %v1951
        %v1997 = vsub.f32 %v1917, %v1951
        %v1998 = vsub.f32 %v1918, %v1954
        %v1999 = vsub.f32 %v1919, %v1954
        %v2000 = vsub.f32 %v1920, %v1957
        %v2001 = vsub.f32 %v1921, %v1957
        %v2002 = vsub.f32 %v1922, %v1960
        %v2003 = vsub.f32 %v1923, %v1960
        %v2004 = vsub.f32 %v1924, %v1963
        %v2005 = vsub.f32 %v1925, %v1963
        %v2006 = vsub.f32 %v1926, %v1966
        %v2007 = vsub.f32 %v1927, %v1966
        %v2008 = vsub.f32 %v1928, %v1969
        %v2009 = vsub.f32 %v1929, %v1969
        %v2010 = vsub.f32 %v1930, %v1972
        %v2011 = vsub.f32 %v1931, %v1972
        %v2012 = vsub.f32 %v1932, %v1975
        %v2013 = vsub.f32 %v1933, %v1975
        %v2014 = vsub.f32 %v1934, %v1978
        %v2015 = vsub.f32 %v1935, %v1978
        %v2016 = vsub.f32 %v1936, %v1981
        %v2017 = vsub.f32 %v1937, %v1981
        %v2018 = vsub.f32 %v1938, %v1984
        %v2019 = vsub.f32 %v1939, %v1984
        %v2020 = vsub.f32 %v1940, %v1987
        %v2021 = vsub.f32 %v1941, %v1987
        %v2022 = vsub.f32 %v1942, %v1990
        %v2023 = vsub.f32 %v1943, %v1990
        %v2024 = vsub.f32 %v1944, %v1993
        %v2025 = vsub.f32 %v1945, %v1993
        %v2026 = vmul.f32 %v1994, 1.442695
        %v2027 = vpow.pop %v2026
        %v2028 = vmul.f32 %v1995, 1.442695
        %v2029 = vpow.pop %v2028
        %v2030 = vmul.f32 %v1996, 1.442695
        %v2031 = vpow.pop %v2030
        %v2032 = vmul.f32 %v1997, 1.442695
        %v2033 = vpow.pop %v2032
        %v2034 = vmul.f32 %v1998, 1.442695
        %v2035 = vpow.pop %v2034
        %v2036 = vmul.f32 %v1999, 1.442695
        %v2037 = vpow.pop %v2036
        %v2038 = vmul.f32 %v2000, 1.442695
        %v2039 = vpow.pop %v2038
        %v2040 = vmul.f32 %v2001, 1.442695
        %v2041 = vpow.pop %v2040
        %v2042 = vmul.f32 %v2002, 1.442695
        %v2043 = vpow.pop %v2042
        %v2044 = vmul.f32 %v2003, 1.442695
        %v2045 = vpow.pop %v2044
        %v2046 = vmul.f32 %v2004, 1.442695
        %v2047 = vpow.pop %v2046
        %v2048 = vmul.f32 %v2005, 1.442695
        %v2049 = vpow.pop %v2048
        %v2050 = vmul.f32 %v2006, 1.442695
        %v2051 = vpow.pop %v2050
        %v2052 = vmul.f32 %v2007, 1.442695
        %v2053 = vpow.pop %v2052
        %v2054 = vmul.f32 %v2008, 1.442695
        %v2055 = vpow.pop %v2054
        %v2056 = vmul.f32 %v2009, 1.442695
        %v2057 = vpow.pop %v2056
        %v2058 = vmul.f32 %v2010, 1.442695
        %v2059 = vpow.pop %v2058
        %v2060 = vmul.f32 %v2011, 1.442695
        %v2061 = vpow.pop %v2060
        %v2062 = vmul.f32 %v2012, 1.442695
        %v2063 = vpow.pop %v2062
        %v2064 = vmul.f32 %v2013, 1.442695
        %v2065 = vpow.pop %v2064
        %v2066 = vmul.f32 %v2014, 1.442695
        %v2067 = vpow.pop %v2066
        %v2068 = vmul.f32 %v2015, 1.442695
        %v2069 = vpow.pop %v2068
        %v2070 = vmul.f32 %v2016, 1.442695
        %v2071 = vpow.pop %v2070
        %v2072 = vmul.f32 %v2017, 1.442695
        %v2073 = vpow.pop %v2072
        %v2074 = vmul.f32 %v2018, 1.442695
        %v2075 = vpow.pop %v2074
        %v2076 = vmul.f32 %v2019, 1.442695
        %v2077 = vpow.pop %v2076
        %v2078 = vmul.f32 %v2020, 1.442695
        %v2079 = vpow.pop %v2078
        %v2080 = vmul.f32 %v2021, 1.442695
        %v2081 = vpow.pop %v2080
        %v2082 = vmul.f32 %v2022, 1.442695
        %v2083 = vpow.pop %v2082
        %v2084 = vmul.f32 %v2023, 1.442695
        %v2085 = vpow.pop %v2084
        %v2086 = vmul.f32 %v2024, 1.442695
        %v2087 = vpow.pop %v2086
        %v2088 = vmul.f32 %v2025, 1.442695
        %v2089 = vpow.pop %v2088
        %v2090 = vmul.f32 %v2027, %v1164
        %v2091 = vmul.f32 %v2029, %v1165
        %v2092 = vmul.f32 %v2031, %v1166
        %v2093 = vmul.f32 %v2033, %v1167
        %v2094 = vmul.f32 %v2035, %v1168
        %v2095 = vmul.f32 %v2037, %v1169
        %v2096 = vmul.f32 %v2039, %v1170
        %v2097 = vmul.f32 %v2041, %v1171
        %v2098 = vmul.f32 %v2043, %v1172
        %v2099 = vmul.f32 %v2045, %v1173
        %v2100 = vmul.f32 %v2047, %v1174
        %v2101 = vmul.f32 %v2049, %v1175
        %v2102 = vmul.f32 %v2051, %v1176
        %v2103 = vmul.f32 %v2053, %v1177
        %v2104 = vmul.f32 %v2055, %v1178
        %v2105 = vmul.f32 %v2057, %v1179
        %v2106 = vmul.f32 %v2059, %v1180
        %v2107 = vmul.f32 %v2061, %v1181
        %v2108 = vmul.f32 %v2063, %v1182
        %v2109 = vmul.f32 %v2065, %v1183
        %v2110 = vmul.f32 %v2067, %v1184
        %v2111 = vmul.f32 %v2069, %v1185
        %v2112 = vmul.f32 %v2071, %v1186
        %v2113 = vmul.f32 %v2073, %v1187
        %v2114 = vmul.f32 %v2075, %v1188
        %v2115 = vmul.f32 %v2077, %v1189
        %v2116 = vmul.f32 %v2079, %v1190
        %v2117 = vmul.f32 %v2081, %v1191
        %v2118 = vmul.f32 %v2083, %v1192
        %v2119 = vmul.f32 %v2085, %v1193
        %v2120 = vmul.f32 %v2087, %v1194
        %v2121 = vmul.f32 %v2089, %v1195
        %v2122 = vadd.f32 %v2090, %v2091
        %2123 = vadd.xlane.f32.xlu0 %v2122
        %v2124 = vpop.xlane.xlu0 %2123
        %v2125 = vadd.f32 %v2092, %v2093
        %2126 = vadd.xlane.f32.xlu0 %v2125
        %v2127 = vpop.xlane.xlu0 %2126
        %v2128 = vadd.f32 %v2094, %v2095
        %2129 = vadd.xlane.f32.xlu0 %v2128
        %v2130 = vpop.xlane.xlu0 %2129
        %v2131 = vadd.f32 %v2096, %v2097
        %2132 = vadd.xlane.f32.xlu0 %v2131
        %v2133 = vpop.xlane.xlu0 %2132
        %v2134 = vadd.f32 %v2098, %v2099
        %2135 = vadd.xlane.f32.xlu0 %v2134
        %v2136 = vpop.xlane.xlu0 %2135
        %v2137 = vadd.f32 %v2100, %v2101
        %2138 = vadd.xlane.f32.xlu0 %v2137
        %v2139 = vpop.xlane.xlu0 %2138
        %v2140 = vadd.f32 %v2102, %v2103
        %2141 = vadd.xlane.f32.xlu0 %v2140
        %v2142 = vpop.xlane.xlu0 %2141
        %v2143 = vadd.f32 %v2104, %v2105
        %2144 = vadd.xlane.f32.xlu0 %v2143
        %v2145 = vpop.xlane.xlu0 %2144
        %v2146 = vadd.f32 %v2106, %v2107
        %2147 = vadd.xlane.f32.xlu0 %v2146
        %v2148 = vpop.xlane.xlu0 %2147
        %v2149 = vadd.f32 %v2108, %v2109
        %2150 = vadd.xlane.f32.xlu0 %v2149
        %v2151 = vpop.xlane.xlu0 %2150
        %v2152 = vadd.f32 %v2110, %v2111
        %2153 = vadd.xlane.f32.xlu0 %v2152
        %v2154 = vpop.xlane.xlu0 %2153
        %v2155 = vadd.f32 %v2112, %v2113
        %2156 = vadd.xlane.f32.xlu0 %v2155
        %v2157 = vpop.xlane.xlu0 %2156
        %v2158 = vadd.f32 %v2114, %v2115
        %2159 = vadd.xlane.f32.xlu0 %v2158
        %v2160 = vpop.xlane.xlu0 %2159
        %v2161 = vadd.f32 %v2116, %v2117
        %2162 = vadd.xlane.f32.xlu0 %v2161
        %v2163 = vpop.xlane.xlu0 %2162
        %v2164 = vadd.f32 %v2118, %v2119
        %2165 = vadd.xlane.f32.xlu0 %v2164
        %v2166 = vpop.xlane.xlu0 %2165
        %v2167 = vadd.f32 %v2120, %v2121
        %2168 = vadd.xlane.f32.xlu0 %v2167
        %v2169 = vpop.xlane.xlu0 %2168
        %v2170 = vmax.f32 %v2124, 1e-20
        %v2171 = vmax.f32 %v2127, 1e-20
        %v2172 = vmax.f32 %v2130, 1e-20
        %v2173 = vmax.f32 %v2133, 1e-20
        %v2174 = vmax.f32 %v2136, 1e-20
        %v2175 = vmax.f32 %v2139, 1e-20
        %v2176 = vmax.f32 %v2142, 1e-20
        %v2177 = vmax.f32 %v2145, 1e-20
        %v2178 = vmax.f32 %v2148, 1e-20
        %v2179 = vmax.f32 %v2151, 1e-20
        %v2180 = vmax.f32 %v2154, 1e-20
        %v2181 = vmax.f32 %v2157, 1e-20
        %v2182 = vmax.f32 %v2160, 1e-20
        %v2183 = vmax.f32 %v2163, 1e-20
        %v2184 = vmax.f32 %v2166, 1e-20
        %v2185 = vmax.f32 %v2169, 1e-20
        %v2186 = vrcp.pop %v2170
        %v2187 = vrcp.pop %v2171
        %v2188 = vrcp.pop %v2172
        %v2189 = vrcp.pop %v2173
        %v2190 = vrcp.pop %v2174
        %v2191 = vrcp.pop %v2175
        %v2192 = vrcp.pop %v2176
        %v2193 = vrcp.pop %v2177
        %v2194 = vrcp.pop %v2178
        %v2195 = vrcp.pop %v2179
        %v2196 = vrcp.pop %v2180
        %v2197 = vrcp.pop %v2181
        %v2198 = vrcp.pop %v2182
        %v2199 = vrcp.pop %v2183
        %v2200 = vrcp.pop %v2184
        %v2201 = vrcp.pop %v2185
        %v2202 = vpack.c.bf16 %v2092, %v2090
        %v2203 = vpack.c.bf16 %v2093, %v2091
        %v2204 = vpack.c.bf16 %v2096, %v2094
        %v2205 = vpack.c.bf16 %v2097, %v2095
        %v2206 = vpack.c.bf16 %v2100, %v2098
        %v2207 = vpack.c.bf16 %v2101, %v2099
        %v2208 = vpack.c.bf16 %v2104, %v2102
        %v2209 = vpack.c.bf16 %v2105, %v2103
        %v2210 = vpack.c.bf16 %v2108, %v2106
        %v2211 = vpack.c.bf16 %v2109, %v2107
        %v2212 = vpack.c.bf16 %v2112, %v2110
        %v2213 = vpack.c.bf16 %v2113, %v2111
        %v2214 = vpack.c.bf16 %v2116, %v2114
        %v2215 = vpack.c.bf16 %v2117, %v2115
        %v2216 = vpack.c.bf16 %v2120, %v2118
        %v2217 = vpack.c.bf16 %v2121, %v2119
        %2218 = vmatprep.subr.bf16.mxu0 0
        %2219 = vmatpush1.bf16.msra.mxu0 %v1484
        %2220 = vmatprep.subr.bf16.mxu0 0
        %2221 = vmatpush1.bf16.msra.mxu0 %v1485
        %2222 = vmatprep.subr.bf16.mxu0 0
        %2223 = vmatpush1.bf16.msra.mxu0 %v1486
        %2224 = vmatprep.subr.bf16.mxu0 0
        %2225 = vmatpush1.bf16.msra.mxu0 %v1487
        %2226 = vmatprep.subr.bf16.mxu0 0
        %2227 = vmatpush1.bf16.msra.mxu0 %v1488
        %2228 = vmatprep.subr.bf16.mxu0 0
        %2229 = vmatpush1.bf16.msra.mxu0 %v1489
        %2230 = vmatprep.subr.bf16.mxu0 0
        %2231 = vmatpush1.bf16.msra.mxu0 %v1490
        %2232 = vmatprep.subr.bf16.mxu0 0
        %2233 = vmatpush1.bf16.msra.mxu0 %v1491
        %2234 = vmatprep.subr.bf16.mxu0 0
        %2235 = vmatpush1.bf16.msra.mxu0 %v1492
        %2236 = vmatprep.subr.bf16.mxu0 0
        %2237 = vmatpush1.bf16.msra.mxu0 %v1493
        %2238 = vmatprep.subr.bf16.mxu0 0
        %2239 = vmatpush1.bf16.msra.mxu0 %v1494
        %2240 = vmatprep.subr.bf16.mxu0 0
        %2241 = vmatpush1.bf16.msra.mxu0 %v1495
        %2242 = vmatprep.subr.bf16.mxu0 0
        %2243 = vmatpush1.bf16.msra.mxu0 %v1496
        %2244 = vmatprep.subr.bf16.mxu0 0
        %2245 = vmatpush1.bf16.msra.mxu0 %v1497
        %2246 = vmatprep.subr.bf16.mxu0 0
        %2247 = vmatpush1.bf16.msra.mxu0 %v1498
        %2248 = vmatprep.subr.bf16.mxu0 0
        %2249 = vmatpush1.bf16.msra.mxu0 %v1499
        %2250 = vmatprep.mubr.bf16.mxu0 %v2203
        %2251 = vmatmul.mubr.bf16.gmra.mrb[0].mxu0 %v2202
        %v2252 = vpop.f32.mrb[0].mxu0
        %v2253 = vadd.f32 0.0, %v2252
        %v2254 = vpop.f32.mrb[0].mxu0
        %v2255 = vpop.f32.mrb[0].mxu0
        %v2256 = vadd.f32 0.0, %v2255
        %v2257 = vpop.f32.mrb[0].mxu0
        %2258 = vmatprep.mubr.bf16.mxu0 %v2205
        %2259 = vmatmul.mubr.bf16.gmra.mrb[0].mxu0 %v2204
        %v2260 = vpop.f32.mrb[0].mxu0
        %v2261 = vadd.f32 0.0, %v2260
        %v2262 = vpop.f32.mrb[0].mxu0
        %v2263 = vpop.f32.mrb[0].mxu0
        %v2264 = vadd.f32 0.0, %v2263
        %v2265 = vpop.f32.mrb[0].mxu0
        %2266 = vmatprep.mubr.bf16.mxu0 %v2207
        %2267 = vmatmul.mubr.bf16.gmra.mrb[0].mxu0 %v2206
        %v2268 = vpop.f32.mrb[0].mxu0
        %v2269 = vadd.f32 0.0, %v2268
        %v2270 = vpop.f32.mrb[0].mxu0
        %v2271 = vpop.f32.mrb[0].mxu0
        %v2272 = vadd.f32 0.0, %v2271
        %v2273 = vpop.f32.mrb[0].mxu0
        %2274 = vmatprep.mubr.bf16.mxu0 %v2209
        %2275 = vmatmul.mubr.bf16.gmra.mrb[0].mxu0 %v2208
        %v2276 = vpop.f32.mrb[0].mxu0
        %v2277 = vadd.f32 0.0, %v2276
        %v2278 = vpop.f32.mrb[0].mxu0
        %v2279 = vpop.f32.mrb[0].mxu0
        %v2280 = vadd.f32 0.0, %v2279
        %v2281 = vpop.f32.mrb[0].mxu0
        %2282 = vmatprep.mubr.bf16.mxu0 %v2211
        %2283 = vmatmul.mubr.bf16.gmra.mrb[0].mxu0 %v2210
        %v2284 = vpop.f32.mrb[0].mxu0
        %v2285 = vadd.f32 0.0, %v2284
        %v2286 = vpop.f32.mrb[0].mxu0
        %v2287 = vpop.f32.mrb[0].mxu0
        %v2288 = vadd.f32 0.0, %v2287
        %v2289 = vpop.f32.mrb[0].mxu0
        %2290 = vmatprep.mubr.bf16.mxu0 %v2213
        %2291 = vmatmul.mubr.bf16.gmra.mrb[0].mxu0 %v2212
        %v2292 = vpop.f32.mrb[0].mxu0
        %v2293 = vadd.f32 0.0, %v2292
        %v2294 = vpop.f32.mrb[0].mxu0
        %v2295 = vpop.f32.mrb[0].mxu0
        %v2296 = vadd.f32 0.0, %v2295
        %v2297 = vpop.f32.mrb[0].mxu0
        %2298 = vmatprep.mubr.bf16.mxu0 %v2215
        %2299 = vmatmul.mubr.bf16.gmra.mrb[0].mxu0 %v2214
        %v2300 = vpop.f32.mrb[0].mxu0
        %v2301 = vadd.f32 0.0, %v2300
        %v2302 = vpop.f32.mrb[0].mxu0
        %v2303 = vpop.f32.mrb[0].mxu0
        %v2304 = vadd.f32 0.0, %v2303
        %v2305 = vpop.f32.mrb[0].mxu0
        %2306 = vmatprep.mubr.bf16.mxu0 %v2217
        %2307 = vmatmul.mubr.bf16.gmra.mrb[0].mxu0 %v2216
        %v2308 = vpop.f32.mrb[0].mxu0
        %v2309 = vadd.f32 0.0, %v2308
        %v2310 = vpop.f32.mrb[0].mxu0
        %v2311 = vpop.f32.mrb[0].mxu0
        %v2312 = vadd.f32 0.0, %v2311
        %v2313 = vpop.f32.mrb[0].mxu0
        %2314 = vdwg.mxu0
        %v2315 = vmul.f32 %v2253, %v2186
        %v2316 = vmul.f32 %v2256, %v2187
        %v2317 = vmul.f32 %v2261, %v2188
        %v2318 = vmul.f32 %v2264, %v2189
        %v2319 = vmul.f32 %v2269, %v2190
        %v2320 = vmul.f32 %v2272, %v2191
        %v2321 = vmul.f32 %v2277, %v2192
        %v2322 = vmul.f32 %v2280, %v2193
        %v2323 = vmul.f32 %v2285, %v2194
        %v2324 = vmul.f32 %v2288, %v2195
        %v2325 = vmul.f32 %v2293, %v2196
        %v2326 = vmul.f32 %v2296, %v2197
        %v2327 = vmul.f32 %v2301, %v2198
        %v2328 = vmul.f32 %v2304, %v2199
        %v2329 = vmul.f32 %v2309, %v2200
        %v2330 = vmul.f32 %v2312, %v2201
        %s2331 = sld [smem:[#allocation14 + $0x1]]
        %v2332 = vstv %s2331
        %v2333 = vmul.f32 %v1260, %v2332
        %v2334 = vmul.f32 %v1261, %v2332
        %v2335 = vmul.f32 %v1262, %v2332
        %v2336 = vmul.f32 %v1263, %v2332
        %v2337 = vmul.f32 %v1264, %v2332
        %v2338 = vmul.f32 %v1265, %v2332
        %v2339 = vmul.f32 %v1266, %v2332
        %v2340 = vmul.f32 %v1267, %v2332
        %v2341 = vmul.f32 %v1268, %v2332
        %v2342 = vmul.f32 %v1269, %v2332
        %v2343 = vmul.f32 %v1270, %v2332
        %v2344 = vmul.f32 %v1271, %v2332
        %v2345 = vmul.f32 %v1272, %v2332
        %v2346 = vmul.f32 %v1273, %v2332
        %v2347 = vmul.f32 %v1274, %v2332
        %v2348 = vmul.f32 %v1275, %v2332
        %v2349 = vmul.f32 %v1276, %v2332
        %v2350 = vmul.f32 %v1277, %v2332
        %v2351 = vmul.f32 %v1278, %v2332
        %v2352 = vmul.f32 %v1279, %v2332
        %v2353 = vmul.f32 %v1280, %v2332
        %v2354 = vmul.f32 %v1281, %v2332
        %v2355 = vmul.f32 %v1282, %v2332
        %v2356 = vmul.f32 %v1283, %v2332
        %v2357 = vmul.f32 %v1284, %v2332
        %v2358 = vmul.f32 %v1285, %v2332
        %v2359 = vmul.f32 %v1286, %v2332
        %v2360 = vmul.f32 %v1287, %v2332
        %v2361 = vmul.f32 %v1288, %v2332
        %v2362 = vmul.f32 %v1289, %v2332
        %v2363 = vmul.f32 %v1290, %v2332
        %v2364 = vmul.f32 %v1291, %v2332
        %s2365 = sld [smem:[#allocation14 + $0x81]]
        %v2366 = vstv %s2365
        %v2367 = vmul.f32 %v1356, %v2366
        %v2368 = vmul.f32 %v1357, %v2366
        %v2369 = vmul.f32 %v1358, %v2366
        %v2370 = vmul.f32 %v1359, %v2366
        %v2371 = vmul.f32 %v1360, %v2366
        %v2372 = vmul.f32 %v1361, %v2366
        %v2373 = vmul.f32 %v1362, %v2366
        %v2374 = vmul.f32 %v1363, %v2366
        %v2375 = vmul.f32 %v1364, %v2366
        %v2376 = vmul.f32 %v1365, %v2366
        %v2377 = vmul.f32 %v1366, %v2366
        %v2378 = vmul.f32 %v1367, %v2366
        %v2379 = vmul.f32 %v1368, %v2366
        %v2380 = vmul.f32 %v1369, %v2366
        %v2381 = vmul.f32 %v1370, %v2366
        %v2382 = vmul.f32 %v1371, %v2366
        %v2383 = vmul.f32 %v1372, %v2366
        %v2384 = vmul.f32 %v1373, %v2366
        %v2385 = vmul.f32 %v1374, %v2366
        %v2386 = vmul.f32 %v1375, %v2366
        %v2387 = vmul.f32 %v1376, %v2366
        %v2388 = vmul.f32 %v1377, %v2366
        %v2389 = vmul.f32 %v1378, %v2366
        %v2390 = vmul.f32 %v1379, %v2366
        %v2391 = vmul.f32 %v1380, %v2366
        %v2392 = vmul.f32 %v1381, %v2366
        %v2393 = vmul.f32 %v1382, %v2366
        %v2394 = vmul.f32 %v1383, %v2366
        %v2395 = vmul.f32 %v1384, %v2366
        %v2396 = vmul.f32 %v1385, %v2366
        %v2397 = vmul.f32 %v1386, %v2366
        %v2398 = vmul.f32 %v1387, %v2366
        %v2399 = vadd.f32 %v2333, %v2367
        %v2400 = vadd.f32 %v2334, %v2368
        %v2401 = vadd.f32 %v2335, %v2369
        %v2402 = vadd.f32 %v2336, %v2370
        %v2403 = vadd.f32 %v2337, %v2371
        %v2404 = vadd.f32 %v2338, %v2372
        %v2405 = vadd.f32 %v2339, %v2373
        %v2406 = vadd.f32 %v2340, %v2374
        %v2407 = vadd.f32 %v2341, %v2375
        %v2408 = vadd.f32 %v2342, %v2376
        %v2409 = vadd.f32 %v2343, %v2377
        %v2410 = vadd.f32 %v2344, %v2378
        %v2411 = vadd.f32 %v2345, %v2379
        %v2412 = vadd.f32 %v2346, %v2380
        %v2413 = vadd.f32 %v2347, %v2381
        %v2414 = vadd.f32 %v2348, %v2382
        %v2415 = vadd.f32 %v2349, %v2383
        %v2416 = vadd.f32 %v2350, %v2384
        %v2417 = vadd.f32 %v2351, %v2385
        %v2418 = vadd.f32 %v2352, %v2386
        %v2419 = vadd.f32 %v2353, %v2387
        %v2420 = vadd.f32 %v2354, %v2388
        %v2421 = vadd.f32 %v2355, %v2389
        %v2422 = vadd.f32 %v2356, %v2390
        %v2423 = vadd.f32 %v2357, %v2391
        %v2424 = vadd.f32 %v2358, %v2392
        %v2425 = vadd.f32 %v2359, %v2393
        %v2426 = vadd.f32 %v2360, %v2394
        %v2427 = vadd.f32 %v2361, %v2395
        %v2428 = vadd.f32 %v2362, %v2396
        %v2429 = vadd.f32 %v2363, %v2397
        %v2430 = vadd.f32 %v2364, %v2398
        %s2431 = sld [smem:[#allocation14 + $0x101]]
        %v2432 = vstv %s2431
        %v2433 = vmul.f32 %v1452, %v2432
        %v2434 = vmul.f32 %v1453, %v2432
        %v2435 = vmul.f32 %v1454, %v2432
        %v2436 = vmul.f32 %v1455, %v2432
        %v2437 = vmul.f32 %v1456, %v2432
        %v2438 = vmul.f32 %v1457, %v2432
        %v2439 = vmul.f32 %v1458, %v2432
        %v2440 = vmul.f32 %v1459, %v2432
        %v2441 = vmul.f32 %v1460, %v2432
        %v2442 = vmul.f32 %v1461, %v2432
        %v2443 = vmul.f32 %v1462, %v2432
        %v2444 = vmul.f32 %v1463, %v2432
        %v2445 = vmul.f32 %v1464, %v2432
        %v2446 = vmul.f32 %v1465, %v2432
        %v2447 = vmul.f32 %v1466, %v2432
        %v2448 = vmul.f32 %v1467, %v2432
        %v2449 = vmul.f32 %v1468, %v2432
        %v2450 = vmul.f32 %v1469, %v2432
        %v2451 = vmul.f32 %v1470, %v2432
        %v2452 = vmul.f32 %v1471, %v2432
        %v2453 = vmul.f32 %v1472, %v2432
        %v2454 = vmul.f32 %v1473, %v2432
        %v2455 = vmul.f32 %v1474, %v2432
        %v2456 = vmul.f32 %v1475, %v2432
        %v2457 = vmul.f32 %v1476, %v2432
        %v2458 = vmul.f32 %v1477, %v2432
        %v2459 = vmul.f32 %v1478, %v2432
        %v2460 = vmul.f32 %v1479, %v2432
        %v2461 = vmul.f32 %v1480, %v2432
        %v2462 = vmul.f32 %v1481, %v2432
        %v2463 = vmul.f32 %v1482, %v2432
        %v2464 = vmul.f32 %v1483, %v2432
        %v2465 = vadd.f32 %v2399, %v2433
        %v2466 = vadd.f32 %v2400, %v2434
        %v2467 = vadd.f32 %v2401, %v2435
        %v2468 = vadd.f32 %v2402, %v2436
        %v2469 = vadd.f32 %v2403, %v2437
        %v2470 = vadd.f32 %v2404, %v2438
        %v2471 = vadd.f32 %v2405, %v2439
        %v2472 = vadd.f32 %v2406, %v2440
        %v2473 = vadd.f32 %v2407, %v2441
        %v2474 = vadd.f32 %v2408, %v2442
        %v2475 = vadd.f32 %v2409, %v2443
        %v2476 = vadd.f32 %v2410, %v2444
        %v2477 = vadd.f32 %v2411, %v2445
        %v2478 = vadd.f32 %v2412, %v2446
        %v2479 = vadd.f32 %v2413, %v2447
        %v2480 = vadd.f32 %v2414, %v2448
        %v2481 = vadd.f32 %v2415, %v2449
        %v2482 = vadd.f32 %v2416, %v2450
        %v2483 = vadd.f32 %v2417, %v2451
        %v2484 = vadd.f32 %v2418, %v2452
        %v2485 = vadd.f32 %v2419, %v2453
        %v2486 = vadd.f32 %v2420, %v2454
        %v2487 = vadd.f32 %v2421, %v2455
        %v2488 = vadd.f32 %v2422, %v2456
        %v2489 = vadd.f32 %v2423, %v2457
        %v2490 = vadd.f32 %v2424, %v2458
        %v2491 = vadd.f32 %v2425, %v2459
        %v2492 = vadd.f32 %v2426, %v2460
        %v2493 = vadd.f32 %v2427, %v2461
        %v2494 = vadd.f32 %v2428, %v2462
        %v2495 = vadd.f32 %v2429, %v2463
        %v2496 = vadd.f32 %v2430, %v2464
        %2497 = vset.pattern.permute.xlu0 1
        %2498 = vperm.xlu0 %2497, %v990
        %v2499 = vpop.permute.xlu0 %2498
        %2501 = vset.pattern.permute.xlu0 1
        %2502 = vperm.xlu0 %2501, %v995
        %v2503 = vpop.permute.xlu0 %2502
        %2505 = vset.pattern.permute.xlu0 1
        %2506 = vperm.xlu0 %2505, %v1000
        %v2507 = vpop.permute.xlu0 %2506
        %2509 = vset.pattern.permute.xlu0 1
        %2510 = vperm.xlu0 %2509, %v1005
        %v2511 = vpop.permute.xlu0 %2510
        %2513 = vset.pattern.permute.xlu0 1
        %2514 = vperm.xlu0 %2513, %v1010
        %v2515 = vpop.permute.xlu0 %2514
        %2517 = vset.pattern.permute.xlu0 1
        %2518 = vperm.xlu0 %2517, %v1015
        %v2519 = vpop.permute.xlu0 %2518
        %2521 = vset.pattern.permute.xlu0 1
        %2522 = vperm.xlu0 %2521, %v1020
        %v2523 = vpop.permute.xlu0 %2522
        %2525 = vset.pattern.permute.xlu0 1
        %2526 = vperm.xlu0 %2525, %v1025
        %v2527 = vpop.permute.xlu0 %2526
        %2529 = vset.pattern.permute.xlu0 1
        %2530 = vperm.xlu0 %2529, %v1030
        %v2531 = vpop.permute.xlu0 %2530
        %2533 = vset.pattern.permute.xlu0 1
        %2534 = vperm.xlu0 %2533, %v1035
        %v2535 = vpop.permute.xlu0 %2534
        %2537 = vset.pattern.permute.xlu0 1
        %2538 = vperm.xlu0 %2537, %v1040
        %v2539 = vpop.permute.xlu0 %2538
        %2541 = vset.pattern.permute.xlu0 1
        %2542 = vperm.xlu0 %2541, %v1045
        %v2543 = vpop.permute.xlu0 %2542
        %2545 = vset.pattern.permute.xlu0 1
        %2546 = vperm.xlu0 %2545, %v1050
        %v2547 = vpop.permute.xlu0 %2546
        %2549 = vset.pattern.permute.xlu0 1
        %2550 = vperm.xlu0 %2549, %v1055
        %v2551 = vpop.permute.xlu0 %2550
        %2553 = vset.pattern.permute.xlu0 1
        %2554 = vperm.xlu0 %2553, %v1060
        %v2555 = vpop.permute.xlu0 %2554
        %2557 = vset.pattern.permute.xlu0 1
        %2558 = vperm.xlu0 %2557, %v1065
        %v2559 = vpop.permute.xlu0 %2558
        %v2561 = vlaneseq
        %v2562 = vshrl.u32 %v2561, 7
        %v2563 = vsub.s32 1, %v2562
        %v2564 = vrot.slane %v851, %v2563
        %v2565 = vlaneseq
        %v2566 = vshrl.u32 %v2565, 7
        %v2567 = vsub.s32 1, %v2566
        %v2568 = vrot.slane %v853, %v2567
        %v2569 = vadd.f32 %v2499, %v2564
        %v2570 = vadd.f32 %v2499, %v2568
        %v2571 = vadd.f32 %v2503, %v2564
        %v2572 = vadd.f32 %v2503, %v2568
        %v2573 = vadd.f32 %v2507, %v2564
        %v2574 = vadd.f32 %v2507, %v2568
        %v2575 = vadd.f32 %v2511, %v2564
        %v2576 = vadd.f32 %v2511, %v2568
        %v2577 = vadd.f32 %v2515, %v2564
        %v2578 = vadd.f32 %v2515, %v2568
        %v2579 = vadd.f32 %v2519, %v2564
        %v2580 = vadd.f32 %v2519, %v2568
        %v2581 = vadd.f32 %v2523, %v2564
        %v2582 = vadd.f32 %v2523, %v2568
        %v2583 = vadd.f32 %v2527, %v2564
        %v2584 = vadd.f32 %v2527, %v2568
        %v2585 = vadd.f32 %v2531, %v2564
        %v2586 = vadd.f32 %v2531, %v2568
        %v2587 = vadd.f32 %v2535, %v2564
        %v2588 = vadd.f32 %v2535, %v2568
        %v2589 = vadd.f32 %v2539, %v2564
        %v2590 = vadd.f32 %v2539, %v2568
        %v2591 = vadd.f32 %v2543, %v2564
        %v2592 = vadd.f32 %v2543, %v2568
        %v2593 = vadd.f32 %v2547, %v2564
        %v2594 = vadd.f32 %v2547, %v2568
        %v2595 = vadd.f32 %v2551, %v2564
        %v2596 = vadd.f32 %v2551, %v2568
        %v2597 = vadd.f32 %v2555, %v2564
        %v2598 = vadd.f32 %v2555, %v2568
        %v2599 = vadd.f32 %v2559, %v2564
        %v2600 = vadd.f32 %v2559, %v2568
        %v2601 = vadd.f32 %v2569, %v2465
        %v2602 = vadd.f32 %v2570, %v2466
        %v2603 = vadd.f32 %v2571, %v2467
        %v2604 = vadd.f32 %v2572, %v2468
        %v2605 = vadd.f32 %v2573, %v2469
        %v2606 = vadd.f32 %v2574, %v2470
        %v2607 = vadd.f32 %v2575, %v2471
        %v2608 = vadd.f32 %v2576, %v2472
        %v2609 = vadd.f32 %v2577, %v2473
        %v2610 = vadd.f32 %v2578, %v2474
        %v2611 = vadd.f32 %v2579, %v2475
        %v2612 = vadd.f32 %v2580, %v2476
        %v2613 = vadd.f32 %v2581, %v2477
        %v2614 = vadd.f32 %v2582, %v2478
        %v2615 = vadd.f32 %v2583, %v2479
        %v2616 = vadd.f32 %v2584, %v2480
        %v2617 = vadd.f32 %v2585, %v2481
        %v2618 = vadd.f32 %v2586, %v2482
        %v2619 = vadd.f32 %v2587, %v2483
        %v2620 = vadd.f32 %v2588, %v2484
        %v2621 = vadd.f32 %v2589, %v2485
        %v2622 = vadd.f32 %v2590, %v2486
        %v2623 = vadd.f32 %v2591, %v2487
        %v2624 = vadd.f32 %v2592, %v2488
        %v2625 = vadd.f32 %v2593, %v2489
        %v2626 = vadd.f32 %v2594, %v2490
        %v2627 = vadd.f32 %v2595, %v2491
        %v2628 = vadd.f32 %v2596, %v2492
        %v2629 = vadd.f32 %v2597, %v2493
        %v2630 = vadd.f32 %v2598, %v2494
        %v2631 = vadd.f32 %v2599, %v2495
        %v2632 = vadd.f32 %v2600, %v2496
        %vm2633 = vcmp.ge.f32.partialorder %v2601, 0.0
        %vm2634 = vcmp.ge.f32.partialorder %v2602, 0.0
        %vm2635 = vcmp.ge.f32.partialorder %v2603, 0.0
        %vm2636 = vcmp.ge.f32.partialorder %v2604, 0.0
        %vm2637 = vcmp.ge.f32.partialorder %v2605, 0.0
        %vm2638 = vcmp.ge.f32.partialorder %v2606, 0.0
        %vm2639 = vcmp.ge.f32.partialorder %v2607, 0.0
        %vm2640 = vcmp.ge.f32.partialorder %v2608, 0.0
        %vm2641 = vcmp.ge.f32.partialorder %v2609, 0.0
        %vm2642 = vcmp.ge.f32.partialorder %v2610, 0.0
        %vm2643 = vcmp.ge.f32.partialorder %v2611, 0.0
        %vm2644 = vcmp.ge.f32.partialorder %v2612, 0.0
        %vm2645 = vcmp.ge.f32.partialorder %v2613, 0.0
        %vm2646 = vcmp.ge.f32.partialorder %v2614, 0.0
        %vm2647 = vcmp.ge.f32.partialorder %v2615, 0.0
        %vm2648 = vcmp.ge.f32.partialorder %v2616, 0.0
        %vm2649 = vcmp.ge.f32.partialorder %v2617, 0.0
        %vm2650 = vcmp.ge.f32.partialorder %v2618, 0.0
        %vm2651 = vcmp.ge.f32.partialorder %v2619, 0.0
        %vm2652 = vcmp.ge.f32.partialorder %v2620, 0.0
        %vm2653 = vcmp.ge.f32.partialorder %v2621, 0.0
        %vm2654 = vcmp.ge.f32.partialorder %v2622, 0.0
        %vm2655 = vcmp.ge.f32.partialorder %v2623, 0.0
        %vm2656 = vcmp.ge.f32.partialorder %v2624, 0.0
        %vm2657 = vcmp.ge.f32.partialorder %v2625, 0.0
        %vm2658 = vcmp.ge.f32.partialorder %v2626, 0.0
        %vm2659 = vcmp.ge.f32.partialorder %v2627, 0.0
        %vm2660 = vcmp.ge.f32.partialorder %v2628, 0.0
        %vm2661 = vcmp.ge.f32.partialorder %v2629, 0.0
        %vm2662 = vcmp.ge.f32.partialorder %v2630, 0.0
        %vm2663 = vcmp.ge.f32.partialorder %v2631, 0.0
        %vm2664 = vcmp.ge.f32.partialorder %v2632, 0.0
        %v2665 = vmul.f32 %v2601, 0.2
        %v2666 = vmul.f32 %v2602, 0.2
        %v2667 = vmul.f32 %v2603, 0.2
        %v2668 = vmul.f32 %v2604, 0.2
        %v2669 = vmul.f32 %v2605, 0.2
        %v2670 = vmul.f32 %v2606, 0.2
        %v2671 = vmul.f32 %v2607, 0.2
        %v2672 = vmul.f32 %v2608, 0.2
        %v2673 = vmul.f32 %v2609, 0.2
        %v2674 = vmul.f32 %v2610, 0.2
        %v2675 = vmul.f32 %v2611, 0.2
        %v2676 = vmul.f32 %v2612, 0.2
        %v2677 = vmul.f32 %v2613, 0.2
        %v2678 = vmul.f32 %v2614, 0.2
        %v2679 = vmul.f32 %v2615, 0.2
        %v2680 = vmul.f32 %v2616, 0.2
        %v2681 = vmul.f32 %v2617, 0.2
        %v2682 = vmul.f32 %v2618, 0.2
        %v2683 = vmul.f32 %v2619, 0.2
        %v2684 = vmul.f32 %v2620, 0.2
        %v2685 = vmul.f32 %v2621, 0.2
        %v2686 = vmul.f32 %v2622, 0.2
        %v2687 = vmul.f32 %v2623, 0.2
        %v2688 = vmul.f32 %v2624, 0.2
        %v2689 = vmul.f32 %v2625, 0.2
        %v2690 = vmul.f32 %v2626, 0.2
        %v2691 = vmul.f32 %v2627, 0.2
        %v2692 = vmul.f32 %v2628, 0.2
        %v2693 = vmul.f32 %v2629, 0.2
        %v2694 = vmul.f32 %v2630, 0.2
        %v2695 = vmul.f32 %v2631, 0.2
        %v2696 = vmul.f32 %v2632, 0.2
        %v2697 = vsel %vm2633, %v2601, %v2665
        %v2698 = vsel %vm2634, %v2602, %v2666
        %v2699 = vsel %vm2635, %v2603, %v2667
        %v2700 = vsel %vm2636, %v2604, %v2668
        %v2701 = vsel %vm2637, %v2605, %v2669
        %v2702 = vsel %vm2638, %v2606, %v2670
        %v2703 = vsel %vm2639, %v2607, %v2671
        %v2704 = vsel %vm2640, %v2608, %v2672
        %v2705 = vsel %vm2641, %v2609, %v2673
        %v2706 = vsel %vm2642, %v2610, %v2674
        %v2707 = vsel %vm2643, %v2611, %v2675
        %v2708 = vsel %vm2644, %v2612, %v2676
        %v2709 = vsel %vm2645, %v2613, %v2677
        %v2710 = vsel %vm2646, %v2614, %v2678
        %v2711 = vsel %vm2647, %v2615, %v2679
        %v2712 = vsel %vm2648, %v2616, %v2680
        %v2713 = vsel %vm2649, %v2617, %v2681
        %v2714 = vsel %vm2650, %v2618, %v2682
        %v2715 = vsel %vm2651, %v2619, %v2683
        %v2716 = vsel %vm2652, %v2620, %v2684
        %v2717 = vsel %vm2653, %v2621, %v2685
        %v2718 = vsel %vm2654, %v2622, %v2686
        %v2719 = vsel %vm2655, %v2623, %v2687
        %v2720 = vsel %vm2656, %v2624, %v2688
        %v2721 = vsel %vm2657, %v2625, %v2689
        %v2722 = vsel %vm2658, %v2626, %v2690
        %v2723 = vsel %vm2659, %v2627, %v2691
        %v2724 = vsel %vm2660, %v2628, %v2692
        %v2725 = vsel %vm2661, %v2629, %v2693
        %v2726 = vsel %vm2662, %v2630, %v2694
        %v2727 = vsel %vm2663, %v2631, %v2695
        %v2728 = vsel %vm2664, %v2632, %v2696
        %v2729 = vsel %vm1100, %v2697, -1e+30
        %v2730 = vsel %vm1101, %v2698, -1e+30
        %v2731 = vsel %vm1102, %v2699, -1e+30
        %v2732 = vsel %vm1103, %v2700, -1e+30
        %v2733 = vsel %vm1104, %v2701, -1e+30
        %v2734 = vsel %vm1105, %v2702, -1e+30
        %v2735 = vsel %vm1106, %v2703, -1e+30
        %v2736 = vsel %vm1107, %v2704, -1e+30
        %v2737 = vsel %vm1108, %v2705, -1e+30
        %v2738 = vsel %vm1109, %v2706, -1e+30
        %v2739 = vsel %vm1110, %v2707, -1e+30
        %v2740 = vsel %vm1111, %v2708, -1e+30
        %v2741 = vsel %vm1112, %v2709, -1e+30
        %v2742 = vsel %vm1113, %v2710, -1e+30
        %v2743 = vsel %vm1114, %v2711, -1e+30
        %v2744 = vsel %vm1115, %v2712, -1e+30
        %v2745 = vsel %vm1116, %v2713, -1e+30
        %v2746 = vsel %vm1117, %v2714, -1e+30
        %v2747 = vsel %vm1118, %v2715, -1e+30
        %v2748 = vsel %vm1119, %v2716, -1e+30
        %v2749 = vsel %vm1120, %v2717, -1e+30
        %v2750 = vsel %vm1121, %v2718, -1e+30
        %v2751 = vsel %vm1122, %v2719, -1e+30
        %v2752 = vsel %vm1123, %v2720, -1e+30
        %v2753 = vsel %vm1124, %v2721, -1e+30
        %v2754 = vsel %vm1125, %v2722, -1e+30
        %v2755 = vsel %vm1126, %v2723, -1e+30
        %v2756 = vsel %vm1127, %v2724, -1e+30
        %v2757 = vsel %vm1128, %v2725, -1e+30
        %v2758 = vsel %vm1129, %v2726, -1e+30
        %v2759 = vsel %vm1130, %v2727, -1e+30
        %v2760 = vsel %vm1131, %v2728, -1e+30
        %v2761 = vmax.f32 %v2729, %v2730
        %2762 = vmax.xlane.f32.xlu0 %v2761
        %v2763 = vpop.xlane.xlu0 %2762
        %v2764 = vmax.f32 %v2731, %v2732
        %2765 = vmax.xlane.f32.xlu0 %v2764
        %v2766 = vpop.xlane.xlu0 %2765
        %v2767 = vmax.f32 %v2733, %v2734
        %2768 = vmax.xlane.f32.xlu0 %v2767
        %v2769 = vpop.xlane.xlu0 %2768
        %v2770 = vmax.f32 %v2735, %v2736
        %2771 = vmax.xlane.f32.xlu0 %v2770
        %v2772 = vpop.xlane.xlu0 %2771
        %v2773 = vmax.f32 %v2737, %v2738
        %2774 = vmax.xlane.f32.xlu0 %v2773
        %v2775 = vpop.xlane.xlu0 %2774
        %v2776 = vmax.f32 %v2739, %v2740
        %2777 = vmax.xlane.f32.xlu0 %v2776
        %v2778 = vpop.xlane.xlu0 %2777
        %v2779 = vmax.f32 %v2741, %v2742
        %2780 = vmax.xlane.f32.xlu0 %v2779
        %v2781 = vpop.xlane.xlu0 %2780
        %v2782 = vmax.f32 %v2743, %v2744
        %2783 = vmax.xlane.f32.xlu0 %v2782
        %v2784 = vpop.xlane.xlu0 %2783
        %v2785 = vmax.f32 %v2745, %v2746
        %2786 = vmax.xlane.f32.xlu0 %v2785
        %v2787 = vpop.xlane.xlu0 %2786
        %v2788 = vmax.f32 %v2747, %v2748
        %2789 = vmax.xlane.f32.xlu0 %v2788
        %v2790 = vpop.xlane.xlu0 %2789
        %v2791 = vmax.f32 %v2749, %v2750
        %2792 = vmax.xlane.f32.xlu0 %v2791
        %v2793 = vpop.xlane.xlu0 %2792
        %v2794 = vmax.f32 %v2751, %v2752
        %2795 = vmax.xlane.f32.xlu0 %v2794
        %v2796 = vpop.xlane.xlu0 %2795
        %v2797 = vmax.f32 %v2753, %v2754
        %2798 = vmax.xlane.f32.xlu0 %v2797
        %v2799 = vpop.xlane.xlu0 %2798
        %v2800 = vmax.f32 %v2755, %v2756
        %2801 = vmax.xlane.f32.xlu0 %v2800
        %v2802 = vpop.xlane.xlu0 %2801
        %v2803 = vmax.f32 %v2757, %v2758
        %2804 = vmax.xlane.f32.xlu0 %v2803
        %v2805 = vpop.xlane.xlu0 %2804
        %v2806 = vmax.f32 %v2759, %v2760
        %2807 = vmax.xlane.f32.xlu0 %v2806
        %v2808 = vpop.xlane.xlu0 %2807
        %v2809 = vsub.f32 %v2729, %v2763
        %v2810 = vsub.f32 %v2730, %v2763
        %v2811 = vsub.f32 %v2731, %v2766
        %v2812 = vsub.f32 %v2732, %v2766
        %v2813 = vsub.f32 %v2733, %v2769
        %v2814 = vsub.f32 %v2734, %v2769
        %v2815 = vsub.f32 %v2735, %v2772
        %v2816 = vsub.f32 %v2736, %v2772
        %v2817 = vsub.f32 %v2737, %v2775
        %v2818 = vsub.f32 %v2738, %v2775
        %v2819 = vsub.f32 %v2739, %v2778
        %v2820 = vsub.f32 %v2740, %v2778
        %v2821 = vsub.f32 %v2741, %v2781
        %v2822 = vsub.f32 %v2742, %v2781
        %v2823 = vsub.f32 %v2743, %v2784
        %v2824 = vsub.f32 %v2744, %v2784
        %v2825 = vsub.f32 %v2745, %v2787
        %v2826 = vsub.f32 %v2746, %v2787
        %v2827 = vsub.f32 %v2747, %v2790
        %v2828 = vsub.f32 %v2748, %v2790
        %v2829 = vsub.f32 %v2749, %v2793
        %v2830 = vsub.f32 %v2750, %v2793
        %v2831 = vsub.f32 %v2751, %v2796
        %v2832 = vsub.f32 %v2752, %v2796
        %v2833 = vsub.f32 %v2753, %v2799
        %v2834 = vsub.f32 %v2754, %v2799
        %v2835 = vsub.f32 %v2755, %v2802
        %v2836 = vsub.f32 %v2756, %v2802
        %v2837 = vsub.f32 %v2757, %v2805
        %v2838 = vsub.f32 %v2758, %v2805
        %v2839 = vsub.f32 %v2759, %v2808
        %v2840 = vsub.f32 %v2760, %v2808
        %v2841 = vmul.f32 %v2809, 1.442695
        %v2842 = vpow.pop %v2841
        %v2843 = vmul.f32 %v2810, 1.442695
        %v2844 = vpow.pop %v2843
        %v2845 = vmul.f32 %v2811, 1.442695
        %v2846 = vpow.pop %v2845
        %v2847 = vmul.f32 %v2812, 1.442695
        %v2848 = vpow.pop %v2847
        %v2849 = vmul.f32 %v2813, 1.442695
        %v2850 = vpow.pop %v2849
        %v2851 = vmul.f32 %v2814, 1.442695
        %v2852 = vpow.pop %v2851
        %v2853 = vmul.f32 %v2815, 1.442695
        %v2854 = vpow.pop %v2853
        %v2855 = vmul.f32 %v2816, 1.442695
        %v2856 = vpow.pop %v2855
        %v2857 = vmul.f32 %v2817, 1.442695
        %v2858 = vpow.pop %v2857
        %v2859 = vmul.f32 %v2818, 1.442695
        %v2860 = vpow.pop %v2859
        %v2861 = vmul.f32 %v2819, 1.442695
        %v2862 = vpow.pop %v2861
        %v2863 = vmul.f32 %v2820, 1.442695
        %v2864 = vpow.pop %v2863
        %v2865 = vmul.f32 %v2821, 1.442695
        %v2866 = vpow.pop %v2865
        %v2867 = vmul.f32 %v2822, 1.442695
        %v2868 = vpow.pop %v2867
        %v2869 = vmul.f32 %v2823, 1.442695
        %v2870 = vpow.pop %v2869
        %v2871 = vmul.f32 %v2824, 1.442695
        %v2872 = vpow.pop %v2871
        %v2873 = vmul.f32 %v2825, 1.442695
        %v2874 = vpow.pop %v2873
        %v2875 = vmul.f32 %v2826, 1.442695
        %v2876 = vpow.pop %v2875
        %v2877 = vmul.f32 %v2827, 1.442695
        %v2878 = vpow.pop %v2877
        %v2879 = vmul.f32 %v2828, 1.442695
        %v2880 = vpow.pop %v2879
        %v2881 = vmul.f32 %v2829, 1.442695
        %v2882 = vpow.pop %v2881
        %v2883 = vmul.f32 %v2830, 1.442695
        %v2884 = vpow.pop %v2883
        %v2885 = vmul.f32 %v2831, 1.442695
        %v2886 = vpow.pop %v2885
        %v2887 = vmul.f32 %v2832, 1.442695
        %v2888 = vpow.pop %v2887
        %v2889 = vmul.f32 %v2833, 1.442695
        %v2890 = vpow.pop %v2889
        %v2891 = vmul.f32 %v2834, 1.442695
        %v2892 = vpow.pop %v2891
        %v2893 = vmul.f32 %v2835, 1.442695
        %v2894 = vpow.pop %v2893
        %v2895 = vmul.f32 %v2836, 1.442695
        %v2896 = vpow.pop %v2895
        %v2897 = vmul.f32 %v2837, 1.442695
        %v2898 = vpow.pop %v2897
        %v2899 = vmul.f32 %v2838, 1.442695
        %v2900 = vpow.pop %v2899
        %v2901 = vmul.f32 %v2839, 1.442695
        %v2902 = vpow.pop %v2901
        %v2903 = vmul.f32 %v2840, 1.442695
        %v2904 = vpow.pop %v2903
        %v2905 = vmul.f32 %v2842, %v1164
        %v2906 = vmul.f32 %v2844, %v1165
        %v2907 = vmul.f32 %v2846, %v1166
        %v2908 = vmul.f32 %v2848, %v1167
        %v2909 = vmul.f32 %v2850, %v1168
        %v2910 = vmul.f32 %v2852, %v1169
        %v2911 = vmul.f32 %v2854, %v1170
        %v2912 = vmul.f32 %v2856, %v1171
        %v2913 = vmul.f32 %v2858, %v1172
        %v2914 = vmul.f32 %v2860, %v1173
        %v2915 = vmul.f32 %v2862, %v1174
        %v2916 = vmul.f32 %v2864, %v1175
        %v2917 = vmul.f32 %v2866, %v1176
        %v2918 = vmul.f32 %v2868, %v1177
        %v2919 = vmul.f32 %v2870, %v1178
        %v2920 = vmul.f32 %v2872, %v1179
        %v2921 = vmul.f32 %v2874, %v1180
        %v2922 = vmul.f32 %v2876, %v1181
        %v2923 = vmul.f32 %v2878, %v1182
        %v2924 = vmul.f32 %v2880, %v1183
        %v2925 = vmul.f32 %v2882, %v1184
        %v2926 = vmul.f32 %v2884, %v1185
        %v2927 = vmul.f32 %v2886, %v1186
        %v2928 = vmul.f32 %v2888, %v1187
        %v2929 = vmul.f32 %v2890, %v1188
        %v2930 = vmul.f32 %v2892, %v1189
        %v2931 = vmul.f32 %v2894, %v1190
        %v2932 = vmul.f32 %v2896, %v1191
        %v2933 = vmul.f32 %v2898, %v1192
        %v2934 = vmul.f32 %v2900, %v1193
        %v2935 = vmul.f32 %v2902, %v1194
        %v2936 = vmul.f32 %v2904, %v1195
        %v2937 = vadd.f32 %v2905, %v2906
        %2938 = vadd.xlane.f32.xlu0 %v2937
        %v2939 = vpop.xlane.xlu0 %2938
        %v2940 = vadd.f32 %v2907, %v2908
        %2941 = vadd.xlane.f32.xlu0 %v2940
        %v2942 = vpop.xlane.xlu0 %2941
        %v2943 = vadd.f32 %v2909, %v2910
        %2944 = vadd.xlane.f32.xlu0 %v2943
        %v2945 = vpop.xlane.xlu0 %2944
        %v2946 = vadd.f32 %v2911, %v2912
        %2947 = vadd.xlane.f32.xlu0 %v2946
        %v2948 = vpop.xlane.xlu0 %2947
        %v2949 = vadd.f32 %v2913, %v2914
        %2950 = vadd.xlane.f32.xlu0 %v2949
        %v2951 = vpop.xlane.xlu0 %2950
        %v2952 = vadd.f32 %v2915, %v2916
        %2953 = vadd.xlane.f32.xlu0 %v2952
        %v2954 = vpop.xlane.xlu0 %2953
        %v2955 = vadd.f32 %v2917, %v2918
        %2956 = vadd.xlane.f32.xlu0 %v2955
        %v2957 = vpop.xlane.xlu0 %2956
        %v2958 = vadd.f32 %v2919, %v2920
        %2959 = vadd.xlane.f32.xlu0 %v2958
        %v2960 = vpop.xlane.xlu0 %2959
        %v2961 = vadd.f32 %v2921, %v2922
        %2962 = vadd.xlane.f32.xlu0 %v2961
        %v2963 = vpop.xlane.xlu0 %2962
        %v2964 = vadd.f32 %v2923, %v2924
        %2965 = vadd.xlane.f32.xlu0 %v2964
        %v2966 = vpop.xlane.xlu0 %2965
        %v2967 = vadd.f32 %v2925, %v2926
        %2968 = vadd.xlane.f32.xlu0 %v2967
        %v2969 = vpop.xlane.xlu0 %2968
        %v2970 = vadd.f32 %v2927, %v2928
        %2971 = vadd.xlane.f32.xlu0 %v2970
        %v2972 = vpop.xlane.xlu0 %2971
        %v2973 = vadd.f32 %v2929, %v2930
        %2974 = vadd.xlane.f32.xlu0 %v2973
        %v2975 = vpop.xlane.xlu0 %2974
        %v2976 = vadd.f32 %v2931, %v2932
        %2977 = vadd.xlane.f32.xlu0 %v2976
        %v2978 = vpop.xlane.xlu0 %2977
        %v2979 = vadd.f32 %v2933, %v2934
        %2980 = vadd.xlane.f32.xlu0 %v2979
        %v2981 = vpop.xlane.xlu0 %2980
        %v2982 = vadd.f32 %v2935, %v2936
        %2983 = vadd.xlane.f32.xlu0 %v2982
        %v2984 = vpop.xlane.xlu0 %2983
        %v2985 = vmax.f32 %v2939, 1e-20
        %v2986 = vmax.f32 %v2942, 1e-20
        %v2987 = vmax.f32 %v2945, 1e-20
        %v2988 = vmax.f32 %v2948, 1e-20
        %v2989 = vmax.f32 %v2951, 1e-20
        %v2990 = vmax.f32 %v2954, 1e-20
        %v2991 = vmax.f32 %v2957, 1e-20
        %v2992 = vmax.f32 %v2960, 1e-20
        %v2993 = vmax.f32 %v2963, 1e-20
        %v2994 = vmax.f32 %v2966, 1e-20
        %v2995 = vmax.f32 %v2969, 1e-20
        %v2996 = vmax.f32 %v2972, 1e-20
        %v2997 = vmax.f32 %v2975, 1e-20
        %v2998 = vmax.f32 %v2978, 1e-20
        %v2999 = vmax.f32 %v2981, 1e-20
        %v3000 = vmax.f32 %v2984, 1e-20
        %v3001 = vrcp.pop %v2985
        %v3002 = vrcp.pop %v2986
        %v3003 = vrcp.pop %v2987
        %v3004 = vrcp.pop %v2988
        %v3005 = vrcp.pop %v2989
        %v3006 = vrcp.pop %v2990
        %v3007 = vrcp.pop %v2991
        %v3008 = vrcp.pop %v2992
        %v3009 = vrcp.pop %v2993
        %v3010 = vrcp.pop %v2994
        %v3011 = vrcp.pop %v2995
        %v3012 = vrcp.pop %v2996
        %v3013 = vrcp.pop %v2997
        %v3014 = vrcp.pop %v2998
        %v3015 = vrcp.pop %v2999
        %v3016 = vrcp.pop %v3000
        %v3017 = vpack.c.bf16 %v2907, %v2905
        %v3018 = vpack.c.bf16 %v2908, %v2906
        %v3019 = vpack.c.bf16 %v2911, %v2909
        %v3020 = vpack.c.bf16 %v2912, %v2910
        %v3021 = vpack.c.bf16 %v2915, %v2913
        %v3022 = vpack.c.bf16 %v2916, %v2914
        %v3023 = vpack.c.bf16 %v2919, %v2917
        %v3024 = vpack.c.bf16 %v2920, %v2918
        %v3025 = vpack.c.bf16 %v2923, %v2921
        %v3026 = vpack.c.bf16 %v2924, %v2922
        %v3027 = vpack.c.bf16 %v2927, %v2925
        %v3028 = vpack.c.bf16 %v2928, %v2926
        %v3029 = vpack.c.bf16 %v2931, %v2929
        %v3030 = vpack.c.bf16 %v2932, %v2930
        %v3031 = vpack.c.bf16 %v2935, %v2933
        %v3032 = vpack.c.bf16 %v2936, %v2934
        %3049 = vrot.lane.b32.xlu0 %v1484, 96
        %v3050 = vpop.permute.xlu0 %3049
        %3051 = vrot.lane.b32.xlu0 %v1485, 96
        %v3052 = vpop.permute.xlu0 %3051
        %3053 = vrot.lane.b32.xlu0 %v1486, 96
        %v3054 = vpop.permute.xlu0 %3053
        %3055 = vrot.lane.b32.xlu0 %v1487, 96
        %v3056 = vpop.permute.xlu0 %3055
        %3057 = vrot.lane.b32.xlu0 %v1488, 96
        %v3058 = vpop.permute.xlu0 %3057
        %3059 = vrot.lane.b32.xlu0 %v1489, 96
        %v3060 = vpop.permute.xlu0 %3059
        %3061 = vrot.lane.b32.xlu0 %v1490, 96
        %v3062 = vpop.permute.xlu0 %3061
        %3063 = vrot.lane.b32.xlu0 %v1491, 96
        %v3064 = vpop.permute.xlu0 %3063
        %3065 = vrot.lane.b32.xlu0 %v1492, 96
        %v3066 = vpop.permute.xlu0 %3065
        %3067 = vrot.lane.b32.xlu0 %v1493, 96
        %v3068 = vpop.permute.xlu0 %3067
        %3069 = vrot.lane.b32.xlu0 %v1494, 96
        %v3070 = vpop.permute.xlu0 %3069
        %3071 = vrot.lane.b32.xlu0 %v1495, 96
        %v3072 = vpop.permute.xlu0 %3071
        %3073 = vrot.lane.b32.xlu0 %v1496, 96
        %v3074 = vpop.permute.xlu0 %3073
        %3075 = vrot.lane.b32.xlu0 %v1497, 96
        %v3076 = vpop.permute.xlu0 %3075
        %3077 = vrot.lane.b32.xlu0 %v1498, 96
        %v3078 = vpop.permute.xlu0 %3077
        %3079 = vrot.lane.b32.xlu0 %v1499, 96
        %v3080 = vpop.permute.xlu0 %3079
        %3097 = vmatprep.subr.bf16.mxu0 0
        %3098 = vmatpush1.bf16.msra.mxu0 %v3050
        %3099 = vmatprep.subr.bf16.mxu0 0
        %3100 = vmatpush1.bf16.msra.mxu0 %v3052
        %3101 = vmatprep.subr.bf16.mxu0 0
        %3102 = vmatpush1.bf16.msra.mxu0 %v3054
        %3103 = vmatprep.subr.bf16.mxu0 0
        %3104 = vmatpush1.bf16.msra.mxu0 %v3056
        %3105 = vmatprep.subr.bf16.mxu0 0
        %3106 = vmatpush1.bf16.msra.mxu0 %v3058
        %3107 = vmatprep.subr.bf16.mxu0 0
        %3108 = vmatpush1.bf16.msra.mxu0 %v3060
        %3109 = vmatprep.subr.bf16.mxu0 0
        %3110 = vmatpush1.bf16.msra.mxu0 %v3062
        %3111 = vmatprep.subr.bf16.mxu0 0
        %3112 = vmatpush1.bf16.msra.mxu0 %v3064
        %3113 = vmatprep.subr.bf16.mxu0 0
        %3114 = vmatpush1.bf16.msra.mxu0 %v3066
        %3115 = vmatprep.subr.bf16.mxu0 0
        %3116 = vmatpush1.bf16.msra.mxu0 %v3068
        %3117 = vmatprep.subr.bf16.mxu0 0
        %3118 = vmatpush1.bf16.msra.mxu0 %v3070
        %3119 = vmatprep.subr.bf16.mxu0 0
        %3120 = vmatpush1.bf16.msra.mxu0 %v3072
        %3121 = vmatprep.subr.bf16.mxu0 0
        %3122 = vmatpush1.bf16.msra.mxu0 %v3074
        %3123 = vmatprep.subr.bf16.mxu0 0
        %3124 = vmatpush1.bf16.msra.mxu0 %v3076
        %3125 = vmatprep.subr.bf16.mxu0 0
        %3126 = vmatpush1.bf16.msra.mxu0 %v3078
        %3127 = vmatprep.subr.bf16.mxu0 0
        %3128 = vmatpush1.bf16.msra.mxu0 %v3080
        %3129 = vmatprep.mubr.bf16.mxu0 %v3018
        %3130 = vmatmul.mubr.bf16.gmra.mrb[0].mxu0 %v3017
        %v3131 = vpop.f32.mrb[0].mxu0
        %v3132 = vadd.f32 0.0, %v3131
        %v3133 = vpop.f32.mrb[0].mxu0
        %v3134 = vpop.f32.mrb[0].mxu0
        %v3135 = vadd.f32 0.0, %v3134
        %v3136 = vpop.f32.mrb[0].mxu0
        %3137 = vmatprep.mubr.bf16.mxu0 %v3020
        %3138 = vmatmul.mubr.bf16.gmra.mrb[0].mxu0 %v3019
        %v3139 = vpop.f32.mrb[0].mxu0
        %v3140 = vadd.f32 0.0, %v3139
        %v3141 = vpop.f32.mrb[0].mxu0
        %v3142 = vpop.f32.mrb[0].mxu0
        %v3143 = vadd.f32 0.0, %v3142
        %v3144 = vpop.f32.mrb[0].mxu0
        %3145 = vmatprep.mubr.bf16.mxu0 %v3022
        %3146 = vmatmul.mubr.bf16.gmra.mrb[0].mxu0 %v3021
        %v3147 = vpop.f32.mrb[0].mxu0
        %v3148 = vadd.f32 0.0, %v3147
        %v3149 = vpop.f32.mrb[0].mxu0
        %v3150 = vpop.f32.mrb[0].mxu0
        %v3151 = vadd.f32 0.0, %v3150
        %v3152 = vpop.f32.mrb[0].mxu0
        %3153 = vmatprep.mubr.bf16.mxu0 %v3024
        %3154 = vmatmul.mubr.bf16.gmra.mrb[0].mxu0 %v3023
        %v3155 = vpop.f32.mrb[0].mxu0
        %v3156 = vadd.f32 0.0, %v3155
        %v3157 = vpop.f32.mrb[0].mxu0
        %v3158 = vpop.f32.mrb[0].mxu0
        %v3159 = vadd.f32 0.0, %v3158
        %v3160 = vpop.f32.mrb[0].mxu0
        %3161 = vmatprep.mubr.bf16.mxu0 %v3026
        %3162 = vmatmul.mubr.bf16.gmra.mrb[0].mxu0 %v3025
        %v3163 = vpop.f32.mrb[0].mxu0
        %v3164 = vadd.f32 0.0, %v3163
        %v3165 = vpop.f32.mrb[0].mxu0
        %v3166 = vpop.f32.mrb[0].mxu0
        %v3167 = vadd.f32 0.0, %v3166
        %v3168 = vpop.f32.mrb[0].mxu0
        %3169 = vmatprep.mubr.bf16.mxu0 %v3028
        %3170 = vmatmul.mubr.bf16.gmra.mrb[0].mxu0 %v3027
        %v3171 = vpop.f32.mrb[0].mxu0
        %v3172 = vadd.f32 0.0, %v3171
        %v3173 = vpop.f32.mrb[0].mxu0
        %v3174 = vpop.f32.mrb[0].mxu0
        %v3175 = vadd.f32 0.0, %v3174
        %v3176 = vpop.f32.mrb[0].mxu0
        %3177 = vmatprep.mubr.bf16.mxu0 %v3030
        %3178 = vmatmul.mubr.bf16.gmra.mrb[0].mxu0 %v3029
        %v3179 = vpop.f32.mrb[0].mxu0
        %v3180 = vadd.f32 0.0, %v3179
        %v3181 = vpop.f32.mrb[0].mxu0
        %v3182 = vpop.f32.mrb[0].mxu0
        %v3183 = vadd.f32 0.0, %v3182
        %v3184 = vpop.f32.mrb[0].mxu0
        %3185 = vmatprep.mubr.bf16.mxu0 %v3032
        %3186 = vmatmul.mubr.bf16.gmra.mrb[0].mxu0 %v3031
        %v3187 = vpop.f32.mrb[0].mxu0
        %v3188 = vadd.f32 0.0, %v3187
        %v3189 = vpop.f32.mrb[0].mxu0
        %v3190 = vpop.f32.mrb[0].mxu0
        %v3191 = vadd.f32 0.0, %v3190
        %v3192 = vpop.f32.mrb[0].mxu0
        %3193 = vdwg.mxu0
        %v3194 = vmul.f32 %v3132, %v3001
        %v3195 = vmul.f32 %v3135, %v3002
        %v3196 = vmul.f32 %v3140, %v3003
        %v3197 = vmul.f32 %v3143, %v3004
        %v3198 = vmul.f32 %v3148, %v3005
        %v3199 = vmul.f32 %v3151, %v3006
        %v3200 = vmul.f32 %v3156, %v3007
        %v3201 = vmul.f32 %v3159, %v3008
        %v3202 = vmul.f32 %v3164, %v3009
        %v3203 = vmul.f32 %v3167, %v3010
        %v3204 = vmul.f32 %v3172, %v3011
        %v3205 = vmul.f32 %v3175, %v3012
        %v3206 = vmul.f32 %v3180, %v3013
        %v3207 = vmul.f32 %v3183, %v3014
        %v3208 = vmul.f32 %v3188, %v3015
        %v3209 = vmul.f32 %v3191, %v3016
        %s3210 = sld [smem:[#allocation14 + $0x2]]
        %v3211 = vstv %s3210
        %v3212 = vmul.f32 %v1260, %v3211
        %v3213 = vmul.f32 %v1261, %v3211
        %v3214 = vmul.f32 %v1262, %v3211
        %v3215 = vmul.f32 %v1263, %v3211
        %v3216 = vmul.f32 %v1264, %v3211
        %v3217 = vmul.f32 %v1265, %v3211
        %v3218 = vmul.f32 %v1266, %v3211
        %v3219 = vmul.f32 %v1267, %v3211
        %v3220 = vmul.f32 %v1268, %v3211
        %v3221 = vmul.f32 %v1269, %v3211
        %v3222 = vmul.f32 %v1270, %v3211
        %v3223 = vmul.f32 %v1271, %v3211
        %v3224 = vmul.f32 %v1272, %v3211
        %v3225 = vmul.f32 %v1273, %v3211
        %v3226 = vmul.f32 %v1274, %v3211
        %v3227 = vmul.f32 %v1275, %v3211
        %v3228 = vmul.f32 %v1276, %v3211
        %v3229 = vmul.f32 %v1277, %v3211
        %v3230 = vmul.f32 %v1278, %v3211
        %v3231 = vmul.f32 %v1279, %v3211
        %v3232 = vmul.f32 %v1280, %v3211
        %v3233 = vmul.f32 %v1281, %v3211
        %v3234 = vmul.f32 %v1282, %v3211
        %v3235 = vmul.f32 %v1283, %v3211
        %v3236 = vmul.f32 %v1284, %v3211
        %v3237 = vmul.f32 %v1285, %v3211
        %v3238 = vmul.f32 %v1286, %v3211
        %v3239 = vmul.f32 %v1287, %v3211
        %v3240 = vmul.f32 %v1288, %v3211
        %v3241 = vmul.f32 %v1289, %v3211
        %v3242 = vmul.f32 %v1290, %v3211
        %v3243 = vmul.f32 %v1291, %v3211
        %s3244 = sld [smem:[#allocation14 + $0x82]]
        %v3245 = vstv %s3244
        %v3246 = vmul.f32 %v1356, %v3245
        %v3247 = vmul.f32 %v1357, %v3245
        %v3248 = vmul.f32 %v1358, %v3245
        %v3249 = vmul.f32 %v1359, %v3245
        %v3250 = vmul.f32 %v1360, %v3245
        %v3251 = vmul.f32 %v1361, %v3245
        %v3252 = vmul.f32 %v1362, %v3245
        %v3253 = vmul.f32 %v1363, %v3245
        %v3254 = vmul.f32 %v1364, %v3245
        %v3255 = vmul.f32 %v1365, %v3245
        %v3256 = vmul.f32 %v1366, %v3245
        %v3257 = vmul.f32 %v1367, %v3245
        %v3258 = vmul.f32 %v1368, %v3245
        %v3259 = vmul.f32 %v1369, %v3245
        %v3260 = vmul.f32 %v1370, %v3245
        %v3261 = vmul.f32 %v1371, %v3245
        %v3262 = vmul.f32 %v1372, %v3245
        %v3263 = vmul.f32 %v1373, %v3245
        %v3264 = vmul.f32 %v1374, %v3245
        %v3265 = vmul.f32 %v1375, %v3245
        %v3266 = vmul.f32 %v1376, %v3245
        %v3267 = vmul.f32 %v1377, %v3245
        %v3268 = vmul.f32 %v1378, %v3245
        %v3269 = vmul.f32 %v1379, %v3245
        %v3270 = vmul.f32 %v1380, %v3245
        %v3271 = vmul.f32 %v1381, %v3245
        %v3272 = vmul.f32 %v1382, %v3245
        %v3273 = vmul.f32 %v1383, %v3245
        %v3274 = vmul.f32 %v1384, %v3245
        %v3275 = vmul.f32 %v1385, %v3245
        %v3276 = vmul.f32 %v1386, %v3245
        %v3277 = vmul.f32 %v1387, %v3245
        %v3278 = vadd.f32 %v3212, %v3246
        %v3279 = vadd.f32 %v3213, %v3247
        %v3280 = vadd.f32 %v3214, %v3248
        %v3281 = vadd.f32 %v3215, %v3249
        %v3282 = vadd.f32 %v3216, %v3250
        %v3283 = vadd.f32 %v3217, %v3251
        %v3284 = vadd.f32 %v3218, %v3252
        %v3285 = vadd.f32 %v3219, %v3253
        %v3286 = vadd.f32 %v3220, %v3254
        %v3287 = vadd.f32 %v3221, %v3255
        %v3288 = vadd.f32 %v3222, %v3256
        %v3289 = vadd.f32 %v3223, %v3257
        %v3290 = vadd.f32 %v3224, %v3258
        %v3291 = vadd.f32 %v3225, %v3259
        %v3292 = vadd.f32 %v3226, %v3260
        %v3293 = vadd.f32 %v3227, %v3261
        %v3294 = vadd.f32 %v3228, %v3262
        %v3295 = vadd.f32 %v3229, %v3263
        %v3296 = vadd.f32 %v3230, %v3264
        %v3297 = vadd.f32 %v3231, %v3265
        %v3298 = vadd.f32 %v3232, %v3266
        %v3299 = vadd.f32 %v3233, %v3267
        %v3300 = vadd.f32 %v3234, %v3268
        %v3301 = vadd.f32 %v3235, %v3269
        %v3302 = vadd.f32 %v3236, %v3270
        %v3303 = vadd.f32 %v3237, %v3271
        %v3304 = vadd.f32 %v3238, %v3272
        %v3305 = vadd.f32 %v3239, %v3273
        %v3306 = vadd.f32 %v3240, %v3274
        %v3307 = vadd.f32 %v3241, %v3275
        %v3308 = vadd.f32 %v3242, %v3276
        %v3309 = vadd.f32 %v3243, %v3277
        %s3310 = sld [smem:[#allocation14 + $0x102]]
        %v3311 = vstv %s3310
        %v3312 = vmul.f32 %v1452, %v3311
        %v3313 = vmul.f32 %v1453, %v3311
        %v3314 = vmul.f32 %v1454, %v3311
        %v3315 = vmul.f32 %v1455, %v3311
        %v3316 = vmul.f32 %v1456, %v3311
        %v3317 = vmul.f32 %v1457, %v3311
        %v3318 = vmul.f32 %v1458, %v3311
        %v3319 = vmul.f32 %v1459, %v3311
        %v3320 = vmul.f32 %v1460, %v3311
        %v3321 = vmul.f32 %v1461, %v3311
        %v3322 = vmul.f32 %v1462, %v3311
        %v3323 = vmul.f32 %v1463, %v3311
        %v3324 = vmul.f32 %v1464, %v3311
        %v3325 = vmul.f32 %v1465, %v3311
        %v3326 = vmul.f32 %v1466, %v3311
        %v3327 = vmul.f32 %v1467, %v3311
        %v3328 = vmul.f32 %v1468, %v3311
        %v3329 = vmul.f32 %v1469, %v3311
        %v3330 = vmul.f32 %v1470, %v3311
        %v3331 = vmul.f32 %v1471, %v3311
        %v3332 = vmul.f32 %v1472, %v3311
        %v3333 = vmul.f32 %v1473, %v3311
        %v3334 = vmul.f32 %v1474, %v3311
        %v3335 = vmul.f32 %v1475, %v3311
        %v3336 = vmul.f32 %v1476, %v3311
        %v3337 = vmul.f32 %v1477, %v3311
        %v3338 = vmul.f32 %v1478, %v3311
        %v3339 = vmul.f32 %v1479, %v3311
        %v3340 = vmul.f32 %v1480, %v3311
        %v3341 = vmul.f32 %v1481, %v3311
        %v3342 = vmul.f32 %v1482, %v3311
        %v3343 = vmul.f32 %v1483, %v3311
        %v3344 = vadd.f32 %v3278, %v3312
        %v3345 = vadd.f32 %v3279, %v3313
        %v3346 = vadd.f32 %v3280, %v3314
        %v3347 = vadd.f32 %v3281, %v3315
        %v3348 = vadd.f32 %v3282, %v3316
        %v3349 = vadd.f32 %v3283, %v3317
        %v3350 = vadd.f32 %v3284, %v3318
        %v3351 = vadd.f32 %v3285, %v3319
        %v3352 = vadd.f32 %v3286, %v3320
        %v3353 = vadd.f32 %v3287, %v3321
        %v3354 = vadd.f32 %v3288, %v3322
        %v3355 = vadd.f32 %v3289, %v3323
        %v3356 = vadd.f32 %v3290, %v3324
        %v3357 = vadd.f32 %v3291, %v3325
        %v3358 = vadd.f32 %v3292, %v3326
        %v3359 = vadd.f32 %v3293, %v3327
        %v3360 = vadd.f32 %v3294, %v3328
        %v3361 = vadd.f32 %v3295, %v3329
        %v3362 = vadd.f32 %v3296, %v3330
        %v3363 = vadd.f32 %v3297, %v3331
        %v3364 = vadd.f32 %v3298, %v3332
        %v3365 = vadd.f32 %v3299, %v3333
        %v3366 = vadd.f32 %v3300, %v3334
        %v3367 = vadd.f32 %v3301, %v3335
        %v3368 = vadd.f32 %v3302, %v3336
        %v3369 = vadd.f32 %v3303, %v3337
        %v3370 = vadd.f32 %v3304, %v3338
        %v3371 = vadd.f32 %v3305, %v3339
        %v3372 = vadd.f32 %v3306, %v3340
        %v3373 = vadd.f32 %v3307, %v3341
        %v3374 = vadd.f32 %v3308, %v3342
        %v3375 = vadd.f32 %v3309, %v3343
        %3376 = vset.pattern.permute.xlu0 2
        %3377 = vperm.xlu0 %3376, %v990
        %v3378 = vpop.permute.xlu0 %3377
        %3380 = vset.pattern.permute.xlu0 2
        %3381 = vperm.xlu0 %3380, %v995
        %v3382 = vpop.permute.xlu0 %3381
        %3384 = vset.pattern.permute.xlu0 2
        %3385 = vperm.xlu0 %3384, %v1000
        %v3386 = vpop.permute.xlu0 %3385
        %3388 = vset.pattern.permute.xlu0 2
        %3389 = vperm.xlu0 %3388, %v1005
        %v3390 = vpop.permute.xlu0 %3389
        %3392 = vset.pattern.permute.xlu0 2
        %3393 = vperm.xlu0 %3392, %v1010
        %v3394 = vpop.permute.xlu0 %3393
        %3396 = vset.pattern.permute.xlu0 2
        %3397 = vperm.xlu0 %3396, %v1015
        %v3398 = vpop.permute.xlu0 %3397
        %3400 = vset.pattern.permute.xlu0 2
        %3401 = vperm.xlu0 %3400, %v1020
        %v3402 = vpop.permute.xlu0 %3401
        %3404 = vset.pattern.permute.xlu0 2
        %3405 = vperm.xlu0 %3404, %v1025
        %v3406 = vpop.permute.xlu0 %3405
        %3408 = vset.pattern.permute.xlu0 2
        %3409 = vperm.xlu0 %3408, %v1030
        %v3410 = vpop.permute.xlu0 %3409
        %3412 = vset.pattern.permute.xlu0 2
        %3413 = vperm.xlu0 %3412, %v1035
        %v3414 = vpop.permute.xlu0 %3413
        %3416 = vset.pattern.permute.xlu0 2
        %3417 = vperm.xlu0 %3416, %v1040
        %v3418 = vpop.permute.xlu0 %3417
        %3420 = vset.pattern.permute.xlu0 2
        %3421 = vperm.xlu0 %3420, %v1045
        %v3422 = vpop.permute.xlu0 %3421
        %3424 = vset.pattern.permute.xlu0 2
        %3425 = vperm.xlu0 %3424, %v1050
        %v3426 = vpop.permute.xlu0 %3425
        %3428 = vset.pattern.permute.xlu0 2
        %3429 = vperm.xlu0 %3428, %v1055
        %v3430 = vpop.permute.xlu0 %3429
        %3432 = vset.pattern.permute.xlu0 2
        %3433 = vperm.xlu0 %3432, %v1060
        %v3434 = vpop.permute.xlu0 %3433
        %3436 = vset.pattern.permute.xlu0 2
        %3437 = vperm.xlu0 %3436, %v1065
        %v3438 = vpop.permute.xlu0 %3437
        %v3440 = vlaneseq
        %v3441 = vshrl.u32 %v3440, 7
        %v3442 = vsub.s32 2, %v3441
        %v3443 = vrot.slane %v851, %v3442
        %v3444 = vlaneseq
        %v3445 = vshrl.u32 %v3444, 7
        %v3446 = vsub.s32 2, %v3445
        %v3447 = vrot.slane %v853, %v3446
        %v3448 = vadd.f32 %v3378, %v3443
        %v3449 = vadd.f32 %v3378, %v3447
        %v3450 = vadd.f32 %v3382, %v3443
        %v3451 = vadd.f32 %v3382, %v3447
        %v3452 = vadd.f32 %v3386, %v3443
        %v3453 = vadd.f32 %v3386, %v3447
        %v3454 = vadd.f32 %v3390, %v3443
        %v3455 = vadd.f32 %v3390, %v3447
        %v3456 = vadd.f32 %v3394, %v3443
        %v3457 = vadd.f32 %v3394, %v3447
        %v3458 = vadd.f32 %v3398, %v3443
        %v3459 = vadd.f32 %v3398, %v3447
        %v3460 = vadd.f32 %v3402, %v3443
        %v3461 = vadd.f32 %v3402, %v3447
        %v3462 = vadd.f32 %v3406, %v3443
        %v3463 = vadd.f32 %v3406, %v3447
        %v3464 = vadd.f32 %v3410, %v3443
        %v3465 = vadd.f32 %v3410, %v3447
        %v3466 = vadd.f32 %v3414, %v3443
        %v3467 = vadd.f32 %v3414, %v3447
        %v3468 = vadd.f32 %v3418, %v3443
        %v3469 = vadd.f32 %v3418, %v3447
        %v3470 = vadd.f32 %v3422, %v3443
        %v3471 = vadd.f32 %v3422, %v3447
        %v3472 = vadd.f32 %v3426, %v3443
        %v3473 = vadd.f32 %v3426, %v3447
        %v3474 = vadd.f32 %v3430, %v3443
        %v3475 = vadd.f32 %v3430, %v3447
        %v3476 = vadd.f32 %v3434, %v3443
        %v3477 = vadd.f32 %v3434, %v3447
        %v3478 = vadd.f32 %v3438, %v3443
        %v3479 = vadd.f32 %v3438, %v3447
        %v3480 = vadd.f32 %v3448, %v3344
        %v3481 = vadd.f32 %v3449, %v3345
        %v3482 = vadd.f32 %v3450, %v3346
        %v3483 = vadd.f32 %v3451, %v3347
        %v3484 = vadd.f32 %v3452, %v3348
        %v3485 = vadd.f32 %v3453, %v3349
        %v3486 = vadd.f32 %v3454, %v3350
        %v3487 = vadd.f32 %v3455, %v3351
        %v3488 = vadd.f32 %v3456, %v3352
        %v3489 = vadd.f32 %v3457, %v3353
        %v3490 = vadd.f32 %v3458, %v3354
        %v3491 = vadd.f32 %v3459, %v3355
        %v3492 = vadd.f32 %v3460, %v3356
        %v3493 = vadd.f32 %v3461, %v3357
        %v3494 = vadd.f32 %v3462, %v3358
        %v3495 = vadd.f32 %v3463, %v3359
        %v3496 = vadd.f32 %v3464, %v3360
        %v3497 = vadd.f32 %v3465, %v3361
        %v3498 = vadd.f32 %v3466, %v3362
        %v3499 = vadd.f32 %v3467, %v3363
        %v3500 = vadd.f32 %v3468, %v3364
        %v3501 = vadd.f32 %v3469, %v3365
        %v3502 = vadd.f32 %v3470, %v3366
        %v3503 = vadd.f32 %v3471, %v3367
        %v3504 = vadd.f32 %v3472, %v3368
        %v3505 = vadd.f32 %v3473, %v3369
        %v3506 = vadd.f32 %v3474, %v3370
        %v3507 = vadd.f32 %v3475, %v3371
        %v3508 = vadd.f32 %v3476, %v3372
        %v3509 = vadd.f32 %v3477, %v3373
        %v3510 = vadd.f32 %v3478, %v3374
        %v3511 = vadd.f32 %v3479, %v3375
        %vm3512 = vcmp.ge.f32.partialorder %v3480, 0.0
        %vm3513 = vcmp.ge.f32.partialorder %v3481, 0.0
        %vm3514 = vcmp.ge.f32.partialorder %v3482, 0.0
        %vm3515 = vcmp.ge.f32.partialorder %v3483, 0.0
        %vm3516 = vcmp.ge.f32.partialorder %v3484, 0.0
        %vm3517 = vcmp.ge.f32.partialorder %v3485, 0.0
        %vm3518 = vcmp.ge.f32.partialorder %v3486, 0.0
        %vm3519 = vcmp.ge.f32.partialorder %v3487, 0.0
        %vm3520 = vcmp.ge.f32.partialorder %v3488, 0.0
        %vm3521 = vcmp.ge.f32.partialorder %v3489, 0.0
        %vm3522 = vcmp.ge.f32.partialorder %v3490, 0.0
        %vm3523 = vcmp.ge.f32.partialorder %v3491, 0.0
        %vm3524 = vcmp.ge.f32.partialorder %v3492, 0.0
        %vm3525 = vcmp.ge.f32.partialorder %v3493, 0.0
        %vm3526 = vcmp.ge.f32.partialorder %v3494, 0.0
        %vm3527 = vcmp.ge.f32.partialorder %v3495, 0.0
        %vm3528 = vcmp.ge.f32.partialorder %v3496, 0.0
        %vm3529 = vcmp.ge.f32.partialorder %v3497, 0.0
        %vm3530 = vcmp.ge.f32.partialorder %v3498, 0.0
        %vm3531 = vcmp.ge.f32.partialorder %v3499, 0.0
        %vm3532 = vcmp.ge.f32.partialorder %v3500, 0.0
        %vm3533 = vcmp.ge.f32.partialorder %v3501, 0.0
        %vm3534 = vcmp.ge.f32.partialorder %v3502, 0.0
        %vm3535 = vcmp.ge.f32.partialorder %v3503, 0.0
        %vm3536 = vcmp.ge.f32.partialorder %v3504, 0.0
        %vm3537 = vcmp.ge.f32.partialorder %v3505, 0.0
        %vm3538 = vcmp.ge.f32.partialorder %v3506, 0.0
        %vm3539 = vcmp.ge.f32.partialorder %v3507, 0.0
        %vm3540 = vcmp.ge.f32.partialorder %v3508, 0.0
        %vm3541 = vcmp.ge.f32.partialorder %v3509, 0.0
        %vm3542 = vcmp.ge.f32.partialorder %v3510, 0.0
        %vm3543 = vcmp.ge.f32.partialorder %v3511, 0.0
        %v3544 = vmul.f32 %v3480, 0.2
        %v3545 = vmul.f32 %v3481, 0.2
        %v3546 = vmul.f32 %v3482, 0.2
        %v3547 = vmul.f32 %v3483, 0.2
        %v3548 = vmul.f32 %v3484, 0.2
        %v3549 = vmul.f32 %v3485, 0.2
        %v3550 = vmul.f32 %v3486, 0.2
        %v3551 = vmul.f32 %v3487, 0.2
        %v3552 = vmul.f32 %v3488, 0.2
        %v3553 = vmul.f32 %v3489, 0.2
        %v3554 = vmul.f32 %v3490, 0.2
        %v3555 = vmul.f32 %v3491, 0.2
        %v3556 = vmul.f32 %v3492, 0.2
        %v3557 = vmul.f32 %v3493, 0.2
        %v3558 = vmul.f32 %v3494, 0.2
        %v3559 = vmul.f32 %v3495, 0.2
        %v3560 = vmul.f32 %v3496, 0.2
        %v3561 = vmul.f32 %v3497, 0.2
        %v3562 = vmul.f32 %v3498, 0.2
        %v3563 = vmul.f32 %v3499, 0.2
        %v3564 = vmul.f32 %v3500, 0.2
        %v3565 = vmul.f32 %v3501, 0.2
        %v3566 = vmul.f32 %v3502, 0.2
        %v3567 = vmul.f32 %v3503, 0.2
        %v3568 = vmul.f32 %v3504, 0.2
        %v3569 = vmul.f32 %v3505, 0.2
        %v3570 = vmul.f32 %v3506, 0.2
        %v3571 = vmul.f32 %v3507, 0.2
        %v3572 = vmul.f32 %v3508, 0.2
        %v3573 = vmul.f32 %v3509, 0.2
        %v3574 = vmul.f32 %v3510, 0.2
        %v3575 = vmul.f32 %v3511, 0.2
        %v3576 = vsel %vm3512, %v3480, %v3544
        %v3577 = vsel %vm3513, %v3481, %v3545
        %v3578 = vsel %vm3514, %v3482, %v3546
        %v3579 = vsel %vm3515, %v3483, %v3547
        %v3580 = vsel %vm3516, %v3484, %v3548
        %v3581 = vsel %vm3517, %v3485, %v3549
        %v3582 = vsel %vm3518, %v3486, %v3550
        %v3583 = vsel %vm3519, %v3487, %v3551
        %v3584 = vsel %vm3520, %v3488, %v3552
        %v3585 = vsel %vm3521, %v3489, %v3553
        %v3586 = vsel %vm3522, %v3490, %v3554
        %v3587 = vsel %vm3523, %v3491, %v3555
        %v3588 = vsel %vm3524, %v3492, %v3556
        %v3589 = vsel %vm3525, %v3493, %v3557
        %v3590 = vsel %vm3526, %v3494, %v3558
        %v3591 = vsel %vm3527, %v3495, %v3559
        %v3592 = vsel %vm3528, %v3496, %v3560
        %v3593 = vsel %vm3529, %v3497, %v3561
        %v3594 = vsel %vm3530, %v3498, %v3562
        %v3595 = vsel %vm3531, %v3499, %v3563
        %v3596 = vsel %vm3532, %v3500, %v3564
        %v3597 = vsel %vm3533, %v3501, %v3565
        %v3598 = vsel %vm3534, %v3502, %v3566
        %v3599 = vsel %vm3535, %v3503, %v3567
        %v3600 = vsel %vm3536, %v3504, %v3568
        %v3601 = vsel %vm3537, %v3505, %v3569
        %v3602 = vsel %vm3538, %v3506, %v3570
        %v3603 = vsel %vm3539, %v3507, %v3571
        %v3604 = vsel %vm3540, %v3508, %v3572
        %v3605 = vsel %vm3541, %v3509, %v3573
        %v3606 = vsel %vm3542, %v3510, %v3574
        %v3607 = vsel %vm3543, %v3511, %v3575
        %v3608 = vsel %vm1100, %v3576, -1e+30
        %v3609 = vsel %vm1101, %v3577, -1e+30
        %v3610 = vsel %vm1102, %v3578, -1e+30
        %v3611 = vsel %vm1103, %v3579, -1e+30
        %v3612 = vsel %vm1104, %v3580, -1e+30
        %v3613 = vsel %vm1105, %v3581, -1e+30
        %v3614 = vsel %vm1106, %v3582, -1e+30
        %v3615 = vsel %vm1107, %v3583, -1e+30
        %v3616 = vsel %vm1108, %v3584, -1e+30
        %v3617 = vsel %vm1109, %v3585, -1e+30
        %v3618 = vsel %vm1110, %v3586, -1e+30
        %v3619 = vsel %vm1111, %v3587, -1e+30
        %v3620 = vsel %vm1112, %v3588, -1e+30
        %v3621 = vsel %vm1113, %v3589, -1e+30
        %v3622 = vsel %vm1114, %v3590, -1e+30
        %v3623 = vsel %vm1115, %v3591, -1e+30
        %v3624 = vsel %vm1116, %v3592, -1e+30
        %v3625 = vsel %vm1117, %v3593, -1e+30
        %v3626 = vsel %vm1118, %v3594, -1e+30
        %v3627 = vsel %vm1119, %v3595, -1e+30
        %v3628 = vsel %vm1120, %v3596, -1e+30
        %v3629 = vsel %vm1121, %v3597, -1e+30
        %v3630 = vsel %vm1122, %v3598, -1e+30
        %v3631 = vsel %vm1123, %v3599, -1e+30
        %v3632 = vsel %vm1124, %v3600, -1e+30
        %v3633 = vsel %vm1125, %v3601, -1e+30
        %v3634 = vsel %vm1126, %v3602, -1e+30
        %v3635 = vsel %vm1127, %v3603, -1e+30
        %v3636 = vsel %vm1128, %v3604, -1e+30
        %v3637 = vsel %vm1129, %v3605, -1e+30
        %v3638 = vsel %vm1130, %v3606, -1e+30
        %v3639 = vsel %vm1131, %v3607, -1e+30
        %v3640 = vmax.f32 %v3608, %v3609
        %3641 = vmax.xlane.f32.xlu0 %v3640
        %v3642 = vpop.xlane.xlu0 %3641
        %v3643 = vmax.f32 %v3610, %v3611
        %3644 = vmax.xlane.f32.xlu0 %v3643
        %v3645 = vpop.xlane.xlu0 %3644
        %v3646 = vmax.f32 %v3612, %v3613
        %3647 = vmax.xlane.f32.xlu0 %v3646
        %v3648 = vpop.xlane.xlu0 %3647
        %v3649 = vmax.f32 %v3614, %v3615
        %3650 = vmax.xlane.f32.xlu0 %v3649
        %v3651 = vpop.xlane.xlu0 %3650
        %v3652 = vmax.f32 %v3616, %v3617
        %3653 = vmax.xlane.f32.xlu0 %v3652
        %v3654 = vpop.xlane.xlu0 %3653
        %v3655 = vmax.f32 %v3618, %v3619
        %3656 = vmax.xlane.f32.xlu0 %v3655
        %v3657 = vpop.xlane.xlu0 %3656
        %v3658 = vmax.f32 %v3620, %v3621
        %3659 = vmax.xlane.f32.xlu0 %v3658
        %v3660 = vpop.xlane.xlu0 %3659
        %v3661 = vmax.f32 %v3622, %v3623
        %3662 = vmax.xlane.f32.xlu0 %v3661
        %v3663 = vpop.xlane.xlu0 %3662
        %v3664 = vmax.f32 %v3624, %v3625
        %3665 = vmax.xlane.f32.xlu0 %v3664
        %v3666 = vpop.xlane.xlu0 %3665
        %v3667 = vmax.f32 %v3626, %v3627
        %3668 = vmax.xlane.f32.xlu0 %v3667
        %v3669 = vpop.xlane.xlu0 %3668
        %v3670 = vmax.f32 %v3628, %v3629
        %3671 = vmax.xlane.f32.xlu0 %v3670
        %v3672 = vpop.xlane.xlu0 %3671
        %v3673 = vmax.f32 %v3630, %v3631
        %3674 = vmax.xlane.f32.xlu0 %v3673
        %v3675 = vpop.xlane.xlu0 %3674
        %v3676 = vmax.f32 %v3632, %v3633
        %3677 = vmax.xlane.f32.xlu0 %v3676
        %v3678 = vpop.xlane.xlu0 %3677
        %v3679 = vmax.f32 %v3634, %v3635
        %3680 = vmax.xlane.f32.xlu0 %v3679
        %v3681 = vpop.xlane.xlu0 %3680
        %v3682 = vmax.f32 %v3636, %v3637
        %3683 = vmax.xlane.f32.xlu0 %v3682
        %v3684 = vpop.xlane.xlu0 %3683
        %v3685 = vmax.f32 %v3638, %v3639
        %3686 = vmax.xlane.f32.xlu0 %v3685
        %v3687 = vpop.xlane.xlu0 %3686
        %v3688 = vsub.f32 %v3608, %v3642
        %v3689 = vsub.f32 %v3609, %v3642
        %v3690 = vsub.f32 %v3610, %v3645
        %v3691 = vsub.f32 %v3611, %v3645
        %v3692 = vsub.f32 %v3612, %v3648
        %v3693 = vsub.f32 %v3613, %v3648
        %v3694 = vsub.f32 %v3614, %v3651
        %v3695 = vsub.f32 %v3615, %v3651
        %v3696 = vsub.f32 %v3616, %v3654
        %v3697 = vsub.f32 %v3617, %v3654
        %v3698 = vsub.f32 %v3618, %v3657
        %v3699 = vsub.f32 %v3619, %v3657
        %v3700 = vsub.f32 %v3620, %v3660
        %v3701 = vsub.f32 %v3621, %v3660
        %v3702 = vsub.f32 %v3622, %v3663
        %v3703 = vsub.f32 %v3623, %v3663
        %v3704 = vsub.f32 %v3624, %v3666
        %v3705 = vsub.f32 %v3625, %v3666
        %v3706 = vsub.f32 %v3626, %v3669
        %v3707 = vsub.f32 %v3627, %v3669
        %v3708 = vsub.f32 %v3628, %v3672
        %v3709 = vsub.f32 %v3629, %v3672
        %v3710 = vsub.f32 %v3630, %v3675
        %v3711 = vsub.f32 %v3631, %v3675
        %v3712 = vsub.f32 %v3632, %v3678
        %v3713 = vsub.f32 %v3633, %v3678
        %v3714 = vsub.f32 %v3634, %v3681
        %v3715 = vsub.f32 %v3635, %v3681
        %v3716 = vsub.f32 %v3636, %v3684
        %v3717 = vsub.f32 %v3637, %v3684
        %v3718 = vsub.f32 %v3638, %v3687
        %v3719 = vsub.f32 %v3639, %v3687
        %v3720 = vmul.f32 %v3688, 1.442695
        %v3721 = vpow.pop %v3720
        %v3722 = vmul.f32 %v3689, 1.442695
        %v3723 = vpow.pop %v3722
        %v3724 = vmul.f32 %v3690, 1.442695
        %v3725 = vpow.pop %v3724
        %v3726 = vmul.f32 %v3691, 1.442695
        %v3727 = vpow.pop %v3726
        %v3728 = vmul.f32 %v3692, 1.442695
        %v3729 = vpow.pop %v3728
        %v3730 = vmul.f32 %v3693, 1.442695
        %v3731 = vpow.pop %v3730
        %v3732 = vmul.f32 %v3694, 1.442695
        %v3733 = vpow.pop %v3732
        %v3734 = vmul.f32 %v3695, 1.442695
        %v3735 = vpow.pop %v3734
        %v3736 = vmul.f32 %v3696, 1.442695
        %v3737 = vpow.pop %v3736
        %v3738 = vmul.f32 %v3697, 1.442695
        %v3739 = vpow.pop %v3738
        %v3740 = vmul.f32 %v3698, 1.442695
        %v3741 = vpow.pop %v3740
        %v3742 = vmul.f32 %v3699, 1.442695
        %v3743 = vpow.pop %v3742
        %v3744 = vmul.f32 %v3700, 1.442695
        %v3745 = vpow.pop %v3744
        %v3746 = vmul.f32 %v3701, 1.442695
        %v3747 = vpow.pop %v3746
        %v3748 = vmul.f32 %v3702, 1.442695
        %v3749 = vpow.pop %v3748
        %v3750 = vmul.f32 %v3703, 1.442695
        %v3751 = vpow.pop %v3750
        %v3752 = vmul.f32 %v3704, 1.442695
        %v3753 = vpow.pop %v3752
        %v3754 = vmul.f32 %v3705, 1.442695
        %v3755 = vpow.pop %v3754
        %v3756 = vmul.f32 %v3706, 1.442695
        %v3757 = vpow.pop %v3756
        %v3758 = vmul.f32 %v3707, 1.442695
        %v3759 = vpow.pop %v3758
        %v3760 = vmul.f32 %v3708, 1.442695
        %v3761 = vpow.pop %v3760
        %v3762 = vmul.f32 %v3709, 1.442695
        %v3763 = vpow.pop %v3762
        %v3764 = vmul.f32 %v3710, 1.442695
        %v3765 = vpow.pop %v3764
        %v3766 = vmul.f32 %v3711, 1.442695
        %v3767 = vpow.pop %v3766
        %v3768 = vmul.f32 %v3712, 1.442695
        %v3769 = vpow.pop %v3768
        %v3770 = vmul.f32 %v3713, 1.442695
        %v3771 = vpow.pop %v3770
        %v3772 = vmul.f32 %v3714, 1.442695
        %v3773 = vpow.pop %v3772
        %v3774 = vmul.f32 %v3715, 1.442695
        %v3775 = vpow.pop %v3774
        %v3776 = vmul.f32 %v3716, 1.442695
        %v3777 = vpow.pop %v3776
        %v3778 = vmul.f32 %v3717, 1.442695
        %v3779 = vpow.pop %v3778
        %v3780 = vmul.f32 %v3718, 1.442695
        %v3781 = vpow.pop %v3780
        %v3782 = vmul.f32 %v3719, 1.442695
        %v3783 = vpow.pop %v3782
        %v3784 = vmul.f32 %v3721, %v1164
        %v3785 = vmul.f32 %v3723, %v1165
        %v3786 = vmul.f32 %v3725, %v1166
        %v3787 = vmul.f32 %v3727, %v1167
        %v3788 = vmul.f32 %v3729, %v1168
        %v3789 = vmul.f32 %v3731, %v1169
        %v3790 = vmul.f32 %v3733, %v1170
        %v3791 = vmul.f32 %v3735, %v1171
        %v3792 = vmul.f32 %v3737, %v1172
        %v3793 = vmul.f32 %v3739, %v1173
        %v3794 = vmul.f32 %v3741, %v1174
        %v3795 = vmul.f32 %v3743, %v1175
        %v3796 = vmul.f32 %v3745, %v1176
        %v3797 = vmul.f32 %v3747, %v1177
        %v3798 = vmul.f32 %v3749, %v1178
        %v3799 = vmul.f32 %v3751, %v1179
        %v3800 = vmul.f32 %v3753, %v1180
        %v3801 = vmul.f32 %v3755, %v1181
        %v3802 = vmul.f32 %v3757, %v1182
        %v3803 = vmul.f32 %v3759, %v1183
        %v3804 = vmul.f32 %v3761, %v1184
        %v3805 = vmul.f32 %v3763, %v1185
        %v3806 = vmul.f32 %v3765, %v1186
        %v3807 = vmul.f32 %v3767, %v1187
        %v3808 = vmul.f32 %v3769, %v1188
        %v3809 = vmul.f32 %v3771, %v1189
        %v3810 = vmul.f32 %v3773, %v1190
        %v3811 = vmul.f32 %v3775, %v1191
        %v3812 = vmul.f32 %v3777, %v1192
        %v3813 = vmul.f32 %v3779, %v1193
        %v3814 = vmul.f32 %v3781, %v1194
        %v3815 = vmul.f32 %v3783, %v1195
        %v3816 = vadd.f32 %v3784, %v3785
        %3817 = vadd.xlane.f32.xlu0 %v3816
        %v3818 = vpop.xlane.xlu0 %3817
        %v3819 = vadd.f32 %v3786, %v3787
        %3820 = vadd.xlane.f32.xlu0 %v3819
        %v3821 = vpop.xlane.xlu0 %3820
        %v3822 = vadd.f32 %v3788, %v3789
        %3823 = vadd.xlane.f32.xlu0 %v3822
        %v3824 = vpop.xlane.xlu0 %3823
        %v3825 = vadd.f32 %v3790, %v3791
        %3826 = vadd.xlane.f32.xlu0 %v3825
        %v3827 = vpop.xlane.xlu0 %3826
        %v3828 = vadd.f32 %v3792, %v3793
        %3829 = vadd.xlane.f32.xlu0 %v3828
        %v3830 = vpop.xlane.xlu0 %3829
        %v3831 = vadd.f32 %v3794, %v3795
        %3832 = vadd.xlane.f32.xlu0 %v3831
        %v3833 = vpop.xlane.xlu0 %3832
        %v3834 = vadd.f32 %v3796, %v3797
        %3835 = vadd.xlane.f32.xlu0 %v3834
        %v3836 = vpop.xlane.xlu0 %3835
        %v3837 = vadd.f32 %v3798, %v3799
        %3838 = vadd.xlane.f32.xlu0 %v3837
        %v3839 = vpop.xlane.xlu0 %3838
        %v3840 = vadd.f32 %v3800, %v3801
        %3841 = vadd.xlane.f32.xlu0 %v3840
        %v3842 = vpop.xlane.xlu0 %3841
        %v3843 = vadd.f32 %v3802, %v3803
        %3844 = vadd.xlane.f32.xlu0 %v3843
        %v3845 = vpop.xlane.xlu0 %3844
        %v3846 = vadd.f32 %v3804, %v3805
        %3847 = vadd.xlane.f32.xlu0 %v3846
        %v3848 = vpop.xlane.xlu0 %3847
        %v3849 = vadd.f32 %v3806, %v3807
        %3850 = vadd.xlane.f32.xlu0 %v3849
        %v3851 = vpop.xlane.xlu0 %3850
        %v3852 = vadd.f32 %v3808, %v3809
        %3853 = vadd.xlane.f32.xlu0 %v3852
        %v3854 = vpop.xlane.xlu0 %3853
        %v3855 = vadd.f32 %v3810, %v3811
        %3856 = vadd.xlane.f32.xlu0 %v3855
        %v3857 = vpop.xlane.xlu0 %3856
        %v3858 = vadd.f32 %v3812, %v3813
        %3859 = vadd.xlane.f32.xlu0 %v3858
        %v3860 = vpop.xlane.xlu0 %3859
        %v3861 = vadd.f32 %v3814, %v3815
        %3862 = vadd.xlane.f32.xlu0 %v3861
        %v3863 = vpop.xlane.xlu0 %3862
        %v3864 = vmax.f32 %v3818, 1e-20
        %v3865 = vmax.f32 %v3821, 1e-20
        %v3866 = vmax.f32 %v3824, 1e-20
        %v3867 = vmax.f32 %v3827, 1e-20
        %v3868 = vmax.f32 %v3830, 1e-20
        %v3869 = vmax.f32 %v3833, 1e-20
        %v3870 = vmax.f32 %v3836, 1e-20
        %v3871 = vmax.f32 %v3839, 1e-20
        %v3872 = vmax.f32 %v3842, 1e-20
        %v3873 = vmax.f32 %v3845, 1e-20
        %v3874 = vmax.f32 %v3848, 1e-20
        %v3875 = vmax.f32 %v3851, 1e-20
        %v3876 = vmax.f32 %v3854, 1e-20
        %v3877 = vmax.f32 %v3857, 1e-20
        %v3878 = vmax.f32 %v3860, 1e-20
        %v3879 = vmax.f32 %v3863, 1e-20
        %v3880 = vrcp.pop %v3864
        %v3881 = vrcp.pop %v3865
        %v3882 = vrcp.pop %v3866
        %v3883 = vrcp.pop %v3867
        %v3884 = vrcp.pop %v3868
        %v3885 = vrcp.pop %v3869
        %v3886 = vrcp.pop %v3870
        %v3887 = vrcp.pop %v3871
        %v3888 = vrcp.pop %v3872
        %v3889 = vrcp.pop %v3873
        %v3890 = vrcp.pop %v3874
        %v3891 = vrcp.pop %v3875
        %v3892 = vrcp.pop %v3876
        %v3893 = vrcp.pop %v3877
        %v3894 = vrcp.pop %v3878
        %v3895 = vrcp.pop %v3879
        %v3896 = vpack.c.bf16 %v3786, %v3784
        %v3897 = vpack.c.bf16 %v3787, %v3785
        %v3898 = vpack.c.bf16 %v3790, %v3788
        %v3899 = vpack.c.bf16 %v3791, %v3789
        %v3900 = vpack.c.bf16 %v3794, %v3792
        %v3901 = vpack.c.bf16 %v3795, %v3793
        %v3902 = vpack.c.bf16 %v3798, %v3796
        %v3903 = vpack.c.bf16 %v3799, %v3797
        %v3904 = vpack.c.bf16 %v3802, %v3800
        %v3905 = vpack.c.bf16 %v3803, %v3801
        %v3906 = vpack.c.bf16 %v3806, %v3804
        %v3907 = vpack.c.bf16 %v3807, %v3805
        %v3908 = vpack.c.bf16 %v3810, %v3808
        %v3909 = vpack.c.bf16 %v3811, %v3809
        %v3910 = vpack.c.bf16 %v3814, %v3812
        %v3911 = vpack.c.bf16 %v3815, %v3813
        %3912 = vrot.lane.b32.xlu0 %v1484, 64
        %v3913 = vpop.permute.xlu0 %3912
        %3914 = vrot.lane.b32.xlu0 %v1485, 64
        %v3915 = vpop.permute.xlu0 %3914
        %3916 = vrot.lane.b32.xlu0 %v1486, 64
        %v3917 = vpop.permute.xlu0 %3916
        %3918 = vrot.lane.b32.xlu0 %v1487, 64
        %v3919 = vpop.permute.xlu0 %3918
        %3920 = vrot.lane.b32.xlu0 %v1488, 64
        %v3921 = vpop.permute.xlu0 %3920
        %3922 = vrot.lane.b32.xlu0 %v1489, 64
        %v3923 = vpop.permute.xlu0 %3922
        %3924 = vrot.lane.b32.xlu0 %v1490, 64
        %v3925 = vpop.permute.xlu0 %3924
        %3926 = vrot.lane.b32.xlu0 %v1491, 64
        %v3927 = vpop.permute.xlu0 %3926
        %3928 = vrot.lane.b32.xlu0 %v1492, 64
        %v3929 = vpop.permute.xlu0 %3928
        %3930 = vrot.lane.b32.xlu0 %v1493, 64
        %v3931 = vpop.permute.xlu0 %3930
        %3932 = vrot.lane.b32.xlu0 %v1494, 64
        %v3933 = vpop.permute.xlu0 %3932
        %3934 = vrot.lane.b32.xlu0 %v1495, 64
        %v3935 = vpop.permute.xlu0 %3934
        %3936 = vrot.lane.b32.xlu0 %v1496, 64
        %v3937 = vpop.permute.xlu0 %3936
        %3938 = vrot.lane.b32.xlu0 %v1497, 64
        %v3939 = vpop.permute.xlu0 %3938
        %3940 = vrot.lane.b32.xlu0 %v1498, 64
        %v3941 = vpop.permute.xlu0 %3940
        %3942 = vrot.lane.b32.xlu0 %v1499, 64
        %v3943 = vpop.permute.xlu0 %3942
        %3960 = vmatprep.subr.bf16.mxu0 0
        %3961 = vmatpush1.bf16.msra.mxu0 %v3913
        %3962 = vmatprep.subr.bf16.mxu0 0
        %3963 = vmatpush1.bf16.msra.mxu0 %v3915
        %3964 = vmatprep.subr.bf16.mxu0 0
        %3965 = vmatpush1.bf16.msra.mxu0 %v3917
        %3966 = vmatprep.subr.bf16.mxu0 0
        %3967 = vmatpush1.bf16.msra.mxu0 %v3919
        %3968 = vmatprep.subr.bf16.mxu0 0
        %3969 = vmatpush1.bf16.msra.mxu0 %v3921
        %3970 = vmatprep.subr.bf16.mxu0 0
        %3971 = vmatpush1.bf16.msra.mxu0 %v3923
        %3972 = vmatprep.subr.bf16.mxu0 0
        %3973 = vmatpush1.bf16.msra.mxu0 %v3925
        %3974 = vmatprep.subr.bf16.mxu0 0
        %3975 = vmatpush1.bf16.msra.mxu0 %v3927
        %3976 = vmatprep.subr.bf16.mxu0 0
        %3977 = vmatpush1.bf16.msra.mxu0 %v3929
        %3978 = vmatprep.subr.bf16.mxu0 0
        %3979 = vmatpush1.bf16.msra.mxu0 %v3931
        %3980 = vmatprep.subr.bf16.mxu0 0
        %3981 = vmatpush1.bf16.msra.mxu0 %v3933
        %3982 = vmatprep.subr.bf16.mxu0 0
        %3983 = vmatpush1.bf16.msra.mxu0 %v3935
        %3984 = vmatprep.subr.bf16.mxu0 0
        %3985 = vmatpush1.bf16.msra.mxu0 %v3937
        %3986 = vmatprep.subr.bf16.mxu0 0
        %3987 = vmatpush1.bf16.msra.mxu0 %v3939
        %3988 = vmatprep.subr.bf16.mxu0 0
        %3989 = vmatpush1.bf16.msra.mxu0 %v3941
        %3990 = vmatprep.subr.bf16.mxu0 0
        %3991 = vmatpush1.bf16.msra.mxu0 %v3943
        %3992 = vmatprep.mubr.bf16.mxu0 %v3897
        %3993 = vmatmul.mubr.bf16.gmra.mrb[0].mxu0 %v3896
        %v3994 = vpop.f32.mrb[0].mxu0
        %v3995 = vadd.f32 0.0, %v3994
        %v3996 = vpop.f32.mrb[0].mxu0
        %v3997 = vpop.f32.mrb[0].mxu0
        %v3998 = vadd.f32 0.0, %v3997
        %v3999 = vpop.f32.mrb[0].mxu0
        %4000 = vmatprep.mubr.bf16.mxu0 %v3899
        %4001 = vmatmul.mubr.bf16.gmra.mrb[0].mxu0 %v3898
        %v4002 = vpop.f32.mrb[0].mxu0
        %v4003 = vadd.f32 0.0, %v4002
        %v4004 = vpop.f32.mrb[0].mxu0
        %v4005 = vpop.f32.mrb[0].mxu0
        %v4006 = vadd.f32 0.0, %v4005
        %v4007 = vpop.f32.mrb[0].mxu0
        %4008 = vmatprep.mubr.bf16.mxu0 %v3901
        %4009 = vmatmul.mubr.bf16.gmra.mrb[0].mxu0 %v3900
        %v4010 = vpop.f32.mrb[0].mxu0
        %v4011 = vadd.f32 0.0, %v4010
        %v4012 = vpop.f32.mrb[0].mxu0
        %v4013 = vpop.f32.mrb[0].mxu0
        %v4014 = vadd.f32 0.0, %v4013
        %v4015 = vpop.f32.mrb[0].mxu0
        %4016 = vmatprep.mubr.bf16.mxu0 %v3903
        %4017 = vmatmul.mubr.bf16.gmra.mrb[0].mxu0 %v3902
        %v4018 = vpop.f32.mrb[0].mxu0
        %v4019 = vadd.f32 0.0, %v4018
        %v4020 = vpop.f32.mrb[0].mxu0
        %v4021 = vpop.f32.mrb[0].mxu0
        %v4022 = vadd.f32 0.0, %v4021
        %v4023 = vpop.f32.mrb[0].mxu0
        %4024 = vmatprep.mubr.bf16.mxu0 %v3905
        %4025 = vmatmul.mubr.bf16.gmra.mrb[0].mxu0 %v3904
        %v4026 = vpop.f32.mrb[0].mxu0
        %v4027 = vadd.f32 0.0, %v4026
        %v4028 = vpop.f32.mrb[0].mxu0
        %v4029 = vpop.f32.mrb[0].mxu0
        %v4030 = vadd.f32 0.0, %v4029
        %v4031 = vpop.f32.mrb[0].mxu0
        %4032 = vmatprep.mubr.bf16.mxu0 %v3907
        %4033 = vmatmul.mubr.bf16.gmra.mrb[0].mxu0 %v3906
        %v4034 = vpop.f32.mrb[0].mxu0
        %v4035 = vadd.f32 0.0, %v4034
        %v4036 = vpop.f32.mrb[0].mxu0
        %v4037 = vpop.f32.mrb[0].mxu0
        %v4038 = vadd.f32 0.0, %v4037
        %v4039 = vpop.f32.mrb[0].mxu0
        %4040 = vmatprep.mubr.bf16.mxu0 %v3909
        %4041 = vmatmul.mubr.bf16.gmra.mrb[0].mxu0 %v3908
        %v4042 = vpop.f32.mrb[0].mxu0
        %v4043 = vadd.f32 0.0, %v4042
        %v4044 = vpop.f32.mrb[0].mxu0
        %v4045 = vpop.f32.mrb[0].mxu0
        %v4046 = vadd.f32 0.0, %v4045
        %v4047 = vpop.f32.mrb[0].mxu0
        %4048 = vmatprep.mubr.bf16.mxu0 %v3911
        %4049 = vmatmul.mubr.bf16.gmra.mrb[0].mxu0 %v3910
        %v4050 = vpop.f32.mrb[0].mxu0
        %v4051 = vadd.f32 0.0, %v4050
        %v4052 = vpop.f32.mrb[0].mxu0
        %v4053 = vpop.f32.mrb[0].mxu0
        %v4054 = vadd.f32 0.0, %v4053
        %v4055 = vpop.f32.mrb[0].mxu0
        %4056 = vdwg.mxu0
        %v4057 = vmul.f32 %v3995, %v3880
        %v4058 = vmul.f32 %v3998, %v3881
        %v4059 = vmul.f32 %v4003, %v3882
        %v4060 = vmul.f32 %v4006, %v3883
        %v4061 = vmul.f32 %v4011, %v3884
        %v4062 = vmul.f32 %v4014, %v3885
        %v4063 = vmul.f32 %v4019, %v3886
        %v4064 = vmul.f32 %v4022, %v3887
        %v4065 = vmul.f32 %v4027, %v3888
        %v4066 = vmul.f32 %v4030, %v3889
        %v4067 = vmul.f32 %v4035, %v3890
        %v4068 = vmul.f32 %v4038, %v3891
        %v4069 = vmul.f32 %v4043, %v3892
        %v4070 = vmul.f32 %v4046, %v3893
        %v4071 = vmul.f32 %v4051, %v3894
        %v4072 = vmul.f32 %v4054, %v3895
        %s4073 = sld [smem:[#allocation14 + $0x3]]
        %v4074 = vstv %s4073
        %v4075 = vmul.f32 %v1260, %v4074
        %v4076 = vmul.f32 %v1261, %v4074
        %v4077 = vmul.f32 %v1262, %v4074
        %v4078 = vmul.f32 %v1263, %v4074
        %v4079 = vmul.f32 %v1264, %v4074
        %v4080 = vmul.f32 %v1265, %v4074
        %v4081 = vmul.f32 %v1266, %v4074
        %v4082 = vmul.f32 %v1267, %v4074
        %v4083 = vmul.f32 %v1268, %v4074
        %v4084 = vmul.f32 %v1269, %v4074
        %v4085 = vmul.f32 %v1270, %v4074
        %v4086 = vmul.f32 %v1271, %v4074
        %v4087 = vmul.f32 %v1272, %v4074
        %v4088 = vmul.f32 %v1273, %v4074
        %v4089 = vmul.f32 %v1274, %v4074
        %v4090 = vmul.f32 %v1275, %v4074
        %v4091 = vmul.f32 %v1276, %v4074
        %v4092 = vmul.f32 %v1277, %v4074
        %v4093 = vmul.f32 %v1278, %v4074
        %v4094 = vmul.f32 %v1279, %v4074
        %v4095 = vmul.f32 %v1280, %v4074
        %v4096 = vmul.f32 %v1281, %v4074
        %v4097 = vmul.f32 %v1282, %v4074
        %v4098 = vmul.f32 %v1283, %v4074
        %v4099 = vmul.f32 %v1284, %v4074
        %v4100 = vmul.f32 %v1285, %v4074
        %v4101 = vmul.f32 %v1286, %v4074
        %v4102 = vmul.f32 %v1287, %v4074
        %v4103 = vmul.f32 %v1288, %v4074
        %v4104 = vmul.f32 %v1289, %v4074
        %v4105 = vmul.f32 %v1290, %v4074
        %v4106 = vmul.f32 %v1291, %v4074
        %s4107 = sld [smem:[#allocation14 + $0x83]]
        %v4108 = vstv %s4107
        %v4109 = vmul.f32 %v1356, %v4108
        %v4110 = vmul.f32 %v1357, %v4108
        %v4111 = vmul.f32 %v1358, %v4108
        %v4112 = vmul.f32 %v1359, %v4108
        %v4113 = vmul.f32 %v1360, %v4108
        %v4114 = vmul.f32 %v1361, %v4108
        %v4115 = vmul.f32 %v1362, %v4108
        %v4116 = vmul.f32 %v1363, %v4108
        %v4117 = vmul.f32 %v1364, %v4108
        %v4118 = vmul.f32 %v1365, %v4108
        %v4119 = vmul.f32 %v1366, %v4108
        %v4120 = vmul.f32 %v1367, %v4108
        %v4121 = vmul.f32 %v1368, %v4108
        %v4122 = vmul.f32 %v1369, %v4108
        %v4123 = vmul.f32 %v1370, %v4108
        %v4124 = vmul.f32 %v1371, %v4108
        %v4125 = vmul.f32 %v1372, %v4108
        %v4126 = vmul.f32 %v1373, %v4108
        %v4127 = vmul.f32 %v1374, %v4108
        %v4128 = vmul.f32 %v1375, %v4108
        %v4129 = vmul.f32 %v1376, %v4108
        %v4130 = vmul.f32 %v1377, %v4108
        %v4131 = vmul.f32 %v1378, %v4108
        %v4132 = vmul.f32 %v1379, %v4108
        %v4133 = vmul.f32 %v1380, %v4108
        %v4134 = vmul.f32 %v1381, %v4108
        %v4135 = vmul.f32 %v1382, %v4108
        %v4136 = vmul.f32 %v1383, %v4108
        %v4137 = vmul.f32 %v1384, %v4108
        %v4138 = vmul.f32 %v1385, %v4108
        %v4139 = vmul.f32 %v1386, %v4108
        %v4140 = vmul.f32 %v1387, %v4108
        %v4141 = vadd.f32 %v4075, %v4109
        %v4142 = vadd.f32 %v4076, %v4110
        %v4143 = vadd.f32 %v4077, %v4111
        %v4144 = vadd.f32 %v4078, %v4112
        %v4145 = vadd.f32 %v4079, %v4113
        %v4146 = vadd.f32 %v4080, %v4114
        %v4147 = vadd.f32 %v4081, %v4115
        %v4148 = vadd.f32 %v4082, %v4116
        %v4149 = vadd.f32 %v4083, %v4117
        %v4150 = vadd.f32 %v4084, %v4118
        %v4151 = vadd.f32 %v4085, %v4119
        %v4152 = vadd.f32 %v4086, %v4120
        %v4153 = vadd.f32 %v4087, %v4121
        %v4154 = vadd.f32 %v4088, %v4122
        %v4155 = vadd.f32 %v4089, %v4123
        %v4156 = vadd.f32 %v4090, %v4124
        %v4157 = vadd.f32 %v4091, %v4125
        %v4158 = vadd.f32 %v4092, %v4126
        %v4159 = vadd.f32 %v4093, %v4127
        %v4160 = vadd.f32 %v4094, %v4128
        %v4161 = vadd.f32 %v4095, %v4129
        %v4162 = vadd.f32 %v4096, %v4130
        %v4163 = vadd.f32 %v4097, %v4131
        %v4164 = vadd.f32 %v4098, %v4132
        %v4165 = vadd.f32 %v4099, %v4133
        %v4166 = vadd.f32 %v4100, %v4134
        %v4167 = vadd.f32 %v4101, %v4135
        %v4168 = vadd.f32 %v4102, %v4136
        %v4169 = vadd.f32 %v4103, %v4137
        %v4170 = vadd.f32 %v4104, %v4138
        %v4171 = vadd.f32 %v4105, %v4139
        %v4172 = vadd.f32 %v4106, %v4140
        %s4173 = sld [smem:[#allocation14 + $0x103]]
        %v4174 = vstv %s4173
        %v4175 = vmul.f32 %v1452, %v4174
        %v4176 = vmul.f32 %v1453, %v4174
        %v4177 = vmul.f32 %v1454, %v4174
        %v4178 = vmul.f32 %v1455, %v4174
        %v4179 = vmul.f32 %v1456, %v4174
        %v4180 = vmul.f32 %v1457, %v4174
        %v4181 = vmul.f32 %v1458, %v4174
        %v4182 = vmul.f32 %v1459, %v4174
        %v4183 = vmul.f32 %v1460, %v4174
        %v4184 = vmul.f32 %v1461, %v4174
        %v4185 = vmul.f32 %v1462, %v4174
        %v4186 = vmul.f32 %v1463, %v4174
        %v4187 = vmul.f32 %v1464, %v4174
        %v4188 = vmul.f32 %v1465, %v4174
        %v4189 = vmul.f32 %v1466, %v4174
        %v4190 = vmul.f32 %v1467, %v4174
        %v4191 = vmul.f32 %v1468, %v4174
        %v4192 = vmul.f32 %v1469, %v4174
        %v4193 = vmul.f32 %v1470, %v4174
        %v4194 = vmul.f32 %v1471, %v4174
        %v4195 = vmul.f32 %v1472, %v4174
        %v4196 = vmul.f32 %v1473, %v4174
        %v4197 = vmul.f32 %v1474, %v4174
        %v4198 = vmul.f32 %v1475, %v4174
        %v4199 = vmul.f32 %v1476, %v4174
        %v4200 = vmul.f32 %v1477, %v4174
        %v4201 = vmul.f32 %v1478, %v4174
        %v4202 = vmul.f32 %v1479, %v4174
        %v4203 = vmul.f32 %v1480, %v4174
        %v4204 = vmul.f32 %v1481, %v4174
        %v4205 = vmul.f32 %v1482, %v4174
        %v4206 = vmul.f32 %v1483, %v4174
        %v4207 = vadd.f32 %v4141, %v4175
        %v4208 = vadd.f32 %v4142, %v4176
        %v4209 = vadd.f32 %v4143, %v4177
        %v4210 = vadd.f32 %v4144, %v4178
        %v4211 = vadd.f32 %v4145, %v4179
        %v4212 = vadd.f32 %v4146, %v4180
        %v4213 = vadd.f32 %v4147, %v4181
        %v4214 = vadd.f32 %v4148, %v4182
        %v4215 = vadd.f32 %v4149, %v4183
        %v4216 = vadd.f32 %v4150, %v4184
        %v4217 = vadd.f32 %v4151, %v4185
        %v4218 = vadd.f32 %v4152, %v4186
        %v4219 = vadd.f32 %v4153, %v4187
        %v4220 = vadd.f32 %v4154, %v4188
        %v4221 = vadd.f32 %v4155, %v4189
        %v4222 = vadd.f32 %v4156, %v4190
        %v4223 = vadd.f32 %v4157, %v4191
        %v4224 = vadd.f32 %v4158, %v4192
        %v4225 = vadd.f32 %v4159, %v4193
        %v4226 = vadd.f32 %v4160, %v4194
        %v4227 = vadd.f32 %v4161, %v4195
        %v4228 = vadd.f32 %v4162, %v4196
        %v4229 = vadd.f32 %v4163, %v4197
        %v4230 = vadd.f32 %v4164, %v4198
        %v4231 = vadd.f32 %v4165, %v4199
        %v4232 = vadd.f32 %v4166, %v4200
        %v4233 = vadd.f32 %v4167, %v4201
        %v4234 = vadd.f32 %v4168, %v4202
        %v4235 = vadd.f32 %v4169, %v4203
        %v4236 = vadd.f32 %v4170, %v4204
        %v4237 = vadd.f32 %v4171, %v4205
        %v4238 = vadd.f32 %v4172, %v4206
        %4239 = vset.pattern.permute.xlu0 3
        %4240 = vperm.xlu0 %4239, %v990
        %v4241 = vpop.permute.xlu0 %4240
        %4243 = vset.pattern.permute.xlu0 3
        %4244 = vperm.xlu0 %4243, %v995
        %v4245 = vpop.permute.xlu0 %4244
        %4247 = vset.pattern.permute.xlu0 3
        %4248 = vperm.xlu0 %4247, %v1000
        %v4249 = vpop.permute.xlu0 %4248
        %4251 = vset.pattern.permute.xlu0 3
        %4252 = vperm.xlu0 %4251, %v1005
        %v4253 = vpop.permute.xlu0 %4252
        %4255 = vset.pattern.permute.xlu0 3
        %4256 = vperm.xlu0 %4255, %v1010
        %v4257 = vpop.permute.xlu0 %4256
        %4259 = vset.pattern.permute.xlu0 3
        %4260 = vperm.xlu0 %4259, %v1015
        %v4261 = vpop.permute.xlu0 %4260
        %4263 = vset.pattern.permute.xlu0 3
        %4264 = vperm.xlu0 %4263, %v1020
        %v4265 = vpop.permute.xlu0 %4264
        %4267 = vset.pattern.permute.xlu0 3
        %4268 = vperm.xlu0 %4267, %v1025
        %v4269 = vpop.permute.xlu0 %4268
        %4271 = vset.pattern.permute.xlu0 3
        %4272 = vperm.xlu0 %4271, %v1030
        %v4273 = vpop.permute.xlu0 %4272
        %4275 = vset.pattern.permute.xlu0 3
        %4276 = vperm.xlu0 %4275, %v1035
        %v4277 = vpop.permute.xlu0 %4276
        %4279 = vset.pattern.permute.xlu0 3
        %4280 = vperm.xlu0 %4279, %v1040
        %v4281 = vpop.permute.xlu0 %4280
        %4283 = vset.pattern.permute.xlu0 3
        %4284 = vperm.xlu0 %4283, %v1045
        %v4285 = vpop.permute.xlu0 %4284
        %4287 = vset.pattern.permute.xlu0 3
        %4288 = vperm.xlu0 %4287, %v1050
        %v4289 = vpop.permute.xlu0 %4288
        %4291 = vset.pattern.permute.xlu0 3
        %4292 = vperm.xlu0 %4291, %v1055
        %v4293 = vpop.permute.xlu0 %4292
        %4295 = vset.pattern.permute.xlu0 3
        %4296 = vperm.xlu0 %4295, %v1060
        %v4297 = vpop.permute.xlu0 %4296
        %4299 = vset.pattern.permute.xlu0 3
        %4300 = vperm.xlu0 %4299, %v1065
        %v4301 = vpop.permute.xlu0 %4300
        %v4303 = vlaneseq
        %v4304 = vshrl.u32 %v4303, 7
        %v4305 = vsub.s32 3, %v4304
        %v4306 = vrot.slane %v851, %v4305
        %v4307 = vlaneseq
        %v4308 = vshrl.u32 %v4307, 7
        %v4309 = vsub.s32 3, %v4308
        %v4310 = vrot.slane %v853, %v4309
        %v4311 = vadd.f32 %v4241, %v4306
        %v4312 = vadd.f32 %v4241, %v4310
        %v4313 = vadd.f32 %v4245, %v4306
        %v4314 = vadd.f32 %v4245, %v4310
        %v4315 = vadd.f32 %v4249, %v4306
        %v4316 = vadd.f32 %v4249, %v4310
        %v4317 = vadd.f32 %v4253, %v4306
        %v4318 = vadd.f32 %v4253, %v4310
        %v4319 = vadd.f32 %v4257, %v4306
        %v4320 = vadd.f32 %v4257, %v4310
        %v4321 = vadd.f32 %v4261, %v4306
        %v4322 = vadd.f32 %v4261, %v4310
        %v4323 = vadd.f32 %v4265, %v4306
        %v4324 = vadd.f32 %v4265, %v4310
        %v4325 = vadd.f32 %v4269, %v4306
        %v4326 = vadd.f32 %v4269, %v4310
        %v4327 = vadd.f32 %v4273, %v4306
        %v4328 = vadd.f32 %v4273, %v4310
        %v4329 = vadd.f32 %v4277, %v4306
        %v4330 = vadd.f32 %v4277, %v4310
        %v4331 = vadd.f32 %v4281, %v4306
        %v4332 = vadd.f32 %v4281, %v4310
        %v4333 = vadd.f32 %v4285, %v4306
        %v4334 = vadd.f32 %v4285, %v4310
        %v4335 = vadd.f32 %v4289, %v4306
        %v4336 = vadd.f32 %v4289, %v4310
        %v4337 = vadd.f32 %v4293, %v4306
        %v4338 = vadd.f32 %v4293, %v4310
        %v4339 = vadd.f32 %v4297, %v4306
        %v4340 = vadd.f32 %v4297, %v4310
        %v4341 = vadd.f32 %v4301, %v4306
        %v4342 = vadd.f32 %v4301, %v4310
        %v4343 = vadd.f32 %v4311, %v4207
        %v4344 = vadd.f32 %v4312, %v4208
        %v4345 = vadd.f32 %v4313, %v4209
        %v4346 = vadd.f32 %v4314, %v4210
        %v4347 = vadd.f32 %v4315, %v4211
        %v4348 = vadd.f32 %v4316, %v4212
        %v4349 = vadd.f32 %v4317, %v4213
        %v4350 = vadd.f32 %v4318, %v4214
        %v4351 = vadd.f32 %v4319, %v4215
        %v4352 = vadd.f32 %v4320, %v4216
        %v4353 = vadd.f32 %v4321, %v4217
        %v4354 = vadd.f32 %v4322, %v4218
        %v4355 = vadd.f32 %v4323, %v4219
        %v4356 = vadd.f32 %v4324, %v4220
        %v4357 = vadd.f32 %v4325, %v4221
        %v4358 = vadd.f32 %v4326, %v4222
        %v4359 = vadd.f32 %v4327, %v4223
        %v4360 = vadd.f32 %v4328, %v4224
        %v4361 = vadd.f32 %v4329, %v4225
        %v4362 = vadd.f32 %v4330, %v4226
        %v4363 = vadd.f32 %v4331, %v4227
        %v4364 = vadd.f32 %v4332, %v4228
        %v4365 = vadd.f32 %v4333, %v4229
        %v4366 = vadd.f32 %v4334, %v4230
        %v4367 = vadd.f32 %v4335, %v4231
        %v4368 = vadd.f32 %v4336, %v4232
        %v4369 = vadd.f32 %v4337, %v4233
        %v4370 = vadd.f32 %v4338, %v4234
        %v4371 = vadd.f32 %v4339, %v4235
        %v4372 = vadd.f32 %v4340, %v4236
        %v4373 = vadd.f32 %v4341, %v4237
        %v4374 = vadd.f32 %v4342, %v4238
        %vm4375 = vcmp.ge.f32.partialorder %v4343, 0.0
        %vm4376 = vcmp.ge.f32.partialorder %v4344, 0.0
        %vm4377 = vcmp.ge.f32.partialorder %v4345, 0.0
        %vm4378 = vcmp.ge.f32.partialorder %v4346, 0.0
        %vm4379 = vcmp.ge.f32.partialorder %v4347, 0.0
        %vm4380 = vcmp.ge.f32.partialorder %v4348, 0.0
        %vm4381 = vcmp.ge.f32.partialorder %v4349, 0.0
        %vm4382 = vcmp.ge.f32.partialorder %v4350, 0.0
        %vm4383 = vcmp.ge.f32.partialorder %v4351, 0.0
        %vm4384 = vcmp.ge.f32.partialorder %v4352, 0.0
        %vm4385 = vcmp.ge.f32.partialorder %v4353, 0.0
        %vm4386 = vcmp.ge.f32.partialorder %v4354, 0.0
        %vm4387 = vcmp.ge.f32.partialorder %v4355, 0.0
        %vm4388 = vcmp.ge.f32.partialorder %v4356, 0.0
        %vm4389 = vcmp.ge.f32.partialorder %v4357, 0.0
        %vm4390 = vcmp.ge.f32.partialorder %v4358, 0.0
        %vm4391 = vcmp.ge.f32.partialorder %v4359, 0.0
        %vm4392 = vcmp.ge.f32.partialorder %v4360, 0.0
        %vm4393 = vcmp.ge.f32.partialorder %v4361, 0.0
        %vm4394 = vcmp.ge.f32.partialorder %v4362, 0.0
        %vm4395 = vcmp.ge.f32.partialorder %v4363, 0.0
        %vm4396 = vcmp.ge.f32.partialorder %v4364, 0.0
        %vm4397 = vcmp.ge.f32.partialorder %v4365, 0.0
        %vm4398 = vcmp.ge.f32.partialorder %v4366, 0.0
        %vm4399 = vcmp.ge.f32.partialorder %v4367, 0.0
        %vm4400 = vcmp.ge.f32.partialorder %v4368, 0.0
        %vm4401 = vcmp.ge.f32.partialorder %v4369, 0.0
        %vm4402 = vcmp.ge.f32.partialorder %v4370, 0.0
        %vm4403 = vcmp.ge.f32.partialorder %v4371, 0.0
        %vm4404 = vcmp.ge.f32.partialorder %v4372, 0.0
        %vm4405 = vcmp.ge.f32.partialorder %v4373, 0.0
        %vm4406 = vcmp.ge.f32.partialorder %v4374, 0.0
        %v4407 = vmul.f32 %v4343, 0.2
        %v4408 = vmul.f32 %v4344, 0.2
        %v4409 = vmul.f32 %v4345, 0.2
        %v4410 = vmul.f32 %v4346, 0.2
        %v4411 = vmul.f32 %v4347, 0.2
        %v4412 = vmul.f32 %v4348, 0.2
        %v4413 = vmul.f32 %v4349, 0.2
        %v4414 = vmul.f32 %v4350, 0.2
        %v4415 = vmul.f32 %v4351, 0.2
        %v4416 = vmul.f32 %v4352, 0.2
        %v4417 = vmul.f32 %v4353, 0.2
        %v4418 = vmul.f32 %v4354, 0.2
        %v4419 = vmul.f32 %v4355, 0.2
        %v4420 = vmul.f32 %v4356, 0.2
        %v4421 = vmul.f32 %v4357, 0.2
        %v4422 = vmul.f32 %v4358, 0.2
        %v4423 = vmul.f32 %v4359, 0.2
        %v4424 = vmul.f32 %v4360, 0.2
        %v4425 = vmul.f32 %v4361, 0.2
        %v4426 = vmul.f32 %v4362, 0.2
        %v4427 = vmul.f32 %v4363, 0.2
        %v4428 = vmul.f32 %v4364, 0.2
        %v4429 = vmul.f32 %v4365, 0.2
        %v4430 = vmul.f32 %v4366, 0.2
        %v4431 = vmul.f32 %v4367, 0.2
        %v4432 = vmul.f32 %v4368, 0.2
        %v4433 = vmul.f32 %v4369, 0.2
        %v4434 = vmul.f32 %v4370, 0.2
        %v4435 = vmul.f32 %v4371, 0.2
        %v4436 = vmul.f32 %v4372, 0.2
        %v4437 = vmul.f32 %v4373, 0.2
        %v4438 = vmul.f32 %v4374, 0.2
        %v4439 = vsel %vm4375, %v4343, %v4407
        %v4440 = vsel %vm4376, %v4344, %v4408
        %v4441 = vsel %vm4377, %v4345, %v4409
        %v4442 = vsel %vm4378, %v4346, %v4410
        %v4443 = vsel %vm4379, %v4347, %v4411
        %v4444 = vsel %vm4380, %v4348, %v4412
        %v4445 = vsel %vm4381, %v4349, %v4413
        %v4446 = vsel %vm4382, %v4350, %v4414
        %v4447 = vsel %vm4383, %v4351, %v4415
        %v4448 = vsel %vm4384, %v4352, %v4416
        %v4449 = vsel %vm4385, %v4353, %v4417
        %v4450 = vsel %vm4386, %v4354, %v4418
        %v4451 = vsel %vm4387, %v4355, %v4419
        %v4452 = vsel %vm4388, %v4356, %v4420
        %v4453 = vsel %vm4389, %v4357, %v4421
        %v4454 = vsel %vm4390, %v4358, %v4422
        %v4455 = vsel %vm4391, %v4359, %v4423
        %v4456 = vsel %vm4392, %v4360, %v4424
        %v4457 = vsel %vm4393, %v4361, %v4425
        %v4458 = vsel %vm4394, %v4362, %v4426
        %v4459 = vsel %vm4395, %v4363, %v4427
        %v4460 = vsel %vm4396, %v4364, %v4428
        %v4461 = vsel %vm4397, %v4365, %v4429
        %v4462 = vsel %vm4398, %v4366, %v4430
        %v4463 = vsel %vm4399, %v4367, %v4431
        %v4464 = vsel %vm4400, %v4368, %v4432
        %v4465 = vsel %vm4401, %v4369, %v4433
        %v4466 = vsel %vm4402, %v4370, %v4434
        %v4467 = vsel %vm4403, %v4371, %v4435
        %v4468 = vsel %vm4404, %v4372, %v4436
        %v4469 = vsel %vm4405, %v4373, %v4437
        %v4470 = vsel %vm4406, %v4374, %v4438
        %v4471 = vsel %vm1100, %v4439, -1e+30
        %v4472 = vsel %vm1101, %v4440, -1e+30
        %v4473 = vsel %vm1102, %v4441, -1e+30
        %v4474 = vsel %vm1103, %v4442, -1e+30
        %v4475 = vsel %vm1104, %v4443, -1e+30
        %v4476 = vsel %vm1105, %v4444, -1e+30
        %v4477 = vsel %vm1106, %v4445, -1e+30
        %v4478 = vsel %vm1107, %v4446, -1e+30
        %v4479 = vsel %vm1108, %v4447, -1e+30
        %v4480 = vsel %vm1109, %v4448, -1e+30
        %v4481 = vsel %vm1110, %v4449, -1e+30
        %v4482 = vsel %vm1111, %v4450, -1e+30
        %v4483 = vsel %vm1112, %v4451, -1e+30
        %v4484 = vsel %vm1113, %v4452, -1e+30
        %v4485 = vsel %vm1114, %v4453, -1e+30
        %v4486 = vsel %vm1115, %v4454, -1e+30
        %v4487 = vsel %vm1116, %v4455, -1e+30
        %v4488 = vsel %vm1117, %v4456, -1e+30
        %v4489 = vsel %vm1118, %v4457, -1e+30
        %v4490 = vsel %vm1119, %v4458, -1e+30
        %v4491 = vsel %vm1120, %v4459, -1e+30
        %v4492 = vsel %vm1121, %v4460, -1e+30
        %v4493 = vsel %vm1122, %v4461, -1e+30
        %v4494 = vsel %vm1123, %v4462, -1e+30
        %v4495 = vsel %vm1124, %v4463, -1e+30
        %v4496 = vsel %vm1125, %v4464, -1e+30
        %v4497 = vsel %vm1126, %v4465, -1e+30
        %v4498 = vsel %vm1127, %v4466, -1e+30
        %v4499 = vsel %vm1128, %v4467, -1e+30
        %v4500 = vsel %vm1129, %v4468, -1e+30
        %v4501 = vsel %vm1130, %v4469, -1e+30
        %v4502 = vsel %vm1131, %v4470, -1e+30
        %v4503 = vmax.f32 %v4471, %v4472
        %4504 = vmax.xlane.f32.xlu0 %v4503
        %v4505 = vpop.xlane.xlu0 %4504
        %v4506 = vmax.f32 %v4473, %v4474
        %4507 = vmax.xlane.f32.xlu0 %v4506
        %v4508 = vpop.xlane.xlu0 %4507
        %v4509 = vmax.f32 %v4475, %v4476
        %4510 = vmax.xlane.f32.xlu0 %v4509
        %v4511 = vpop.xlane.xlu0 %4510
        %v4512 = vmax.f32 %v4477, %v4478
        %4513 = vmax.xlane.f32.xlu0 %v4512
        %v4514 = vpop.xlane.xlu0 %4513
        %v4515 = vmax.f32 %v4479, %v4480
        %4516 = vmax.xlane.f32.xlu0 %v4515
        %v4517 = vpop.xlane.xlu0 %4516
        %v4518 = vmax.f32 %v4481, %v4482
        %4519 = vmax.xlane.f32.xlu0 %v4518
        %v4520 = vpop.xlane.xlu0 %4519
        %v4521 = vmax.f32 %v4483, %v4484
        %4522 = vmax.xlane.f32.xlu0 %v4521
        %v4523 = vpop.xlane.xlu0 %4522
        %v4524 = vmax.f32 %v4485, %v4486
        %4525 = vmax.xlane.f32.xlu0 %v4524
        %v4526 = vpop.xlane.xlu0 %4525
        %v4527 = vmax.f32 %v4487, %v4488
        %4528 = vmax.xlane.f32.xlu0 %v4527
        %v4529 = vpop.xlane.xlu0 %4528
        %v4530 = vmax.f32 %v4489, %v4490
        %4531 = vmax.xlane.f32.xlu0 %v4530
        %v4532 = vpop.xlane.xlu0 %4531
        %v4533 = vmax.f32 %v4491, %v4492
        %4534 = vmax.xlane.f32.xlu0 %v4533
        %v4535 = vpop.xlane.xlu0 %4534
        %v4536 = vmax.f32 %v4493, %v4494
        %4537 = vmax.xlane.f32.xlu0 %v4536
        %v4538 = vpop.xlane.xlu0 %4537
        %v4539 = vmax.f32 %v4495, %v4496
        %4540 = vmax.xlane.f32.xlu0 %v4539
        %v4541 = vpop.xlane.xlu0 %4540
        %v4542 = vmax.f32 %v4497, %v4498
        %4543 = vmax.xlane.f32.xlu0 %v4542
        %v4544 = vpop.xlane.xlu0 %4543
        %v4545 = vmax.f32 %v4499, %v4500
        %4546 = vmax.xlane.f32.xlu0 %v4545
        %v4547 = vpop.xlane.xlu0 %4546
        %v4548 = vmax.f32 %v4501, %v4502
        %4549 = vmax.xlane.f32.xlu0 %v4548
        %v4550 = vpop.xlane.xlu0 %4549
        %v4551 = vsub.f32 %v4471, %v4505
        %v4552 = vsub.f32 %v4472, %v4505
        %v4553 = vsub.f32 %v4473, %v4508
        %v4554 = vsub.f32 %v4474, %v4508
        %v4555 = vsub.f32 %v4475, %v4511
        %v4556 = vsub.f32 %v4476, %v4511
        %v4557 = vsub.f32 %v4477, %v4514
        %v4558 = vsub.f32 %v4478, %v4514
        %v4559 = vsub.f32 %v4479, %v4517
        %v4560 = vsub.f32 %v4480, %v4517
        %v4561 = vsub.f32 %v4481, %v4520
        %v4562 = vsub.f32 %v4482, %v4520
        %v4563 = vsub.f32 %v4483, %v4523
        %v4564 = vsub.f32 %v4484, %v4523
        %v4565 = vsub.f32 %v4485, %v4526
        %v4566 = vsub.f32 %v4486, %v4526
        %v4567 = vsub.f32 %v4487, %v4529
        %v4568 = vsub.f32 %v4488, %v4529
        %v4569 = vsub.f32 %v4489, %v4532
        %v4570 = vsub.f32 %v4490, %v4532
        %v4571 = vsub.f32 %v4491, %v4535
        %v4572 = vsub.f32 %v4492, %v4535
        %v4573 = vsub.f32 %v4493, %v4538
        %v4574 = vsub.f32 %v4494, %v4538
        %v4575 = vsub.f32 %v4495, %v4541
        %v4576 = vsub.f32 %v4496, %v4541
        %v4577 = vsub.f32 %v4497, %v4544
        %v4578 = vsub.f32 %v4498, %v4544
        %v4579 = vsub.f32 %v4499, %v4547
        %v4580 = vsub.f32 %v4500, %v4547
        %v4581 = vsub.f32 %v4501, %v4550
        %v4582 = vsub.f32 %v4502, %v4550
        %v4583 = vmul.f32 %v4551, 1.442695
        %v4584 = vpow.pop %v4583
        %v4585 = vmul.f32 %v4552, 1.442695
        %v4586 = vpow.pop %v4585
        %v4587 = vmul.f32 %v4553, 1.442695
        %v4588 = vpow.pop %v4587
        %v4589 = vmul.f32 %v4554, 1.442695
        %v4590 = vpow.pop %v4589
        %v4591 = vmul.f32 %v4555, 1.442695
        %v4592 = vpow.pop %v4591
        %v4593 = vmul.f32 %v4556, 1.442695
        %v4594 = vpow.pop %v4593
        %v4595 = vmul.f32 %v4557, 1.442695
        %v4596 = vpow.pop %v4595
        %v4597 = vmul.f32 %v4558, 1.442695
        %v4598 = vpow.pop %v4597
        %v4599 = vmul.f32 %v4559, 1.442695
        %v4600 = vpow.pop %v4599
        %v4601 = vmul.f32 %v4560, 1.442695
        %v4602 = vpow.pop %v4601
        %v4603 = vmul.f32 %v4561, 1.442695
        %v4604 = vpow.pop %v4603
        %v4605 = vmul.f32 %v4562, 1.442695
        %v4606 = vpow.pop %v4605
        %v4607 = vmul.f32 %v4563, 1.442695
        %v4608 = vpow.pop %v4607
        %v4609 = vmul.f32 %v4564, 1.442695
        %v4610 = vpow.pop %v4609
        %v4611 = vmul.f32 %v4565, 1.442695
        %v4612 = vpow.pop %v4611
        %v4613 = vmul.f32 %v4566, 1.442695
        %v4614 = vpow.pop %v4613
        %v4615 = vmul.f32 %v4567, 1.442695
        %v4616 = vpow.pop %v4615
        %v4617 = vmul.f32 %v4568, 1.442695
        %v4618 = vpow.pop %v4617
        %v4619 = vmul.f32 %v4569, 1.442695
        %v4620 = vpow.pop %v4619
        %v4621 = vmul.f32 %v4570, 1.442695
        %v4622 = vpow.pop %v4621
        %v4623 = vmul.f32 %v4571, 1.442695
        %v4624 = vpow.pop %v4623
        %v4625 = vmul.f32 %v4572, 1.442695
        %v4626 = vpow.pop %v4625
        %v4627 = vmul.f32 %v4573, 1.442695
        %v4628 = vpow.pop %v4627
        %v4629 = vmul.f32 %v4574, 1.442695
        %v4630 = vpow.pop %v4629
        %v4631 = vmul.f32 %v4575, 1.442695
        %v4632 = vpow.pop %v4631
        %v4633 = vmul.f32 %v4576, 1.442695
        %v4634 = vpow.pop %v4633
        %v4635 = vmul.f32 %v4577, 1.442695
        %v4636 = vpow.pop %v4635
        %v4637 = vmul.f32 %v4578, 1.442695
        %v4638 = vpow.pop %v4637
        %v4639 = vmul.f32 %v4579, 1.442695
        %v4640 = vpow.pop %v4639
        %v4641 = vmul.f32 %v4580, 1.442695
        %v4642 = vpow.pop %v4641
        %v4643 = vmul.f32 %v4581, 1.442695
        %v4644 = vpow.pop %v4643
        %v4645 = vmul.f32 %v4582, 1.442695
        %v4646 = vpow.pop %v4645
        %v4647 = vmul.f32 %v4584, %v1164
        %v4648 = vmul.f32 %v4586, %v1165
        %v4649 = vmul.f32 %v4588, %v1166
        %v4650 = vmul.f32 %v4590, %v1167
        %v4651 = vmul.f32 %v4592, %v1168
        %v4652 = vmul.f32 %v4594, %v1169
        %v4653 = vmul.f32 %v4596, %v1170
        %v4654 = vmul.f32 %v4598, %v1171
        %v4655 = vmul.f32 %v4600, %v1172
        %v4656 = vmul.f32 %v4602, %v1173
        %v4657 = vmul.f32 %v4604, %v1174
        %v4658 = vmul.f32 %v4606, %v1175
        %v4659 = vmul.f32 %v4608, %v1176
        %v4660 = vmul.f32 %v4610, %v1177
        %v4661 = vmul.f32 %v4612, %v1178
        %v4662 = vmul.f32 %v4614, %v1179
        %v4663 = vmul.f32 %v4616, %v1180
        %v4664 = vmul.f32 %v4618, %v1181
        %v4665 = vmul.f32 %v4620, %v1182
        %v4666 = vmul.f32 %v4622, %v1183
        %v4667 = vmul.f32 %v4624, %v1184
        %v4668 = vmul.f32 %v4626, %v1185
        %v4669 = vmul.f32 %v4628, %v1186
        %v4670 = vmul.f32 %v4630, %v1187
        %v4671 = vmul.f32 %v4632, %v1188
        %v4672 = vmul.f32 %v4634, %v1189
        %v4673 = vmul.f32 %v4636, %v1190
        %v4674 = vmul.f32 %v4638, %v1191
        %v4675 = vmul.f32 %v4640, %v1192
        %v4676 = vmul.f32 %v4642, %v1193
        %v4677 = vmul.f32 %v4644, %v1194
        %v4678 = vmul.f32 %v4646, %v1195
        %v4679 = vadd.f32 %v4647, %v4648
        %4680 = vadd.xlane.f32.xlu0 %v4679
        %v4681 = vpop.xlane.xlu0 %4680
        %v4682 = vadd.f32 %v4649, %v4650
        %4683 = vadd.xlane.f32.xlu0 %v4682
        %v4684 = vpop.xlane.xlu0 %4683
        %v4685 = vadd.f32 %v4651, %v4652
        %4686 = vadd.xlane.f32.xlu0 %v4685
        %v4687 = vpop.xlane.xlu0 %4686
        %v4688 = vadd.f32 %v4653, %v4654
        %4689 = vadd.xlane.f32.xlu0 %v4688
        %v4690 = vpop.xlane.xlu0 %4689
        %v4691 = vadd.f32 %v4655, %v4656
        %4692 = vadd.xlane.f32.xlu0 %v4691
        %v4693 = vpop.xlane.xlu0 %4692
        %v4694 = vadd.f32 %v4657, %v4658
        %4695 = vadd.xlane.f32.xlu0 %v4694
        %v4696 = vpop.xlane.xlu0 %4695
        %v4697 = vadd.f32 %v4659, %v4660
        %4698 = vadd.xlane.f32.xlu0 %v4697
        %v4699 = vpop.xlane.xlu0 %4698
        %v4700 = vadd.f32 %v4661, %v4662
        %4701 = vadd.xlane.f32.xlu0 %v4700
        %v4702 = vpop.xlane.xlu0 %4701
        %v4703 = vadd.f32 %v4663, %v4664
        %4704 = vadd.xlane.f32.xlu0 %v4703
        %v4705 = vpop.xlane.xlu0 %4704
        %v4706 = vadd.f32 %v4665, %v4666
        %4707 = vadd.xlane.f32.xlu0 %v4706
        %v4708 = vpop.xlane.xlu0 %4707
        %v4709 = vadd.f32 %v4667, %v4668
        %4710 = vadd.xlane.f32.xlu0 %v4709
        %v4711 = vpop.xlane.xlu0 %4710
        %v4712 = vadd.f32 %v4669, %v4670
        %4713 = vadd.xlane.f32.xlu0 %v4712
        %v4714 = vpop.xlane.xlu0 %4713
        %v4715 = vadd.f32 %v4671, %v4672
        %4716 = vadd.xlane.f32.xlu0 %v4715
        %v4717 = vpop.xlane.xlu0 %4716
        %v4718 = vadd.f32 %v4673, %v4674
        %4719 = vadd.xlane.f32.xlu0 %v4718
        %v4720 = vpop.xlane.xlu0 %4719
        %v4721 = vadd.f32 %v4675, %v4676
        %4722 = vadd.xlane.f32.xlu0 %v4721
        %v4723 = vpop.xlane.xlu0 %4722
        %v4724 = vadd.f32 %v4677, %v4678
        %4725 = vadd.xlane.f32.xlu0 %v4724
        %v4726 = vpop.xlane.xlu0 %4725
        %v4727 = vmax.f32 %v4681, 1e-20
        %v4728 = vmax.f32 %v4684, 1e-20
        %v4729 = vmax.f32 %v4687, 1e-20
        %v4730 = vmax.f32 %v4690, 1e-20
        %v4731 = vmax.f32 %v4693, 1e-20
        %v4732 = vmax.f32 %v4696, 1e-20
        %v4733 = vmax.f32 %v4699, 1e-20
        %v4734 = vmax.f32 %v4702, 1e-20
        %v4735 = vmax.f32 %v4705, 1e-20
        %v4736 = vmax.f32 %v4708, 1e-20
        %v4737 = vmax.f32 %v4711, 1e-20
        %v4738 = vmax.f32 %v4714, 1e-20
        %v4739 = vmax.f32 %v4717, 1e-20
        %v4740 = vmax.f32 %v4720, 1e-20
        %v4741 = vmax.f32 %v4723, 1e-20
        %v4742 = vmax.f32 %v4726, 1e-20
        %v4743 = vrcp.pop %v4727
        %v4744 = vrcp.pop %v4728
        %v4745 = vrcp.pop %v4729
        %v4746 = vrcp.pop %v4730
        %v4747 = vrcp.pop %v4731
        %v4748 = vrcp.pop %v4732
        %v4749 = vrcp.pop %v4733
        %v4750 = vrcp.pop %v4734
        %v4751 = vrcp.pop %v4735
        %v4752 = vrcp.pop %v4736
        %v4753 = vrcp.pop %v4737
        %v4754 = vrcp.pop %v4738
        %v4755 = vrcp.pop %v4739
        %v4756 = vrcp.pop %v4740
        %v4757 = vrcp.pop %v4741
        %v4758 = vrcp.pop %v4742
        %v4759 = vpack.c.bf16 %v4649, %v4647
        %v4760 = vpack.c.bf16 %v4650, %v4648
        %v4761 = vpack.c.bf16 %v4653, %v4651
        %v4762 = vpack.c.bf16 %v4654, %v4652
        %v4763 = vpack.c.bf16 %v4657, %v4655
        %v4764 = vpack.c.bf16 %v4658, %v4656
        %v4765 = vpack.c.bf16 %v4661, %v4659
        %v4766 = vpack.c.bf16 %v4662, %v4660
        %v4767 = vpack.c.bf16 %v4665, %v4663
        %v4768 = vpack.c.bf16 %v4666, %v4664
        %v4769 = vpack.c.bf16 %v4669, %v4667
        %v4770 = vpack.c.bf16 %v4670, %v4668
        %v4771 = vpack.c.bf16 %v4673, %v4671
        %v4772 = vpack.c.bf16 %v4674, %v4672
        %v4773 = vpack.c.bf16 %v4677, %v4675
        %v4774 = vpack.c.bf16 %v4678, %v4676
        %4775 = vrot.lane.b32.xlu0 %v1484, 32
        %v4776 = vpop.permute.xlu0 %4775
        %4777 = vrot.lane.b32.xlu0 %v1485, 32
        %v4778 = vpop.permute.xlu0 %4777
        %4779 = vrot.lane.b32.xlu0 %v1486, 32
        %v4780 = vpop.permute.xlu0 %4779
        %4781 = vrot.lane.b32.xlu0 %v1487, 32
        %v4782 = vpop.permute.xlu0 %4781
        %4783 = vrot.lane.b32.xlu0 %v1488, 32
        %v4784 = vpop.permute.xlu0 %4783
        %4785 = vrot.lane.b32.xlu0 %v1489, 32
        %v4786 = vpop.permute.xlu0 %4785
        %4787 = vrot.lane.b32.xlu0 %v1490, 32
        %v4788 = vpop.permute.xlu0 %4787
        %4789 = vrot.lane.b32.xlu0 %v1491, 32
        %v4790 = vpop.permute.xlu0 %4789
        %4791 = vrot.lane.b32.xlu0 %v1492, 32
        %v4792 = vpop.permute.xlu0 %4791
        %4793 = vrot.lane.b32.xlu0 %v1493, 32
        %v4794 = vpop.permute.xlu0 %4793
        %4795 = vrot.lane.b32.xlu0 %v1494, 32
        %v4796 = vpop.permute.xlu0 %4795
        %4797 = vrot.lane.b32.xlu0 %v1495, 32
        %v4798 = vpop.permute.xlu0 %4797
        %4799 = vrot.lane.b32.xlu0 %v1496, 32
        %v4800 = vpop.permute.xlu0 %4799
        %4801 = vrot.lane.b32.xlu0 %v1497, 32
        %v4802 = vpop.permute.xlu0 %4801
        %4803 = vrot.lane.b32.xlu0 %v1498, 32
        %v4804 = vpop.permute.xlu0 %4803
        %4805 = vrot.lane.b32.xlu0 %v1499, 32
        %v4806 = vpop.permute.xlu0 %4805
        %4823 = vmatprep.subr.bf16.mxu0 0
        %4824 = vmatpush1.bf16.msra.mxu0 %v4776
        %4825 = vmatprep.subr.bf16.mxu0 0
        %4826 = vmatpush1.bf16.msra.mxu0 %v4778
        %4827 = vmatprep.subr.bf16.mxu0 0
        %4828 = vmatpush1.bf16.msra.mxu0 %v4780
        %4829 = vmatprep.subr.bf16.mxu0 0
        %4830 = vmatpush1.bf16.msra.mxu0 %v4782
        %4831 = vmatprep.subr.bf16.mxu0 0
        %4832 = vmatpush1.bf16.msra.mxu0 %v4784
        %4833 = vmatprep.subr.bf16.mxu0 0
        %4834 = vmatpush1.bf16.msra.mxu0 %v4786
        %4835 = vmatprep.subr.bf16.mxu0 0
        %4836 = vmatpush1.bf16.msra.mxu0 %v4788
        %4837 = vmatprep.subr.bf16.mxu0 0
        %4838 = vmatpush1.bf16.msra.mxu0 %v4790
        %4839 = vmatprep.subr.bf16.mxu0 0
        %4840 = vmatpush1.bf16.msra.mxu0 %v4792
        %4841 = vmatprep.subr.bf16.mxu0 0
        %4842 = vmatpush1.bf16.msra.mxu0 %v4794
        %4843 = vmatprep.subr.bf16.mxu0 0
        %4844 = vmatpush1.bf16.msra.mxu0 %v4796
        %4845 = vmatprep.subr.bf16.mxu0 0
        %4846 = vmatpush1.bf16.msra.mxu0 %v4798
        %4847 = vmatprep.subr.bf16.mxu0 0
        %4848 = vmatpush1.bf16.msra.mxu0 %v4800
        %4849 = vmatprep.subr.bf16.mxu0 0
        %4850 = vmatpush1.bf16.msra.mxu0 %v4802
        %4851 = vmatprep.subr.bf16.mxu0 0
        %4852 = vmatpush1.bf16.msra.mxu0 %v4804
        %4853 = vmatprep.subr.bf16.mxu0 0
        %4854 = vmatpush1.bf16.msra.mxu0 %v4806
        %4855 = vmatprep.mubr.bf16.mxu0 %v4760
        %4856 = vmatmul.mubr.bf16.gmra.mrb[0].mxu0 %v4759
        %v4857 = vpop.f32.mrb[0].mxu0
        %v4858 = vadd.f32 0.0, %v4857
        %v4859 = vpop.f32.mrb[0].mxu0
        %v4860 = vpop.f32.mrb[0].mxu0
        %v4861 = vadd.f32 0.0, %v4860
        %v4862 = vpop.f32.mrb[0].mxu0
        %4863 = vmatprep.mubr.bf16.mxu0 %v4762
        %4864 = vmatmul.mubr.bf16.gmra.mrb[0].mxu0 %v4761
        %v4865 = vpop.f32.mrb[0].mxu0
        %v4866 = vadd.f32 0.0, %v4865
        %v4867 = vpop.f32.mrb[0].mxu0
        %v4868 = vpop.f32.mrb[0].mxu0
        %v4869 = vadd.f32 0.0, %v4868
        %v4870 = vpop.f32.mrb[0].mxu0
        %4871 = vmatprep.mubr.bf16.mxu0 %v4764
        %4872 = vmatmul.mubr.bf16.gmra.mrb[0].mxu0 %v4763
        %v4873 = vpop.f32.mrb[0].mxu0
        %v4874 = vadd.f32 0.0, %v4873
        %v4875 = vpop.f32.mrb[0].mxu0
        %v4876 = vpop.f32.mrb[0].mxu0
        %v4877 = vadd.f32 0.0, %v4876
        %v4878 = vpop.f32.mrb[0].mxu0
        %4879 = vmatprep.mubr.bf16.mxu0 %v4766
        %4880 = vmatmul.mubr.bf16.gmra.mrb[0].mxu0 %v4765
        %v4881 = vpop.f32.mrb[0].mxu0
        %v4882 = vadd.f32 0.0, %v4881
        %v4883 = vpop.f32.mrb[0].mxu0
        %v4884 = vpop.f32.mrb[0].mxu0
        %v4885 = vadd.f32 0.0, %v4884
        %v4886 = vpop.f32.mrb[0].mxu0
        %4887 = vmatprep.mubr.bf16.mxu0 %v4768
        %4888 = vmatmul.mubr.bf16.gmra.mrb[0].mxu0 %v4767
        %v4889 = vpop.f32.mrb[0].mxu0
        %v4890 = vadd.f32 0.0, %v4889
        %v4891 = vpop.f32.mrb[0].mxu0
        %v4892 = vpop.f32.mrb[0].mxu0
        %v4893 = vadd.f32 0.0, %v4892
        %v4894 = vpop.f32.mrb[0].mxu0
        %4895 = vmatprep.mubr.bf16.mxu0 %v4770
        %4896 = vmatmul.mubr.bf16.gmra.mrb[0].mxu0 %v4769
        %v4897 = vpop.f32.mrb[0].mxu0
        %v4898 = vadd.f32 0.0, %v4897
        %v4899 = vpop.f32.mrb[0].mxu0
        %v4900 = vpop.f32.mrb[0].mxu0
        %v4901 = vadd.f32 0.0, %v4900
        %v4902 = vpop.f32.mrb[0].mxu0
        %4903 = vmatprep.mubr.bf16.mxu0 %v4772
        %4904 = vmatmul.mubr.bf16.gmra.mrb[0].mxu0 %v4771
        %v4905 = vpop.f32.mrb[0].mxu0
        %v4906 = vadd.f32 0.0, %v4905
        %v4907 = vpop.f32.mrb[0].mxu0
        %v4908 = vpop.f32.mrb[0].mxu0
        %v4909 = vadd.f32 0.0, %v4908
        %v4910 = vpop.f32.mrb[0].mxu0
        %4911 = vmatprep.mubr.bf16.mxu0 %v4774
        %4912 = vmatmul.mubr.bf16.gmra.mrb[0].mxu0 %v4773
        %v4913 = vpop.f32.mrb[0].mxu0
        %v4914 = vadd.f32 0.0, %v4913
        %v4915 = vpop.f32.mrb[0].mxu0
        %v4916 = vpop.f32.mrb[0].mxu0
        %v4917 = vadd.f32 0.0, %v4916
        %v4918 = vpop.f32.mrb[0].mxu0
        %4919 = vdwg.mxu0
        %v4920 = vmul.f32 %v4858, %v4743
        %v4921 = vmul.f32 %v4861, %v4744
        %v4922 = vmul.f32 %v4866, %v4745
        %v4923 = vmul.f32 %v4869, %v4746
        %v4924 = vmul.f32 %v4874, %v4747
        %v4925 = vmul.f32 %v4877, %v4748
        %v4926 = vmul.f32 %v4882, %v4749
        %v4927 = vmul.f32 %v4885, %v4750
        %v4928 = vmul.f32 %v4890, %v4751
        %v4929 = vmul.f32 %v4893, %v4752
        %v4930 = vmul.f32 %v4898, %v4753
        %v4931 = vmul.f32 %v4901, %v4754
        %v4932 = vmul.f32 %v4906, %v4755
        %v4933 = vmul.f32 %v4909, %v4756
        %v4934 = vmul.f32 %v4914, %v4757
        %v4935 = vmul.f32 %v4917, %v4758
        %4952 = vrot.lane.b32.xlu0 %v3194, 32
        %v4953 = vpop.permute.xlu0 %4952
        %4954 = vrot.lane.b32.xlu0 %v3195, 32
        %v4955 = vpop.permute.xlu0 %4954
        %4956 = vrot.lane.b32.xlu0 %v3196, 32
        %v4957 = vpop.permute.xlu0 %4956
        %4958 = vrot.lane.b32.xlu0 %v3197, 32
        %v4959 = vpop.permute.xlu0 %4958
        %4960 = vrot.lane.b32.xlu0 %v3198, 32
        %v4961 = vpop.permute.xlu0 %4960
        %4962 = vrot.lane.b32.xlu0 %v3199, 32
        %v4963 = vpop.permute.xlu0 %4962
        %4964 = vrot.lane.b32.xlu0 %v3200, 32
        %v4965 = vpop.permute.xlu0 %4964
        %4966 = vrot.lane.b32.xlu0 %v3201, 32
        %v4967 = vpop.permute.xlu0 %4966
        %4968 = vrot.lane.b32.xlu0 %v3202, 32
        %v4969 = vpop.permute.xlu0 %4968
        %4970 = vrot.lane.b32.xlu0 %v3203, 32
        %v4971 = vpop.permute.xlu0 %4970
        %4972 = vrot.lane.b32.xlu0 %v3204, 32
        %v4973 = vpop.permute.xlu0 %4972
        %4974 = vrot.lane.b32.xlu0 %v3205, 32
        %v4975 = vpop.permute.xlu0 %4974
        %4976 = vrot.lane.b32.xlu0 %v3206, 32
        %v4977 = vpop.permute.xlu0 %4976
        %4978 = vrot.lane.b32.xlu0 %v3207, 32
        %v4979 = vpop.permute.xlu0 %4978
        %4980 = vrot.lane.b32.xlu0 %v3208, 32
        %v4981 = vpop.permute.xlu0 %4980
        %4982 = vrot.lane.b32.xlu0 %v3209, 32
        %v4983 = vpop.permute.xlu0 %4982
        %5016 = vrot.lane.b32.xlu0 %v4057, 64
        %v5017 = vpop.permute.xlu0 %5016
        %5018 = vrot.lane.b32.xlu0 %v4058, 64
        %v5019 = vpop.permute.xlu0 %5018
        %5020 = vrot.lane.b32.xlu0 %v4059, 64
        %v5021 = vpop.permute.xlu0 %5020
        %5022 = vrot.lane.b32.xlu0 %v4060, 64
        %v5023 = vpop.permute.xlu0 %5022
        %5024 = vrot.lane.b32.xlu0 %v4061, 64
        %v5025 = vpop.permute.xlu0 %5024
        %5026 = vrot.lane.b32.xlu0 %v4062, 64
        %v5027 = vpop.permute.xlu0 %5026
        %5028 = vrot.lane.b32.xlu0 %v4063, 64
        %v5029 = vpop.permute.xlu0 %5028
        %5030 = vrot.lane.b32.xlu0 %v4064, 64
        %v5031 = vpop.permute.xlu0 %5030
        %5032 = vrot.lane.b32.xlu0 %v4065, 64
        %v5033 = vpop.permute.xlu0 %5032
        %5034 = vrot.lane.b32.xlu0 %v4066, 64
        %v5035 = vpop.permute.xlu0 %5034
        %5036 = vrot.lane.b32.xlu0 %v4067, 64
        %v5037 = vpop.permute.xlu0 %5036
        %5038 = vrot.lane.b32.xlu0 %v4068, 64
        %v5039 = vpop.permute.xlu0 %5038
        %5040 = vrot.lane.b32.xlu0 %v4069, 64
        %v5041 = vpop.permute.xlu0 %5040
        %5042 = vrot.lane.b32.xlu0 %v4070, 64
        %v5043 = vpop.permute.xlu0 %5042
        %5044 = vrot.lane.b32.xlu0 %v4071, 64
        %v5045 = vpop.permute.xlu0 %5044
        %5046 = vrot.lane.b32.xlu0 %v4072, 64
        %v5047 = vpop.permute.xlu0 %5046
        %5080 = vrot.lane.b32.xlu0 %v4920, 96
        %v5081 = vpop.permute.xlu0 %5080
        %5082 = vrot.lane.b32.xlu0 %v4921, 96
        %v5083 = vpop.permute.xlu0 %5082
        %5084 = vrot.lane.b32.xlu0 %v4922, 96
        %v5085 = vpop.permute.xlu0 %5084
        %5086 = vrot.lane.b32.xlu0 %v4923, 96
        %v5087 = vpop.permute.xlu0 %5086
        %5088 = vrot.lane.b32.xlu0 %v4924, 96
        %v5089 = vpop.permute.xlu0 %5088
        %5090 = vrot.lane.b32.xlu0 %v4925, 96
        %v5091 = vpop.permute.xlu0 %5090
        %5092 = vrot.lane.b32.xlu0 %v4926, 96
        %v5093 = vpop.permute.xlu0 %5092
        %5094 = vrot.lane.b32.xlu0 %v4927, 96
        %v5095 = vpop.permute.xlu0 %5094
        %5096 = vrot.lane.b32.xlu0 %v4928, 96
        %v5097 = vpop.permute.xlu0 %5096
        %5098 = vrot.lane.b32.xlu0 %v4929, 96
        %v5099 = vpop.permute.xlu0 %5098
        %5100 = vrot.lane.b32.xlu0 %v4930, 96
        %v5101 = vpop.permute.xlu0 %5100
        %5102 = vrot.lane.b32.xlu0 %v4931, 96
        %v5103 = vpop.permute.xlu0 %5102
        %5104 = vrot.lane.b32.xlu0 %v4932, 96
        %v5105 = vpop.permute.xlu0 %5104
        %5106 = vrot.lane.b32.xlu0 %v4933, 96
        %v5107 = vpop.permute.xlu0 %5106
        %5108 = vrot.lane.b32.xlu0 %v4934, 96
        %v5109 = vpop.permute.xlu0 %5108
        %5110 = vrot.lane.b32.xlu0 %v4935, 96
        %v5111 = vpop.permute.xlu0 %5110
        %v5128 = vsel %vm474, %v2315, %v4953
        %v5129 = vsel %vm474, %v2316, %v4955
        %v5130 = vsel %vm474, %v2317, %v4957
        %v5131 = vsel %vm474, %v2318, %v4959
        %v5132 = vsel %vm474, %v2319, %v4961
        %v5133 = vsel %vm474, %v2320, %v4963
        %v5134 = vsel %vm474, %v2321, %v4965
        %v5135 = vsel %vm474, %v2322, %v4967
        %v5136 = vsel %vm474, %v2323, %v4969
        %v5137 = vsel %vm474, %v2324, %v4971
        %v5138 = vsel %vm474, %v2325, %v4973
        %v5139 = vsel %vm474, %v2326, %v4975
        %v5140 = vsel %vm474, %v2327, %v4977
        %v5141 = vsel %vm474, %v2328, %v4979
        %v5142 = vsel %vm474, %v2329, %v4981
        %v5143 = vsel %vm474, %v2330, %v4983
        %vm5144 = vcmask 523264
        %v5145 = vsel %vm5144, %v5128, %v5017
        %v5146 = vsel %vm5144, %v5129, %v5019
        %v5147 = vsel %vm5144, %v5130, %v5021
        %v5148 = vsel %vm5144, %v5131, %v5023
        %v5149 = vsel %vm5144, %v5132, %v5025
        %v5150 = vsel %vm5144, %v5133, %v5027
        %v5151 = vsel %vm5144, %v5134, %v5029
        %v5152 = vsel %vm5144, %v5135, %v5031
        %v5153 = vsel %vm5144, %v5136, %v5033
        %v5154 = vsel %vm5144, %v5137, %v5035
        %v5155 = vsel %vm5144, %v5138, %v5037
        %v5156 = vsel %vm5144, %v5139, %v5039
        %v5157 = vsel %vm5144, %v5140, %v5041
        %v5158 = vsel %vm5144, %v5141, %v5043
        %v5159 = vsel %vm5144, %v5142, %v5045
        %v5160 = vsel %vm5144, %v5143, %v5047
        %vm5161 = vcmask 785408
        %v5162 = vsel %vm5161, %v5145, %v5081
        %v5163 = vsel %vm5161, %v5146, %v5083
        %v5164 = vsel %vm5161, %v5147, %v5085
        %v5165 = vsel %vm5161, %v5148, %v5087
        %v5166 = vsel %vm5161, %v5149, %v5089
        %v5167 = vsel %vm5161, %v5150, %v5091
        %v5168 = vsel %vm5161, %v5151, %v5093
        %v5169 = vsel %vm5161, %v5152, %v5095
        %v5170 = vsel %vm5161, %v5153, %v5097
        %v5171 = vsel %vm5161, %v5154, %v5099
        %v5172 = vsel %vm5161, %v5155, %v5101
        %v5173 = vsel %vm5161, %v5156, %v5103
        %v5174 = vsel %vm5161, %v5157, %v5105
        %v5175 = vsel %vm5161, %v5158, %v5107
        %v5176 = vsel %vm5161, %v5159, %v5109
        %v5177 = vsel %vm5161, %v5160, %v5111
        %5178 = vst [vmem:[%s405] sm:$0xff] %v5162
        %5179 = vst [vmem:[%s405 + $0x8] sm:$0xff] %v5163
        %5180 = vst [vmem:[%s405 + $0x10] sm:$0xff] %v5164
        %5181 = vst [vmem:[%s405 + $0x18] sm:$0xff] %v5165
        %5182 = vst [vmem:[%s405 + $0x20] sm:$0xff] %v5166
        %5183 = vst [vmem:[%s405 + $0x28] sm:$0xff] %v5167
        %5184 = vst [vmem:[%s405 + $0x30] sm:$0xff] %v5168
        %5185 = vst [vmem:[%s405 + $0x38] sm:$0xff] %v5169
        %5186 = vst [vmem:[%s405 + $0x40] sm:$0xff] %v5170
        %5187 = vst [vmem:[%s405 + $0x48] sm:$0xff] %v5171
        %5188 = vst [vmem:[%s405 + $0x50] sm:$0xff] %v5172
        %5189 = vst [vmem:[%s405 + $0x58] sm:$0xff] %v5173
        %5190 = vst [vmem:[%s405 + $0x60] sm:$0xff] %v5174
        %5191 = vst [vmem:[%s405 + $0x68] sm:$0xff] %v5175
        %5192 = vst [vmem:[%s405 + $0x70] sm:$0xff] %v5176
        %5193 = vst [vmem:[%s405 + $0x78] sm:$0xff] %v5177
        %s5194 = sand.u32 %s195, 1
        %s5195 = scalar_lea.sflag [#allocation4], %s5194
        %s5196 = sand.u32 %s195, 1
        %s5197 = smul.addr %s5196, 128
        %s5198 = scalar_lea.vmem [#allocation15], %s5197
        // Predicated region
        $region77: #{tpu_custom_call.1} parent=47 // pred_check
          %p5199 = pneg %p205
        $region78: #{tpu_custom_call.1} parent=47 // pred_check_branch
          %5201 = sbr.rel (%p5199) target = $region80
        $region79: #{tpu_custom_call.1} parent=47 // pred_region
          %s5202 = smul.u32 16, %s30
          %s5204 = ssub.s32 2048, 2048
          %5205 = vsyncadd %s5195, %s5204
          %s5206 = smul.addr %s5202, 128
          %s5207 = scalar_lea.hbm %s7, %s5206
          %s5208 = sshll.u32 %s5198, 4
          %s5209 = int_to_ptr.vmem [resolvable:$true] %s5208
          %5214 = dma.vmem_to_hbm [thread:$0]  %s5209, 2048, %s5207, %s5195, 128, 128, 8
        $region80: #{tpu_custom_call.1} parent=47 // pred_fallthru
          _
      $region48: #{tpu_custom_call.1} parent=5 // pred_fallthru
        _
      %p5215 = scmp.le.s32.totalorder 2, %s25
      // Predicated region
      $region81: #{tpu_custom_call.1} parent=5 // pred_check
        %p5216 = pneg %p5215
      $region82: #{tpu_custom_call.1} parent=5 // pred_check_branch
        %5218 = sbr.rel (%p5216) target = $region84
      $region83: #{tpu_custom_call.1} parent=5 // pred_region
        %s5219 = ssub.s32 %s25, 2
        // Predicated region
        $region85: #{tpu_custom_call.1} parent=83 // pred_check
          %p5220 = pneg %p211
        $region86: #{tpu_custom_call.1} parent=83 // pred_check_branch
          %5222 = sbr.rel (%p5220) target = $region88
        $region87: #{tpu_custom_call.1} parent=83 // pred_region
          %s5223 = sand.u32 %s196, 1
          %s5224 = scalar_lea.sflag [#allocation4], %s5223
          %s5225 = sand.u32 %s196, 1
          %s5226 = smul.addr %s5225, 128
          %s5227 = scalar_lea.vmem [#allocation15], %s5226
          %5228 = dma.done %s5224, 2048
        $region88: #{tpu_custom_call.1} parent=83 // pred_fallthru
          _
      $region84: #{tpu_custom_call.1} parent=5 // pred_fallthru
        _
    $region6: #{tpu_custom_call.1} parent=1 // loop_footer
      %s29 = sadd.s32 1, %s25
    $region7: #{tpu_custom_call.1} parent=1 // loop_footer_branch
      %24 = sbr.rel target = $region3
    $region8: #{tpu_custom_call.1} parent=1 // loop_exit
      _
    %5229 = vsyncpa [#allocation3], 1
    %s5230 = scalar_lea.sflag [#allocation3], 1
    %5231 = vsyncpa %s5230, 1
    %5232 = vsyncpa [#allocation7], 1
    %s5233 = scalar_lea.sflag [#allocation7], 1
    %5234 = vsyncpa %s5233, 1
    %5235 = vsyncpa [#allocation10], 1
    %5236 = vsyncpa [#allocation13], 1
    %s5237 = scalar_lea.sflag [#allocation13], 1
    %5238 = vsyncpa %s5237, 1
    %5239 = vsyncpa [#allocation4], 1
    %s5240 = scalar_lea.sflag [#allocation4], 1
    %5241 = vsyncpa %s5240, 1
    %5242 = vsyncpa [#allocation5], 1
    %s5243 = scalar_lea.sflag [#allocation5], 1
    %5244 = vsyncpa %s5243, 1

</llo_original>
